<compile_context>
chip_gen: v6e
topology: v6e:2x2x1
jax: 0.10.0
libtpu: 0.0.40
codegen_flags: <defaults>
</compile_context>

<pallas_src>
from functools import partial

import jax
import jax.numpy as jnp
from jax.experimental import pallas as pl
from jax.experimental.pallas import tpu as pltpu


def _subpixel_conv_kernel(x_ref, w_ref, b_ref, a_ref, o_ref, patch_ref, *,
                          tile_h):
    """One (batch, row-tile) step of Conv2d(C, 4C, 3, pad=1) + bias + PReLU.

    x_ref     : (1, H+2, W+2, C) bf16  full padded image of this batch element
                                       (block index constant in h -> one DMA/n).
    w_ref     : (9*C, 4*C)       bf16  im2col weight matrix, row order (dy,dx,ci).
    b_ref     : (1, 4*C)         f32   bias.
    a_ref     : (1, 1)           f32   PReLU alpha (SMEM).
    o_ref     : (1, ...) block with prod == tile_h * W * 4*C (lane-dense when
                                       4C is a multiple of 128).
    patch_ref : (tile_h*W, 9*C)  bf16  VMEM scratch for the im2col LHS.
    """
    C = x_ref.shape[3]
    W = x_ref.shape[2] - 2
    h = pl.program_id(1)
    row0 = pl.multiple_of(h * tile_h, tile_h)

    # Build the im2col LHS with 9 plain lane-offset stores into VMEM scratch
    # (vst slot) instead of a 9-way lane concatenate (VPU copy chain).  Every
    # column of patch_ref is overwritten each step, so no stale data survives.
    for dy in range(3):
        rows = x_ref[0, pl.ds(row0 + dy, tile_h)]           # (tile_h, W+2, C)
        for dx in range(3):
            t = dy * 3 + dx
            tap = rows[:, dx:dx + W, :].reshape(tile_h * W, C)
            patch_ref[:, t * C:(t + 1) * C] = tap

    # Single packed matmul: (tile_h*W, 9C) x (9C, 4C), bf16 operands, f32 acc.
    acc = jnp.dot(patch_ref[...], w_ref[...],
                  preferred_element_type=jnp.float32)        # (tile_h*W, 4*C)

    # f32 epilogue: bias + PReLU (single shared alpha).
    acc = acc + b_ref[...]
    alpha = a_ref[0, 0]
    acc = jnp.where(acc >= 0, acc, alpha * acc)

    o_ref[0] = acc.reshape(o_ref.shape[1:]).astype(o_ref.dtype)


def _pick_tile_h(H, W):
    """Row-tile height: a divisor of H with tile_h*W sublane aligned (or H
    itself).  Target M = tile_h*W in [256, 1024] to fill the 256-wide MXU on
    v6e/v7x and amortize per-grid-step overhead, while keeping the f32
    accumulator / output block small enough for v7x VMEM."""
    cands = [t for t in range(1, H + 1)
             if H % t == 0 and ((t * W) % 8 == 0 or t == H)]
    good = [t for t in cands if 256 <= t * W <= 1024]
    if good:
        return max(good)
    under = [t for t in cands if t * W <= 1024]
    if under:
        return max(under)
    return min(cands)


def _vmem_limit_bytes():
    """Scoped-VMEM limit with headroom below physical VMEM (v7x 64 MiB,
    v5e/v6e 128 MiB); safe fallback if the hardware query is unavailable."""
    try:
        phys = int(pltpu.get_tpu_info().vmem_capacity_bytes)
    except Exception:
        phys = 64 * 1024 * 1024
    return max(32 * 1024 * 1024,
               min(phys - 16 * 1024 * 1024, 100 * 1024 * 1024))


@jax.jit
def subpixel_convolution_layer(x_nchw, weight, bias, alpha):
    """Forward pass matching the PyTorch module.

    x_nchw : (N, C, H, W)  f32
    weight : (4C, C, 3, 3) f32   (PyTorch Conv2d layout)
    bias   : (4C,)         f32
    alpha  : scalar        f32   (PReLU weight, num_parameters=1)
    returns: (N, C, 2H, 2W) f32
    """
    N, C, H, W = x_nchw.shape
    Cout = 4 * C

    # ---- wrapper layout work: one input-side pass (transpose + pad + bf16) --
    x_pad = jnp.pad(jnp.transpose(x_nchw, (0, 2, 3, 1)),
                    ((0, 0), (1, 1), (1, 1), (0, 0))).astype(jnp.bfloat16)

    # (Cout, Cin, 3, 3) -> (3, 3, Cin, Cout) -> (9*Cin, Cout): im2col weights,
    # row order (dy, dx, ci) matching the kernel's patch column order.
    w_k = jnp.transpose(weight, (2, 3, 1, 0)).reshape(9 * C, Cout)
    w_k = w_k.astype(jnp.bfloat16)
    b_k = bias.reshape(1, Cout).astype(jnp.float32)
    a_k = jnp.asarray(alpha, jnp.float32).reshape(1, 1)

    tile_h = _pick_tile_h(H, W)
    n_h = H // tile_h
    M = tile_h * W

    # Lane-dense output layout when Cout is a multiple of 128 (module default
    # channels=64 -> Cout=256): rows of (tile_h*W, Cout) store unmasked.
    lane_dense = (Cout % 128 == 0) and (M % 8 == 0 or M == H * W)
    if lane_dense:
        out_shape = jax.ShapeDtypeStruct((N, H * W, Cout), jnp.float32)
        out_spec = pl.BlockSpec((1, M, Cout), lambda n, h: (n, h, 0))
    else:
        # Small-Cout fallback: NHWC 4-D blocks (lane-masked stores; only hit
        # for toy channel counts).
        out_shape = jax.ShapeDtypeStruct((N, H, W, Cout), jnp.float32)
        out_spec = pl.BlockSpec((1, tile_h, W, Cout), lambda n, h: (n, h, 0, 0))

    conv = pl.pallas_call(
        partial(_subpixel_conv_kernel, tile_h=tile_h),
        out_shape=out_shape,
        grid_spec=pltpu.PrefetchScalarGridSpec(
            num_scalar_prefetch=0,
            grid=(N, n_h),
            in_specs=[
                # Whole padded image per batch element (bf16); block index is
                # constant in h so it is DMA'd once per image and reused by
                # every row tile.
                pl.BlockSpec((1, H + 2, W + 2, C), lambda n, h: (n, 0, 0, 0)),
                pl.BlockSpec((9 * C, Cout), lambda n, h: (0, 0)),
                pl.BlockSpec((1, Cout), lambda n, h: (0, 0)),
                pl.BlockSpec(memory_space=pltpu.MemorySpace.SMEM),
            ],
            out_specs=out_spec,
            scratch_shapes=[pltpu.VMEM((M, 9 * C), jnp.bfloat16)],
        ),
        compiler_params=pltpu.CompilerParams(
            # h marked "arbitrary": megacore shards on N only, so the two
            # TensorCores never both fetch the same whole padded image.
            dimension_semantics=("parallel", "arbitrary"),
            vmem_limit_bytes=_vmem_limit_bytes(),
        ),
    )(x_pad, w_k, b_k, a_k)

    # conv has NHWC element order (N, H, W, 4C).  PixelShuffle(2) plus the
    # final NCHW conversion collapse into ONE fused output-sized transpose:
    # (n, y, x, c, i, j) -> (n, c, y, i, x, j).
    conv6 = conv.reshape(N, H, W, C, 2, 2)
    out = jnp.transpose(conv6, (0, 3, 1, 4, 2, 5)).reshape(N, C, 2 * H, 2 * W)
    return out


def _reference(x_nchw, weight, bias, alpha):
    """Pure-JAX reference.  Operands are quantized to bf16 (exactly what the
    kernel feeds the MXU) so the comparison isolates kernel math errors."""
    xq = x_nchw.astype(jnp.bfloat16).astype(jnp.float32)
    wq = weight.astype(jnp.bfloat16).astype(jnp.float32)
    conv = jax.lax.conv_general_dilated(
        xq, wq, window_strides=(1, 1), padding=((1, 1), (1, 1)),
        dimension_numbers=("NCHW", "OIHW", "NCHW"),
        precision=jax.lax.Precision.HIGHEST,
    ) + bias[None, :, None, None]
    N, C4, H, W = conv.shape
    C = C4 // 4
    out = conv.reshape(N, C, 2, 2, H, W)
    out = jnp.transpose(out, (0, 1, 4, 2, 5, 3)).reshape(N, C, 2 * H, 2 * W)
    return jnp.where(out >= 0, out, alpha * out)


if __name__ == "__main__":
    key = jax.random.PRNGKey(0)
    kx, kw, kb = jax.random.split(key, 3)

    # Module default is channels=64 (Cout=256 -> lane-dense path); keep the
    # spatial size and batch small.
    N, C, H, W = 2, 64, 16, 16
    x = jax.random.normal(kx, (N, C, H, W), dtype=jnp.float32)

    fan_in = C * 3 * 3
    bound = 1.0 / (fan_in ** 0.5)
    weight = jax.random.uniform(
        kw, (4 * C, C, 3, 3), jnp.float32, minval=-bound, maxval=bound)
    bias = jax.random.uniform(
        kb, (4 * C,), jnp.float32, minval=-bound, maxval=bound)
    alpha = jnp.float32(0.25)  # PReLU default init

    out = jax.block_until_ready(
        subpixel_convolution_layer(x, weight, bias, alpha))

    ref = _reference(x, weight, bias, alpha)
    assert out.shape == (N, C, 2 * H, 2 * W), out.shape
    # Both sides consume bf16-quantized operands with f32 accumulation, so the
    # only residual difference is accumulation order (~1e-6 relative).
    max_err = float(jnp.max(jnp.abs(out - ref)))
    assert jnp.allclose(out, ref, atol=3e-3, rtol=3e-3), f"max_err={max_err}"

    print("KERNEL_OK")
</pallas_src>

<mosaic_0001>
module attributes {stable_mosaic.version = 11 : i64} {
  func.func @_subpixel_conv_kernel(%arg0: i32, %arg1: i32, %arg2: memref<1x18x18x64xbf16, #tpu.memory_space<vmem>>, %arg3: memref<576x256xbf16, #tpu.memory_space<vmem>>, %arg4: memref<1x256xf32, #tpu.memory_space<vmem>>, %arg5: memref<1x1xf32, #tpu.memory_space<smem>>, %arg6: memref<1x256x256xf32, #tpu.memory_space<vmem>>, %arg7: memref<256x576xbf16, #tpu.memory_space<vmem>>) attributes {dimension_semantics = [#tpu.dimension_semantics<parallel>, #tpu.dimension_semantics<arbitrary>], iteration_bounds = array<i64: 2, 1>, scalar_prefetch = 0 : i64, scratch_operands = 1 : i64, tpu.core_type = #tpu.core_type<tc>, window_params = [{transform_indices = @transform_0, window_bounds = array<i64: 1, 18, 18, 64>}, {pipeline_mode = #tpu.pipeline_mode<synchronous>, transform_indices = @transform_1, window_bounds = array<i64: 576, 256>}, {pipeline_mode = #tpu.pipeline_mode<synchronous>, transform_indices = @transform_2, window_bounds = array<i64: 1, 256>}, {transform_indices = @transform_3, window_bounds = array<i64: 1, 1>}, {transform_indices = @transform_4, window_bounds = array<i64: 1, 256, 256>}]} {
    %c16_i32 = arith.constant 16 : i32
    %0 = arith.muli %arg1, %c16_i32 : i32
    %1 = tpu.assume_multiple %0, 16 : i32
    %c0_i32 = arith.constant 0 : i32
    %2 = arith.addi %1, %c0_i32 : i32
    %c0 = arith.constant 0 : index
    %3 = arith.index_cast %2 : i32 to index
    %c0_0 = arith.constant 0 : index
    %c0_1 = arith.constant 0 : index
    %4 = vector.load %arg2[%c0, %3, %c0_0, %c0_1] : memref<1x18x18x64xbf16, #tpu.memory_space<vmem>>, vector<1x16x18x64xbf16>
    %5 = vector.shape_cast %4 : vector<1x16x18x64xbf16> to vector<16x18x64xbf16>
    %6 = vector.extract_strided_slice %5 {offsets = [0, 0, 0], sizes = [16, 16, 64], strides = [1, 1, 1]} : vector<16x18x64xbf16> to vector<16x16x64xbf16>
    %7 = vector.shape_cast %6 : vector<16x16x64xbf16> to vector<256x64xbf16>
    %c0_2 = arith.constant 0 : index
    %c0_3 = arith.constant 0 : index
    %8 = vector.load %arg7[%c0_2, %c0_3] : memref<256x576xbf16, #tpu.memory_space<vmem>>, vector<256x64xbf16>
    tpu.vector_store %arg7[%c0_2, %c0_3], %7 {strides = array<i32>} : memref<256x576xbf16, #tpu.memory_space<vmem>>, vector<256x64xbf16>,
    %9 = vector.extract_strided_slice %5 {offsets = [0, 1, 0], sizes = [16, 16, 64], strides = [1, 1, 1]} : vector<16x18x64xbf16> to vector<16x16x64xbf16>
    %10 = vector.shape_cast %9 : vector<16x16x64xbf16> to vector<256x64xbf16>
    %c0_4 = arith.constant 0 : index
    %c64 = arith.constant 64 : index
    %11 = vector.load %arg7[%c0_4, %c64] : memref<256x576xbf16, #tpu.memory_space<vmem>>, vector<256x64xbf16>
    tpu.vector_store %arg7[%c0_4, %c64], %10 {strides = array<i32>} : memref<256x576xbf16, #tpu.memory_space<vmem>>, vector<256x64xbf16>,
    %12 = vector.extract_strided_slice %5 {offsets = [0, 2, 0], sizes = [16, 16, 64], strides = [1, 1, 1]} : vector<16x18x64xbf16> to vector<16x16x64xbf16>
    %13 = vector.shape_cast %12 : vector<16x16x64xbf16> to vector<256x64xbf16>
    %c0_5 = arith.constant 0 : index
    %c128 = arith.constant 128 : index
    %14 = vector.load %arg7[%c0_5, %c128] : memref<256x576xbf16, #tpu.memory_space<vmem>>, vector<256x64xbf16>
    tpu.vector_store %arg7[%c0_5, %c128], %13 {strides = array<i32>} : memref<256x576xbf16, #tpu.memory_space<vmem>>, vector<256x64xbf16>,
    %c1_i32 = arith.constant 1 : i32
    %15 = arith.addi %1, %c1_i32 : i32
    %c0_6 = arith.constant 0 : index
    %16 = arith.index_cast %15 : i32 to index
    %c0_7 = arith.constant 0 : index
    %c0_8 = arith.constant 0 : index
    %17 = vector.load %arg2[%c0_6, %16, %c0_7, %c0_8] : memref<1x18x18x64xbf16, #tpu.memory_space<vmem>>, vector<1x16x18x64xbf16>
    %18 = vector.shape_cast %17 : vector<1x16x18x64xbf16> to vector<16x18x64xbf16>
    %19 = vector.extract_strided_slice %18 {offsets = [0, 0, 0], sizes = [16, 16, 64], strides = [1, 1, 1]} : vector<16x18x64xbf16> to vector<16x16x64xbf16>
    %20 = vector.shape_cast %19 : vector<16x16x64xbf16> to vector<256x64xbf16>
    %c0_9 = arith.constant 0 : index
    %c192 = arith.constant 192 : index
    %21 = vector.load %arg7[%c0_9, %c192] : memref<256x576xbf16, #tpu.memory_space<vmem>>, vector<256x64xbf16>
    tpu.vector_store %arg7[%c0_9, %c192], %20 {strides = array<i32>} : memref<256x576xbf16, #tpu.memory_space<vmem>>, vector<256x64xbf16>,
    %22 = vector.extract_strided_slice %18 {offsets = [0, 1, 0], sizes = [16, 16, 64], strides = [1, 1, 1]} : vector<16x18x64xbf16> to vector<16x16x64xbf16>
    %23 = vector.shape_cast %22 : vector<16x16x64xbf16> to vector<256x64xbf16>
    %c0_10 = arith.constant 0 : index
    %c256 = arith.constant 256 : index
    %24 = vector.load %arg7[%c0_10, %c256] : memref<256x576xbf16, #tpu.memory_space<vmem>>, vector<256x64xbf16>
    tpu.vector_store %arg7[%c0_10, %c256], %23 {strides = array<i32>} : memref<256x576xbf16, #tpu.memory_space<vmem>>, vector<256x64xbf16>,
    %25 = vector.extract_strided_slice %18 {offsets = [0, 2, 0], sizes = [16, 16, 64], strides = [1, 1, 1]} : vector<16x18x64xbf16> to vector<16x16x64xbf16>
    %26 = vector.shape_cast %25 : vector<16x16x64xbf16> to vector<256x64xbf16>
    %c0_11 = arith.constant 0 : index
    %c320 = arith.constant 320 : index
    %27 = vector.load %arg7[%c0_11, %c320] : memref<256x576xbf16, #tpu.memory_space<vmem>>, vector<256x64xbf16>
    tpu.vector_store %arg7[%c0_11, %c320], %26 {strides = array<i32>} : memref<256x576xbf16, #tpu.memory_space<vmem>>, vector<256x64xbf16>,
    %c2_i32 = arith.constant 2 : i32
    %28 = arith.addi %1, %c2_i32 : i32
    %c0_12 = arith.constant 0 : index
    %29 = arith.index_cast %28 : i32 to index
    %c0_13 = arith.constant 0 : index
    %c0_14 = arith.constant 0 : index
    %30 = vector.load %arg2[%c0_12, %29, %c0_13, %c0_14] : memref<1x18x18x64xbf16, #tpu.memory_space<vmem>>, vector<1x16x18x64xbf16>
    %31 = vector.shape_cast %30 : vector<1x16x18x64xbf16> to vector<16x18x64xbf16>
    %32 = vector.extract_strided_slice %31 {offsets = [0, 0, 0], sizes = [16, 16, 64], strides = [1, 1, 1]} : vector<16x18x64xbf16> to vector<16x16x64xbf16>
    %33 = vector.shape_cast %32 : vector<16x16x64xbf16> to vector<256x64xbf16>
    %c0_15 = arith.constant 0 : index
    %c384 = arith.constant 384 : index
    %34 = vector.load %arg7[%c0_15, %c384] : memref<256x576xbf16, #tpu.memory_space<vmem>>, vector<256x64xbf16>
    tpu.vector_store %arg7[%c0_15, %c384], %33 {strides = array<i32>} : memref<256x576xbf16, #tpu.memory_space<vmem>>, vector<256x64xbf16>,
    %35 = vector.extract_strided_slice %31 {offsets = [0, 1, 0], sizes = [16, 16, 64], strides = [1, 1, 1]} : vector<16x18x64xbf16> to vector<16x16x64xbf16>
    %36 = vector.shape_cast %35 : vector<16x16x64xbf16> to vector<256x64xbf16>
    %c0_16 = arith.constant 0 : index
    %c448 = arith.constant 448 : index
    %37 = vector.load %arg7[%c0_16, %c448] : memref<256x576xbf16, #tpu.memory_space<vmem>>, vector<256x64xbf16>
    tpu.vector_store %arg7[%c0_16, %c448], %36 {strides = array<i32>} : memref<256x576xbf16, #tpu.memory_space<vmem>>, vector<256x64xbf16>,
    %38 = vector.extract_strided_slice %31 {offsets = [0, 2, 0], sizes = [16, 16, 64], strides = [1, 1, 1]} : vector<16x18x64xbf16> to vector<16x16x64xbf16>
    %39 = vector.shape_cast %38 : vector<16x16x64xbf16> to vector<256x64xbf16>
    %c0_17 = arith.constant 0 : index
    %c512 = arith.constant 512 : index
    %40 = vector.load %arg7[%c0_17, %c512] : memref<256x576xbf16, #tpu.memory_space<vmem>>, vector<256x64xbf16>
    tpu.vector_store %arg7[%c0_17, %c512], %39 {strides = array<i32>} : memref<256x576xbf16, #tpu.memory_space<vmem>>, vector<256x64xbf16>,
    %c0_18 = arith.constant 0 : index
    %c0_19 = arith.constant 0 : index
    %41 = vector.load %arg7[%c0_18, %c0_19] : memref<256x576xbf16, #tpu.memory_space<vmem>>, vector<256x576xbf16>
    %c0_20 = arith.constant 0 : index
    %c0_21 = arith.constant 0 : index
    %42 = vector.load %arg3[%c0_20, %c0_21] : memref<576x256xbf16, #tpu.memory_space<vmem>>, vector<576x256xbf16>
    %cst = arith.constant dense<0.000000e+00> : vector<256x256xf32>
    %43 = tpu.matmul %41, %42, %cst {dimension_numbers = #tpu.dot_dimension_numbers<[1], [0], [0], [1], [0, 0, 1, 1], [], []>} : vector<256x576xbf16>, vector<576x256xbf16>, vector<256x256xf32> -> vector<256x256xf32>
    %c0_22 = arith.constant 0 : index
    %c0_23 = arith.constant 0 : index
    %44 = vector.load %arg4[%c0_22, %c0_23] : memref<1x256xf32, #tpu.memory_space<vmem>>, vector<1x256xf32>
    %45 = vector.broadcast %44 : vector<1x256xf32> to vector<256x256xf32>
    %46 = arith.addf %43, %45 : vector<256x256xf32>
    %c0_24 = arith.constant 0 : index
    %c0_25 = arith.constant 0 : index
    %47 = memref.load %arg5[%c0_24, %c0_25] : memref<1x1xf32, #tpu.memory_space<smem>>
    %cst_26 = arith.constant 0.000000e+00 : f32
    %48 = vector.broadcast %cst_26 : f32 to vector<256x256xf32>
    %49 = arith.cmpf oge, %46, %48 : vector<256x256xf32>
    %50 = vector.broadcast %47 : f32 to vector<256x256xf32>
    %51 = arith.mulf %50, %46 : vector<256x256xf32>
    %52 = arith.select %49, %46, %51 : vector<256x256xi1>, vector<256x256xf32>
    %c0_27 = arith.constant 0 : index
    %c0_28 = arith.constant 0 : index
    %c0_29 = arith.constant 0 : index
    %53 = vector.load %arg6[%c0_27, %c0_28, %c0_29] : memref<1x256x256xf32, #tpu.memory_space<vmem>>, vector<1x256x256xf32>
    %54 = vector.shape_cast %53 : vector<1x256x256xf32> to vector<256x256xf32>
    %55 = vector.shape_cast %52 : vector<256x256xf32> to vector<1x256x256xf32>
    tpu.vector_store %arg6[%c0_27, %c0_28, %c0_29], %55 {strides = array<i32>} : memref<1x256x256xf32, #tpu.memory_space<vmem>>, vector<1x256x256xf32>,
    return
  }
  func.func @transform_0(%arg0: i32, %arg1: i32) -> (i32, i32, i32, i32) {
    %c0_i32 = arith.constant 0 : i32
    %c0_i32_0 = arith.constant 0 : i32
    %c0_i32_1 = arith.constant 0 : i32
    %c0_i32_2 = arith.constant 0 : i32
    return %arg0, %c0_i32, %c0_i32_0, %c0_i32_1 : i32, i32, i32, i32
  }
  func.func @transform_1(%arg0: i32, %arg1: i32) -> (i32, i32) {
    %c0_i32 = arith.constant 0 : i32
    %c0_i32_0 = arith.constant 0 : i32
    %c0_i32_1 = arith.constant 0 : i32
    return %c0_i32, %c0_i32_0 : i32, i32
  }
  func.func @transform_2(%arg0: i32, %arg1: i32) -> (i32, i32) {
    %c0_i32 = arith.constant 0 : i32
    %c0_i32_0 = arith.constant 0 : i32
    %c0_i32_1 = arith.constant 0 : i32
    return %c0_i32, %c0_i32_0 : i32, i32
  }
  func.func @transform_3(%arg0: i32, %arg1: i32) -> (i32, i32) {
    %c0_i32 = arith.constant 0 : i32
    %c0_i32_0 = arith.constant 0 : i32
    %c0_i32_1 = arith.constant 0 : i32
    return %c0_i32, %c0_i32_0 : i32, i32
  }
  func.func @transform_4(%arg0: i32, %arg1: i32) -> (i32, i32, i32) {
    %c0_i32 = arith.constant 0 : i32
    %c0_i32_0 = arith.constant 0 : i32
    return %arg0, %arg1, %c0_i32 : i32, i32, i32
  }
}

</mosaic_0001>

<llo_original>
// kernel: subpixel_convolution_layer.1
$region0: #{subpixel_convolution_layer.1}
  #allocation0 [shape = 'u32[]', space=smem, size = 0x4, offset = 0x4, fixed_abs, tag = 'smem constant byte address 0x4 - core index']
  #allocation1 [shape = 'u32[144,128]{1,0:T(1,128)}', space=vmem, size = 0x12000, scoped, tag = 'internal scratch']
  #allocation2 [shape = 'bf16[256,576]{1,0:T(8,128)(2,1)}', space=vmem, size = 0x50000, scoped, tag = 'scratch operand']
  #allocation3 [shape = 'f32[1,1]{1,0:T(1,128)S(6)}', space=smem, size = 0x200, scoped, tag = 'scoped memory for subpixel_convolution_layer.1']
  %s0 = inlined_call_operand.vmem [shape: bf16[2,18,18,64], index: 0, kind: input, shape index: {}]
  %s1 = inlined_call_operand.vmem [shape: bf16[576,256], index: 1, kind: input, shape index: {}]
  %s2 = inlined_call_operand.hbm [shape: f32[1,256], index: 2, kind: input, shape index: {}]
  %s3 = inlined_call_operand.<no memory space> [shape: f32[1,1], index: 3, kind: input, shape index: {}]
  %s4 = inlined_call_operand.vmem [shape: f32[2,256,256], index: 4, kind: output, shape index: {}]
  %s5 = sld [smem:[#allocation0]]
  $region53: #{subpixel_convolution_layer.1} parent=0
    _
  %s7 = ssub.s32 1, %s5
  %s8 = scalar_select 0, %s7, %s5
  %9 = sst [smem:[#allocation3]] %s3
  $region1: #{subpixel_convolution_layer.1} parent=0
    #allocation4 [shape = 'u8[1024]{0}', space=vmem, size = 0x400, scoped, tag = 'input window, operand 2, single buffered']
    #allocation5 [shape = 's32[2]{0}', space=sflag, size = 0x8, scoped, tag = 'scoped memory for subpixel_convolution_layer.1']
    %10 = vsyncpa [#allocation5], 0
    loop: start=0, step=1, limit=4
    $region2: #{subpixel_convolution_layer.1} parent=1 // loop_pre_header
      _
    $region3: #{subpixel_convolution_layer.1} parent=1 // loop_header
      %s12 = sphi 0, %s16
      %p13 = scmp.ge.s32.totalorder %s12, 4
      %s19 = sphi 0, %s31
      %s20 = sphi 0, %s27
      %s21 = sphi 0, %s19
      %s22 = sphi 0, %s20
      %s23 = sphi 0, %s21
      %s24 = sphi 0, %s22
      %s34 = sphi 0, %s36
      %s37 = sphi 0, %s34
      %s38 = sphi 0, %s37
      %s54 = sphi 0, %s38
      %s58 = sphi 0, %s58
      %s60 = sphi 0, %s58
      %s61 = sphi 0, %s60
      %s75 = sphi 0, %s61
      %s79 = sphi 0, %s79
      %s81 = sphi 0, %s79
      %s82 = sphi 0, %s81
      %s96 = sphi 0, %s82
      %s100 = sphi 0, %s100
      %s102 = sphi 0, %s100
      %s103 = sphi 0, %s102
      %s117 = sphi 0, %s103
      %s125 = sphi 0, %s127
      %s128 = sphi 0, %s125
      %s129 = sphi 0, %s128
      %s145 = sphi 0, %s129
    $region4: #{subpixel_convolution_layer.1} parent=1 // loop_header_branch
      %15 = sbr.rel (%p13) target = $region8
    $region5: #{subpixel_convolution_layer.1} parent=1 // loop_body
      %s17 = ssub.s32 %s12, 1
      %s18 = ssub.s32 %s12, 2
      %s25 = sadd.s32 1, %s20
      %p26 = scmp.ge.s32.totalorder %s25, 1
      %s27 = scalar_select %p26, 0, %s25
      %s28 = sadd.s32 1, %s19
      %s29 = scalar_select %p26, %s28, %s19
      %p30 = scmp.ge.s32.totalorder %s29, 2
      %s31 = scalar_select %p30, 0, %s29
      %s32 = ssub.s32 %s19, %s31
      %p33 = scmp.eq.s32.totalorder %s32, 0
      %s35 = sadd.s32 %s34, 1
      %s36 = scalar_select %p33, %s34, %s35
      %p39 = pneg %p33
      %p40 = scmp.eq.s32.totalorder %s12, 1
      %p41 = por %p39, %p40
      %p42 = scmp.ne.s32.totalorder %s34, %s37
      %p43 = scmp.eq.s32.totalorder %s12, 0
      %p44 = por %p42, %p43
      %p45 = scmp.ne.s32.totalorder %s34, %s37
      %p46 = scmp.eq.s32.totalorder %s17, 1
      %p47 = por %p45, %p46
      %p48 = scmp.ne.s32.totalorder %s37, %s38
      %p49 = scmp.eq.s32.totalorder %s17, 0
      %p50 = por %p48, %p49
      %p51 = scmp.ne.s32.totalorder %s37, %s38
      %p52 = scmp.eq.s32.totalorder %s18, 1
      %p53 = por %p51, %p52
      %p55 = scmp.ne.s32.totalorder %s38, %s54
      %p56 = scmp.eq.s32.totalorder %s18, 0
      %p57 = por %p55, %p56
      %s59 = sadd.s32 %s58, 1
      %p62 = scmp.eq.s32.totalorder %s12, 1
      %p63 = scmp.ne.s32.totalorder %s58, %s60
      %p64 = scmp.eq.s32.totalorder %s12, 0
      %p65 = por %p63, %p64
      %p66 = scmp.ne.s32.totalorder %s58, %s60
      %p67 = scmp.eq.s32.totalorder %s17, 1
      %p68 = por %p66, %p67
      %p69 = scmp.ne.s32.totalorder %s60, %s61
      %p70 = scmp.eq.s32.totalorder %s17, 0
      %p71 = por %p69, %p70
      %p72 = scmp.ne.s32.totalorder %s60, %s61
      %p73 = scmp.eq.s32.totalorder %s18, 1
      %p74 = por %p72, %p73
      %p76 = scmp.ne.s32.totalorder %s61, %s75
      %p77 = scmp.eq.s32.totalorder %s18, 0
      %p78 = por %p76, %p77
      %s80 = sadd.s32 %s79, 1
      %p83 = scmp.eq.s32.totalorder %s12, 1
      %p84 = scmp.ne.s32.totalorder %s79, %s81
      %p85 = scmp.eq.s32.totalorder %s12, 0
      %p86 = por %p84, %p85
      %p87 = scmp.ne.s32.totalorder %s79, %s81
      %p88 = scmp.eq.s32.totalorder %s17, 1
      %p89 = por %p87, %p88
      %p90 = scmp.ne.s32.totalorder %s81, %s82
      %p91 = scmp.eq.s32.totalorder %s17, 0
      %p92 = por %p90, %p91
      %p93 = scmp.ne.s32.totalorder %s81, %s82
      %p94 = scmp.eq.s32.totalorder %s18, 1
      %p95 = por %p93, %p94
      %p97 = scmp.ne.s32.totalorder %s82, %s96
      %p98 = scmp.eq.s32.totalorder %s18, 0
      %p99 = por %p97, %p98
      %s101 = sadd.s32 %s100, 1
      %p104 = scmp.eq.s32.totalorder %s12, 1
      %p105 = scmp.ne.s32.totalorder %s100, %s102
      %p106 = scmp.eq.s32.totalorder %s12, 0
      %p107 = por %p105, %p106
      %p108 = scmp.ne.s32.totalorder %s100, %s102
      %p109 = scmp.eq.s32.totalorder %s17, 1
      %p110 = por %p108, %p109
      %p111 = scmp.ne.s32.totalorder %s102, %s103
      %p112 = scmp.eq.s32.totalorder %s17, 0
      %p113 = por %p111, %p112
      %p114 = scmp.ne.s32.totalorder %s102, %s103
      %p115 = scmp.eq.s32.totalorder %s18, 1
      %p116 = por %p114, %p115
      %p118 = scmp.ne.s32.totalorder %s103, %s117
      %p119 = scmp.eq.s32.totalorder %s18, 0
      %p120 = por %p118, %p119
      %s121 = ssub.s32 %s19, %s31
      %s122 = ssub.s32 %s20, %s27
      %s123 = sor.u32 %s121, %s122
      %p124 = scmp.eq.s32.totalorder %s123, 0
      %s126 = sadd.s32 %s125, 1
      %s127 = scalar_select %p124, %s125, %s126
      %p130 = pneg %p124
      %p131 = scmp.eq.s32.totalorder %s12, 1
      %p132 = por %p130, %p131
      %p133 = scmp.ne.s32.totalorder %s125, %s128
      %p134 = scmp.eq.s32.totalorder %s12, 0
      %p135 = por %p133, %p134
      %p136 = scmp.ne.s32.totalorder %s125, %s128
      %p137 = scmp.eq.s32.totalorder %s17, 1
      %p138 = por %p136, %p137
      %p139 = scmp.ne.s32.totalorder %s128, %s129
      %p140 = scmp.eq.s32.totalorder %s17, 0
      %p141 = por %p139, %p140
      %p142 = scmp.ne.s32.totalorder %s128, %s129
      %p143 = scmp.eq.s32.totalorder %s18, 1
      %p144 = por %p142, %p143
      %p146 = scmp.ne.s32.totalorder %s129, %s145
      %p147 = scmp.eq.s32.totalorder %s18, 0
      %p148 = por %p146, %p147
      %p149 = scmp.le.s32.totalorder 1, %s12
      %p150 = scmp.lt.s32.totalorder %s12, 3
      %p151 = pnand %p149, %p150
      %p152 = pneg %p151
      // Predicated region
      $region9: #{subpixel_convolution_layer.1} parent=5 // pred_check
        _
      $region10: #{subpixel_convolution_layer.1} parent=5 // pred_check_branch
        %154 = sbr.rel (%p151) target = $region12
      $region11: #{subpixel_convolution_layer.1} parent=5 // pred_region
        %s155 = ssub.s32 %s12, 1
        // Predicated region
        $region13: #{subpixel_convolution_layer.1} parent=11 // pred_check
          %p156 = pneg %p71
        $region14: #{subpixel_convolution_layer.1} parent=11 // pred_check_branch
          %158 = sbr.rel (%p156) target = $region16
        $region15: #{subpixel_convolution_layer.1} parent=11 // pred_region
          _
        $region16: #{subpixel_convolution_layer.1} parent=11 // pred_fallthru
          _
        // Predicated region
        $region17: #{subpixel_convolution_layer.1} parent=11 // pred_check
          %p159 = pneg %p92
        $region18: #{subpixel_convolution_layer.1} parent=11 // pred_check_branch
          %161 = sbr.rel (%p159) target = $region20
        $region19: #{subpixel_convolution_layer.1} parent=11 // pred_region
          %s163 = ssub.s32 32, 32
          %164 = vsyncadd [#allocation5], %s163
          %s166 = sshll.u32 [#allocation4], 4
          %s167 = int_to_ptr.vmem [resolvable:$true] %s166
          %169 = dma.hbm_to_vmem [thread:$0]  %s2, 32, %s167, [#allocation5]
        $region20: #{subpixel_convolution_layer.1} parent=11 // pred_fallthru
          _
        // Predicated region
        $region21: #{subpixel_convolution_layer.1} parent=11 // pred_check
          %p170 = pneg %p113
        $region22: #{subpixel_convolution_layer.1} parent=11 // pred_check_branch
          %172 = sbr.rel (%p170) target = $region24
        $region23: #{subpixel_convolution_layer.1} parent=11 // pred_region
          _
        $region24: #{subpixel_convolution_layer.1} parent=11 // pred_fallthru
          _
      $region12: #{subpixel_convolution_layer.1} parent=5 // pred_fallthru
        _
      %p173 = scmp.lt.s32.totalorder %s12, 2
      // Predicated region
      $region25: #{subpixel_convolution_layer.1} parent=5 // pred_check
        %p174 = pneg %p173
      $region26: #{subpixel_convolution_layer.1} parent=5 // pred_check_branch
        %176 = sbr.rel (%p174) target = $region28
      $region27: #{subpixel_convolution_layer.1} parent=5 // pred_region
        // Predicated region
        $region29: #{subpixel_convolution_layer.1} parent=27 // pred_check
          %p177 = pneg %p44
        $region30: #{subpixel_convolution_layer.1} parent=27 // pred_check_branch
          %179 = sbr.rel (%p177) target = $region32
        $region31: #{subpixel_convolution_layer.1} parent=27 // pred_region
          %p180 = scmp.lt.s32.totalorder %s19, 1
          %s181 = scalar_select %p180, %s19, 1
          %s182 = smul.addr %s181, 54
          %s183 = smul.addr %s182, 4
          %s184 = scalar_lea.vmem %s0, %s183
        $region32: #{subpixel_convolution_layer.1} parent=27 // pred_fallthru
          _
      $region28: #{subpixel_convolution_layer.1} parent=5 // pred_fallthru
        _
      %p185 = scmp.le.s32.totalorder 1, %s12
      %p186 = scmp.lt.s32.totalorder %s12, 3
      %p187 = pnand %p185, %p186
      %p188 = pneg %p187
      // Predicated region
      $region33: #{subpixel_convolution_layer.1} parent=5 // pred_check
        _
      $region34: #{subpixel_convolution_layer.1} parent=5 // pred_check_branch
        %190 = sbr.rel (%p187) target = $region36
      $region35: #{subpixel_convolution_layer.1} parent=5 // pred_region
        %s191 = ssub.s32 %s12, 1
        // Predicated region
        $region37: #{subpixel_convolution_layer.1} parent=35 // pred_check
          %p192 = pneg %p92
        $region38: #{subpixel_convolution_layer.1} parent=35 // pred_check_branch
          %194 = sbr.rel (%p192) target = $region40
        $region39: #{subpixel_convolution_layer.1} parent=35 // pred_region
          %195 = dma.done [#allocation5], 32
        $region40: #{subpixel_convolution_layer.1} parent=35 // pred_fallthru
          _
        %p196 = scmp.lt.s32.totalorder %s21, 1
        %s197 = scalar_select %p196, %s21, 1
        %s198 = smul.addr %s197, 54
        %s199 = smul.addr %s198, 4
        %s200 = scalar_lea.vmem %s0, %s199
        %p201 = pneg %p50
        %p202 = pneg %p47
        %p203 = pneg %p71
        %p204 = pneg %p68
        %p205 = pneg %p92
        %p206 = pneg %p89
        %p207 = pneg %p113
        %p208 = pneg %p110
        %p209 = pneg %p141
        %p210 = pneg %p138
        %s211 = smul.u32 32, %s22
        %p212 = scmp.lt.s32.totalorder %s21, 1
        %s213 = scalar_select %p212, %s21, 1
        %p214 = scmp.lt.s32.totalorder %s211, 31
        %s215 = scalar_select %p214, %s211, 31
        %s216 = smul.addr %s215, 2
        %s217 = smul.addr %s213, 64
        %s218 = sadd.s32 %s216, %s217
        %s219 = smul.addr %s218, 8
        %s220 = scalar_lea.vmem %s4, %s219
        %p221 = scmp.lt.s32.totalorder %s21, 1
        %s222 = scalar_select %p221, %s21, 1
        %s223 = smul.addr %s222, 54
        %s224 = smul.addr %s223, 4
        %s225 = scalar_lea.vmem %s0, %s224
        %s226 = smul.u32 32, %s22
        %p227 = scmp.lt.s32.totalorder %s21, 1
        %s228 = scalar_select %p227, %s21, 1
        %p229 = scmp.lt.s32.totalorder %s226, 31
        %s230 = scalar_select %p229, %s226, 31
        %s231 = smul.addr %s230, 2
        %s232 = smul.addr %s228, 64
        %s233 = sadd.s32 %s231, %s232
        %s234 = smul.addr %s233, 8
        %s235 = scalar_lea.vmem %s4, %s234
        %s236 = smul.u32 32, %s22
        %s238 = smul.u32 %s22, 16
        %s239 = smul.u32 %s238, 3
        %s240 = smul.addr %s239, 4
        %s241 = scalar_lea.vmem %s225, %s240
        %v242 = vld [vmem:[%s241] sm:$0xf]
        %v243 = vld [vmem:[%s241 + $0x4] sm:$0xf]
        %v244 = vld [vmem:[%s241 + $0x8] sm:$0x1]
        %v245 = vld [vmem:[%s241 + $0xc] sm:$0xf]
        %v246 = vld [vmem:[%s241 + $0x10] sm:$0xf]
        %v247 = vld [vmem:[%s241 + $0x14] sm:$0x1]
        %v248 = vld [vmem:[%s241 + $0x18] sm:$0xf]
        %v249 = vld [vmem:[%s241 + $0x1c] sm:$0xf]
        %v250 = vld [vmem:[%s241 + $0x20] sm:$0x1]
        %v251 = vld [vmem:[%s241 + $0x24] sm:$0xf]
        %v252 = vld [vmem:[%s241 + $0x28] sm:$0xf]
        %v253 = vld [vmem:[%s241 + $0x2c] sm:$0x1]
        %v254 = vld [vmem:[%s241 + $0x30] sm:$0xf]
        %v255 = vld [vmem:[%s241 + $0x34] sm:$0xf]
        %v256 = vld [vmem:[%s241 + $0x38] sm:$0x1]
        %v257 = vld [vmem:[%s241 + $0x3c] sm:$0xf]
        %v258 = vld [vmem:[%s241 + $0x40] sm:$0xf]
        %v259 = vld [vmem:[%s241 + $0x44] sm:$0x1]
        %v260 = vld [vmem:[%s241 + $0x48] sm:$0xf]
        %v261 = vld [vmem:[%s241 + $0x4c] sm:$0xf]
        %v262 = vld [vmem:[%s241 + $0x50] sm:$0x1]
        %v263 = vld [vmem:[%s241 + $0x54] sm:$0xf]
        %v264 = vld [vmem:[%s241 + $0x58] sm:$0xf]
        %v265 = vld [vmem:[%s241 + $0x5c] sm:$0x1]
        %v266 = vld [vmem:[%s241 + $0x60] sm:$0xf]
        %v267 = vld [vmem:[%s241 + $0x64] sm:$0xf]
        %v268 = vld [vmem:[%s241 + $0x68] sm:$0x1]
        %v269 = vld [vmem:[%s241 + $0x6c] sm:$0xf]
        %v270 = vld [vmem:[%s241 + $0x70] sm:$0xf]
        %v271 = vld [vmem:[%s241 + $0x74] sm:$0x1]
        %v272 = vld [vmem:[%s241 + $0x78] sm:$0xf]
        %v273 = vld [vmem:[%s241 + $0x7c] sm:$0xf]
        %v274 = vld [vmem:[%s241 + $0x80] sm:$0x1]
        %v275 = vld [vmem:[%s241 + $0x84] sm:$0xf]
        %v276 = vld [vmem:[%s241 + $0x88] sm:$0xf]
        %v277 = vld [vmem:[%s241 + $0x8c] sm:$0x1]
        %v278 = vld [vmem:[%s241 + $0x90] sm:$0xf]
        %v279 = vld [vmem:[%s241 + $0x94] sm:$0xf]
        %v280 = vld [vmem:[%s241 + $0x98] sm:$0x1]
        %v281 = vld [vmem:[%s241 + $0x9c] sm:$0xf]
        %v282 = vld [vmem:[%s241 + $0xa0] sm:$0xf]
        %v283 = vld [vmem:[%s241 + $0xa4] sm:$0x1]
        %v284 = vld [vmem:[%s241 + $0xa8] sm:$0xf]
        %v285 = vld [vmem:[%s241 + $0xac] sm:$0xf]
        %v286 = vld [vmem:[%s241 + $0xb0] sm:$0x1]
        %v287 = vld [vmem:[%s241 + $0xb4] sm:$0xf]
        %v288 = vld [vmem:[%s241 + $0xb8] sm:$0xf]
        %v289 = vld [vmem:[%s241 + $0xbc] sm:$0x1]
        %vm290 = vcmask 519168
        %291 = vst.msk [vmem:[#allocation2] sm:$0xf] %vm290, %v242
        %292 = vst.msk [vmem:[#allocation2 + $0x14] sm:$0xf] %vm290, %v243
        %293 = vst.msk [vmem:[#allocation2 + $0x28] sm:$0xf] %vm290, %v245
        %294 = vst.msk [vmem:[#allocation2 + $0x3c] sm:$0xf] %vm290, %v246
        %295 = vst.msk [vmem:[#allocation2 + $0x50] sm:$0xf] %vm290, %v248
        %296 = vst.msk [vmem:[#allocation2 + $0x64] sm:$0xf] %vm290, %v249
        %297 = vst.msk [vmem:[#allocation2 + $0x78] sm:$0xf] %vm290, %v251
        %298 = vst.msk [vmem:[#allocation2 + $0x8c] sm:$0xf] %vm290, %v252
        %299 = vst.msk [vmem:[#allocation2 + $0xa0] sm:$0xf] %vm290, %v254
        %300 = vst.msk [vmem:[#allocation2 + $0xb4] sm:$0xf] %vm290, %v255
        %301 = vst.msk [vmem:[#allocation2 + $0xc8] sm:$0xf] %vm290, %v257
        %302 = vst.msk [vmem:[#allocation2 + $0xdc] sm:$0xf] %vm290, %v258
        %303 = vst.msk [vmem:[#allocation2 + $0xf0] sm:$0xf] %vm290, %v260
        %304 = vst.msk [vmem:[#allocation2 + $0x104] sm:$0xf] %vm290, %v261
        %305 = vst.msk [vmem:[#allocation2 + $0x118] sm:$0xf] %vm290, %v263
        %306 = vst.msk [vmem:[#allocation2 + $0x12c] sm:$0xf] %vm290, %v264
        %307 = vst.msk [vmem:[#allocation2 + $0x140] sm:$0xf] %vm290, %v266
        %308 = vst.msk [vmem:[#allocation2 + $0x154] sm:$0xf] %vm290, %v267
        %309 = vst.msk [vmem:[#allocation2 + $0x168] sm:$0xf] %vm290, %v269
        %310 = vst.msk [vmem:[#allocation2 + $0x17c] sm:$0xf] %vm290, %v270
        %311 = vst.msk [vmem:[#allocation2 + $0x190] sm:$0xf] %vm290, %v272
        %312 = vst.msk [vmem:[#allocation2 + $0x1a4] sm:$0xf] %vm290, %v273
        %313 = vst.msk [vmem:[#allocation2 + $0x1b8] sm:$0xf] %vm290, %v275
        %314 = vst.msk [vmem:[#allocation2 + $0x1cc] sm:$0xf] %vm290, %v276
        %315 = vst.msk [vmem:[#allocation2 + $0x1e0] sm:$0xf] %vm290, %v278
        %316 = vst.msk [vmem:[#allocation2 + $0x1f4] sm:$0xf] %vm290, %v279
        %317 = vst.msk [vmem:[#allocation2 + $0x208] sm:$0xf] %vm290, %v281
        %318 = vst.msk [vmem:[#allocation2 + $0x21c] sm:$0xf] %vm290, %v282
        %319 = vst.msk [vmem:[#allocation2 + $0x230] sm:$0xf] %vm290, %v284
        %320 = vst.msk [vmem:[#allocation2 + $0x244] sm:$0xf] %vm290, %v285
        %321 = vst.msk [vmem:[#allocation2 + $0x258] sm:$0xf] %vm290, %v287
        %322 = vst.msk [vmem:[#allocation2 + $0x26c] sm:$0xf] %vm290, %v288
        %vm323 = vsmask.f32 3328
        %vm324 = vsmask.f32 7440
        %vm325 = vmor %vm323, %vm324
        %v327 = vshrl.u32 %v242, 16
        %v329 = vrot.slane %v327, 4
        %v330 = vshll.u32 %v242, 16
        %v332 = vrot.slane %v330, 5
        %v333 = vor.u32 %v329, %v332
        %v334 = vrot.slane %v333, 4
        %v336 = vshll.u32 %v243, 16
        %v338 = vrot.slane %v336, 5
        %v339 = vsel %vm325, %v334, %v338
        %v340 = vshrl.u32 %v243, 16
        %v342 = vrot.slane %v340, 4
        %v343 = vor.u32 %v342, %v338
        %v344 = vrot.slane %v343, 4
        %v346 = vshll.u32 %v244, 16
        %v348 = vrot.slane %v346, 5
        %v349 = vsel %vm325, %v344, %v348
        %v351 = vshrl.u32 %v245, 16
        %v353 = vrot.slane %v351, 4
        %v354 = vshll.u32 %v245, 16
        %v356 = vrot.slane %v354, 5
        %v357 = vor.u32 %v353, %v356
        %v358 = vrot.slane %v357, 4
        %v360 = vshll.u32 %v246, 16
        %v362 = vrot.slane %v360, 5
        %v363 = vsel %vm325, %v358, %v362
        %v364 = vshrl.u32 %v246, 16
        %v366 = vrot.slane %v364, 4
        %v367 = vor.u32 %v366, %v362
        %v368 = vrot.slane %v367, 4
        %v370 = vshll.u32 %v247, 16
        %v372 = vrot.slane %v370, 5
        %v373 = vsel %vm325, %v368, %v372
        %v375 = vshrl.u32 %v248, 16
        %v377 = vrot.slane %v375, 4
        %v378 = vshll.u32 %v248, 16
        %v380 = vrot.slane %v378, 5
        %v381 = vor.u32 %v377, %v380
        %v382 = vrot.slane %v381, 4
        %v384 = vshll.u32 %v249, 16
        %v386 = vrot.slane %v384, 5
        %v387 = vsel %vm325, %v382, %v386
        %v388 = vshrl.u32 %v249, 16
        %v390 = vrot.slane %v388, 4
        %v391 = vor.u32 %v390, %v386
        %v392 = vrot.slane %v391, 4
        %v394 = vshll.u32 %v250, 16
        %v396 = vrot.slane %v394, 5
        %v397 = vsel %vm325, %v392, %v396
        %v399 = vshrl.u32 %v251, 16
        %v401 = vrot.slane %v399, 4
        %v402 = vshll.u32 %v251, 16
        %v404 = vrot.slane %v402, 5
        %v405 = vor.u32 %v401, %v404
        %v406 = vrot.slane %v405, 4
        %v408 = vshll.u32 %v252, 16
        %v410 = vrot.slane %v408, 5
        %v411 = vsel %vm325, %v406, %v410
        %v412 = vshrl.u32 %v252, 16
        %v414 = vrot.slane %v412, 4
        %v415 = vor.u32 %v414, %v410
        %v416 = vrot.slane %v415, 4
        %v418 = vshll.u32 %v253, 16
        %v420 = vrot.slane %v418, 5
        %v421 = vsel %vm325, %v416, %v420
        %v423 = vshrl.u32 %v254, 16
        %v425 = vrot.slane %v423, 4
        %v426 = vshll.u32 %v254, 16
        %v428 = vrot.slane %v426, 5
        %v429 = vor.u32 %v425, %v428
        %v430 = vrot.slane %v429, 4
        %v432 = vshll.u32 %v255, 16
        %v434 = vrot.slane %v432, 5
        %v435 = vsel %vm325, %v430, %v434
        %v436 = vshrl.u32 %v255, 16
        %v438 = vrot.slane %v436, 4
        %v439 = vor.u32 %v438, %v434
        %v440 = vrot.slane %v439, 4
        %v442 = vshll.u32 %v256, 16
        %v444 = vrot.slane %v442, 5
        %v445 = vsel %vm325, %v440, %v444
        %v447 = vshrl.u32 %v257, 16
        %v449 = vrot.slane %v447, 4
        %v450 = vshll.u32 %v257, 16
        %v452 = vrot.slane %v450, 5
        %v453 = vor.u32 %v449, %v452
        %v454 = vrot.slane %v453, 4
        %v456 = vshll.u32 %v258, 16
        %v458 = vrot.slane %v456, 5
        %v459 = vsel %vm325, %v454, %v458
        %v460 = vshrl.u32 %v258, 16
        %v462 = vrot.slane %v460, 4
        %v463 = vor.u32 %v462, %v458
        %v464 = vrot.slane %v463, 4
        %v466 = vshll.u32 %v259, 16
        %v468 = vrot.slane %v466, 5
        %v469 = vsel %vm325, %v464, %v468
        %v471 = vshrl.u32 %v260, 16
        %v473 = vrot.slane %v471, 4
        %v474 = vshll.u32 %v260, 16
        %v476 = vrot.slane %v474, 5
        %v477 = vor.u32 %v473, %v476
        %v478 = vrot.slane %v477, 4
        %v480 = vshll.u32 %v261, 16
        %v482 = vrot.slane %v480, 5
        %v483 = vsel %vm325, %v478, %v482
        %v484 = vshrl.u32 %v261, 16
        %v486 = vrot.slane %v484, 4
        %v487 = vor.u32 %v486, %v482
        %v488 = vrot.slane %v487, 4
        %v490 = vshll.u32 %v262, 16
        %v492 = vrot.slane %v490, 5
        %v493 = vsel %vm325, %v488, %v492
        %v495 = vshrl.u32 %v263, 16
        %v497 = vrot.slane %v495, 4
        %v498 = vshll.u32 %v263, 16
        %v500 = vrot.slane %v498, 5
        %v501 = vor.u32 %v497, %v500
        %v502 = vrot.slane %v501, 4
        %v504 = vshll.u32 %v264, 16
        %v506 = vrot.slane %v504, 5
        %v507 = vsel %vm325, %v502, %v506
        %v508 = vshrl.u32 %v264, 16
        %v510 = vrot.slane %v508, 4
        %v511 = vor.u32 %v510, %v506
        %v512 = vrot.slane %v511, 4
        %v514 = vshll.u32 %v265, 16
        %v516 = vrot.slane %v514, 5
        %v517 = vsel %vm325, %v512, %v516
        %v519 = vshrl.u32 %v266, 16
        %v521 = vrot.slane %v519, 4
        %v522 = vshll.u32 %v266, 16
        %v524 = vrot.slane %v522, 5
        %v525 = vor.u32 %v521, %v524
        %v526 = vrot.slane %v525, 4
        %v528 = vshll.u32 %v267, 16
        %v530 = vrot.slane %v528, 5
        %v531 = vsel %vm325, %v526, %v530
        %v532 = vshrl.u32 %v267, 16
        %v534 = vrot.slane %v532, 4
        %v535 = vor.u32 %v534, %v530
        %v536 = vrot.slane %v535, 4
        %v538 = vshll.u32 %v268, 16
        %v540 = vrot.slane %v538, 5
        %v541 = vsel %vm325, %v536, %v540
        %v543 = vshrl.u32 %v269, 16
        %v545 = vrot.slane %v543, 4
        %v546 = vshll.u32 %v269, 16
        %v548 = vrot.slane %v546, 5
        %v549 = vor.u32 %v545, %v548
        %v550 = vrot.slane %v549, 4
        %v552 = vshll.u32 %v270, 16
        %v554 = vrot.slane %v552, 5
        %v555 = vsel %vm325, %v550, %v554
        %v556 = vshrl.u32 %v270, 16
        %v558 = vrot.slane %v556, 4
        %v559 = vor.u32 %v558, %v554
        %v560 = vrot.slane %v559, 4
        %v562 = vshll.u32 %v271, 16
        %v564 = vrot.slane %v562, 5
        %v565 = vsel %vm325, %v560, %v564
        %v567 = vshrl.u32 %v272, 16
        %v569 = vrot.slane %v567, 4
        %v570 = vshll.u32 %v272, 16
        %v572 = vrot.slane %v570, 5
        %v573 = vor.u32 %v569, %v572
        %v574 = vrot.slane %v573, 4
        %v576 = vshll.u32 %v273, 16
        %v578 = vrot.slane %v576, 5
        %v579 = vsel %vm325, %v574, %v578
        %v580 = vshrl.u32 %v273, 16
        %v582 = vrot.slane %v580, 4
        %v583 = vor.u32 %v582, %v578
        %v584 = vrot.slane %v583, 4
        %v586 = vshll.u32 %v274, 16
        %v588 = vrot.slane %v586, 5
        %v589 = vsel %vm325, %v584, %v588
        %v591 = vshrl.u32 %v275, 16
        %v593 = vrot.slane %v591, 4
        %v594 = vshll.u32 %v275, 16
        %v596 = vrot.slane %v594, 5
        %v597 = vor.u32 %v593, %v596
        %v598 = vrot.slane %v597, 4
        %v600 = vshll.u32 %v276, 16
        %v602 = vrot.slane %v600, 5
        %v603 = vsel %vm325, %v598, %v602
        %v604 = vshrl.u32 %v276, 16
        %v606 = vrot.slane %v604, 4
        %v607 = vor.u32 %v606, %v602
        %v608 = vrot.slane %v607, 4
        %v610 = vshll.u32 %v277, 16
        %v612 = vrot.slane %v610, 5
        %v613 = vsel %vm325, %v608, %v612
        %v615 = vshrl.u32 %v278, 16
        %v617 = vrot.slane %v615, 4
        %v618 = vshll.u32 %v278, 16
        %v620 = vrot.slane %v618, 5
        %v621 = vor.u32 %v617, %v620
        %v622 = vrot.slane %v621, 4
        %v624 = vshll.u32 %v279, 16
        %v626 = vrot.slane %v624, 5
        %v627 = vsel %vm325, %v622, %v626
        %v628 = vshrl.u32 %v279, 16
        %v630 = vrot.slane %v628, 4
        %v631 = vor.u32 %v630, %v626
        %v632 = vrot.slane %v631, 4
        %v634 = vshll.u32 %v280, 16
        %v636 = vrot.slane %v634, 5
        %v637 = vsel %vm325, %v632, %v636
        %v639 = vshrl.u32 %v281, 16
        %v641 = vrot.slane %v639, 4
        %v642 = vshll.u32 %v281, 16
        %v644 = vrot.slane %v642, 5
        %v645 = vor.u32 %v641, %v644
        %v646 = vrot.slane %v645, 4
        %v648 = vshll.u32 %v282, 16
        %v650 = vrot.slane %v648, 5
        %v651 = vsel %vm325, %v646, %v650
        %v652 = vshrl.u32 %v282, 16
        %v654 = vrot.slane %v652, 4
        %v655 = vor.u32 %v654, %v650
        %v656 = vrot.slane %v655, 4
        %v658 = vshll.u32 %v283, 16
        %v660 = vrot.slane %v658, 5
        %v661 = vsel %vm325, %v656, %v660
        %v663 = vshrl.u32 %v284, 16
        %v665 = vrot.slane %v663, 4
        %v666 = vshll.u32 %v284, 16
        %v668 = vrot.slane %v666, 5
        %v669 = vor.u32 %v665, %v668
        %v670 = vrot.slane %v669, 4
        %v672 = vshll.u32 %v285, 16
        %v674 = vrot.slane %v672, 5
        %v675 = vsel %vm325, %v670, %v674
        %v676 = vshrl.u32 %v285, 16
        %v678 = vrot.slane %v676, 4
        %v679 = vor.u32 %v678, %v674
        %v680 = vrot.slane %v679, 4
        %v682 = vshll.u32 %v286, 16
        %v684 = vrot.slane %v682, 5
        %v685 = vsel %vm325, %v680, %v684
        %v687 = vshrl.u32 %v287, 16
        %v689 = vrot.slane %v687, 4
        %v690 = vshll.u32 %v287, 16
        %v692 = vrot.slane %v690, 5
        %v693 = vor.u32 %v689, %v692
        %v694 = vrot.slane %v693, 4
        %v696 = vshll.u32 %v288, 16
        %v698 = vrot.slane %v696, 5
        %v699 = vsel %vm325, %v694, %v698
        %v700 = vshrl.u32 %v288, 16
        %v702 = vrot.slane %v700, 4
        %v703 = vor.u32 %v702, %v698
        %v704 = vrot.slane %v703, 4
        %v706 = vshll.u32 %v289, 16
        %v708 = vrot.slane %v706, 5
        %v709 = vsel %vm325, %v704, %v708
        %710 = vrot.lane.b32.xlu0 %v339, 64
        %v711 = vpop.permute.xlu0 %710
        %712 = vrot.lane.b32.xlu0 %v349, 64
        %v713 = vpop.permute.xlu0 %712
        %714 = vrot.lane.b32.xlu0 %v363, 64
        %v715 = vpop.permute.xlu0 %714
        %716 = vrot.lane.b32.xlu0 %v373, 64
        %v717 = vpop.permute.xlu0 %716
        %718 = vrot.lane.b32.xlu0 %v387, 64
        %v719 = vpop.permute.xlu0 %718
        %720 = vrot.lane.b32.xlu0 %v397, 64
        %v721 = vpop.permute.xlu0 %720
        %722 = vrot.lane.b32.xlu0 %v411, 64
        %v723 = vpop.permute.xlu0 %722
        %724 = vrot.lane.b32.xlu0 %v421, 64
        %v725 = vpop.permute.xlu0 %724
        %726 = vrot.lane.b32.xlu0 %v435, 64
        %v727 = vpop.permute.xlu0 %726
        %728 = vrot.lane.b32.xlu0 %v445, 64
        %v729 = vpop.permute.xlu0 %728
        %730 = vrot.lane.b32.xlu0 %v459, 64
        %v731 = vpop.permute.xlu0 %730
        %732 = vrot.lane.b32.xlu0 %v469, 64
        %v733 = vpop.permute.xlu0 %732
        %734 = vrot.lane.b32.xlu0 %v483, 64
        %v735 = vpop.permute.xlu0 %734
        %736 = vrot.lane.b32.xlu0 %v493, 64
        %v737 = vpop.permute.xlu0 %736
        %738 = vrot.lane.b32.xlu0 %v507, 64
        %v739 = vpop.permute.xlu0 %738
        %740 = vrot.lane.b32.xlu0 %v517, 64
        %v741 = vpop.permute.xlu0 %740
        %742 = vrot.lane.b32.xlu0 %v531, 64
        %v743 = vpop.permute.xlu0 %742
        %744 = vrot.lane.b32.xlu0 %v541, 64
        %v745 = vpop.permute.xlu0 %744
        %746 = vrot.lane.b32.xlu0 %v555, 64
        %v747 = vpop.permute.xlu0 %746
        %748 = vrot.lane.b32.xlu0 %v565, 64
        %v749 = vpop.permute.xlu0 %748
        %750 = vrot.lane.b32.xlu0 %v579, 64
        %v751 = vpop.permute.xlu0 %750
        %752 = vrot.lane.b32.xlu0 %v589, 64
        %v753 = vpop.permute.xlu0 %752
        %754 = vrot.lane.b32.xlu0 %v603, 64
        %v755 = vpop.permute.xlu0 %754
        %756 = vrot.lane.b32.xlu0 %v613, 64
        %v757 = vpop.permute.xlu0 %756
        %758 = vrot.lane.b32.xlu0 %v627, 64
        %v759 = vpop.permute.xlu0 %758
        %760 = vrot.lane.b32.xlu0 %v637, 64
        %v761 = vpop.permute.xlu0 %760
        %762 = vrot.lane.b32.xlu0 %v651, 64
        %v763 = vpop.permute.xlu0 %762
        %764 = vrot.lane.b32.xlu0 %v661, 64
        %v765 = vpop.permute.xlu0 %764
        %766 = vrot.lane.b32.xlu0 %v675, 64
        %v767 = vpop.permute.xlu0 %766
        %768 = vrot.lane.b32.xlu0 %v685, 64
        %v769 = vpop.permute.xlu0 %768
        %770 = vrot.lane.b32.xlu0 %v699, 64
        %v771 = vpop.permute.xlu0 %770
        %772 = vrot.lane.b32.xlu0 %v709, 64
        %v773 = vpop.permute.xlu0 %772
        %vm806 = vcmask 1043968
        %807 = vst.msk [vmem:[#allocation2] sm:$0xf] %vm806, %v711
        %808 = vst.msk [vmem:[#allocation2 + $0x14] sm:$0xf] %vm806, %v713
        %809 = vst.msk [vmem:[#allocation2 + $0x28] sm:$0xf] %vm806, %v715
        %810 = vst.msk [vmem:[#allocation2 + $0x3c] sm:$0xf] %vm806, %v717
        %811 = vst.msk [vmem:[#allocation2 + $0x50] sm:$0xf] %vm806, %v719
        %812 = vst.msk [vmem:[#allocation2 + $0x64] sm:$0xf] %vm806, %v721
        %813 = vst.msk [vmem:[#allocation2 + $0x78] sm:$0xf] %vm806, %v723
        %814 = vst.msk [vmem:[#allocation2 + $0x8c] sm:$0xf] %vm806, %v725
        %815 = vst.msk [vmem:[#allocation2 + $0xa0] sm:$0xf] %vm806, %v727
        %816 = vst.msk [vmem:[#allocation2 + $0xb4] sm:$0xf] %vm806, %v729
        %817 = vst.msk [vmem:[#allocation2 + $0xc8] sm:$0xf] %vm806, %v731
        %818 = vst.msk [vmem:[#allocation2 + $0xdc] sm:$0xf] %vm806, %v733
        %819 = vst.msk [vmem:[#allocation2 + $0xf0] sm:$0xf] %vm806, %v735
        %820 = vst.msk [vmem:[#allocation2 + $0x104] sm:$0xf] %vm806, %v737
        %821 = vst.msk [vmem:[#allocation2 + $0x118] sm:$0xf] %vm806, %v739
        %822 = vst.msk [vmem:[#allocation2 + $0x12c] sm:$0xf] %vm806, %v741
        %823 = vst.msk [vmem:[#allocation2 + $0x140] sm:$0xf] %vm806, %v743
        %824 = vst.msk [vmem:[#allocation2 + $0x154] sm:$0xf] %vm806, %v745
        %825 = vst.msk [vmem:[#allocation2 + $0x168] sm:$0xf] %vm806, %v747
        %826 = vst.msk [vmem:[#allocation2 + $0x17c] sm:$0xf] %vm806, %v749
        %827 = vst.msk [vmem:[#allocation2 + $0x190] sm:$0xf] %vm806, %v751
        %828 = vst.msk [vmem:[#allocation2 + $0x1a4] sm:$0xf] %vm806, %v753
        %829 = vst.msk [vmem:[#allocation2 + $0x1b8] sm:$0xf] %vm806, %v755
        %830 = vst.msk [vmem:[#allocation2 + $0x1cc] sm:$0xf] %vm806, %v757
        %831 = vst.msk [vmem:[#allocation2 + $0x1e0] sm:$0xf] %vm806, %v759
        %832 = vst.msk [vmem:[#allocation2 + $0x1f4] sm:$0xf] %vm806, %v761
        %833 = vst.msk [vmem:[#allocation2 + $0x208] sm:$0xf] %vm806, %v763
        %834 = vst.msk [vmem:[#allocation2 + $0x21c] sm:$0xf] %vm806, %v765
        %835 = vst.msk [vmem:[#allocation2 + $0x230] sm:$0xf] %vm806, %v767
        %836 = vst.msk [vmem:[#allocation2 + $0x244] sm:$0xf] %vm806, %v769
        %837 = vst.msk [vmem:[#allocation2 + $0x258] sm:$0xf] %vm806, %v771
        %838 = vst.msk [vmem:[#allocation2 + $0x26c] sm:$0xf] %vm806, %v773
        %vm887 = vcmask 1042432
        %vm888 = vcmask 1046532
        %vm889 = vmor %vm887, %vm888
        %v890 = vrot.slane %v242, 5
        %v891 = vrot.slane %v890, 4
        %v892 = vrot.slane %v243, 5
        %v893 = vsel %vm889, %v891, %v892
        %v894 = vrot.slane %v892, 4
        %v895 = vrot.slane %v244, 5
        %v896 = vsel %vm889, %v894, %v895
        %v897 = vrot.slane %v245, 5
        %v898 = vrot.slane %v897, 4
        %v899 = vrot.slane %v246, 5
        %v900 = vsel %vm889, %v898, %v899
        %v901 = vrot.slane %v899, 4
        %v902 = vrot.slane %v247, 5
        %v903 = vsel %vm889, %v901, %v902
        %v904 = vrot.slane %v248, 5
        %v905 = vrot.slane %v904, 4
        %v906 = vrot.slane %v249, 5
        %v907 = vsel %vm889, %v905, %v906
        %v908 = vrot.slane %v906, 4
        %v909 = vrot.slane %v250, 5
        %v910 = vsel %vm889, %v908, %v909
        %v911 = vrot.slane %v251, 5
        %v912 = vrot.slane %v911, 4
        %v913 = vrot.slane %v252, 5
        %v914 = vsel %vm889, %v912, %v913
        %v915 = vrot.slane %v913, 4
        %v916 = vrot.slane %v253, 5
        %v917 = vsel %vm889, %v915, %v916
        %v918 = vrot.slane %v254, 5
        %v919 = vrot.slane %v918, 4
        %v920 = vrot.slane %v255, 5
        %v921 = vsel %vm889, %v919, %v920
        %v922 = vrot.slane %v920, 4
        %v923 = vrot.slane %v256, 5
        %v924 = vsel %vm889, %v922, %v923
        %v925 = vrot.slane %v257, 5
        %v926 = vrot.slane %v925, 4
        %v927 = vrot.slane %v258, 5
        %v928 = vsel %vm889, %v926, %v927
        %v929 = vrot.slane %v927, 4
        %v930 = vrot.slane %v259, 5
        %v931 = vsel %vm889, %v929, %v930
        %v932 = vrot.slane %v260, 5
        %v933 = vrot.slane %v932, 4
        %v934 = vrot.slane %v261, 5
        %v935 = vsel %vm889, %v933, %v934
        %v936 = vrot.slane %v934, 4
        %v937 = vrot.slane %v262, 5
        %v938 = vsel %vm889, %v936, %v937
        %v939 = vrot.slane %v263, 5
        %v940 = vrot.slane %v939, 4
        %v941 = vrot.slane %v264, 5
        %v942 = vsel %vm889, %v940, %v941
        %v943 = vrot.slane %v941, 4
        %v944 = vrot.slane %v265, 5
        %v945 = vsel %vm889, %v943, %v944
        %v946 = vrot.slane %v266, 5
        %v947 = vrot.slane %v946, 4
        %v948 = vrot.slane %v267, 5
        %v949 = vsel %vm889, %v947, %v948
        %v950 = vrot.slane %v948, 4
        %v951 = vrot.slane %v268, 5
        %v952 = vsel %vm889, %v950, %v951
        %v953 = vrot.slane %v269, 5
        %v954 = vrot.slane %v953, 4
        %v955 = vrot.slane %v270, 5
        %v956 = vsel %vm889, %v954, %v955
        %v957 = vrot.slane %v955, 4
        %v958 = vrot.slane %v271, 5
        %v959 = vsel %vm889, %v957, %v958
        %v960 = vrot.slane %v272, 5
        %v961 = vrot.slane %v960, 4
        %v962 = vrot.slane %v273, 5
        %v963 = vsel %vm889, %v961, %v962
        %v964 = vrot.slane %v962, 4
        %v965 = vrot.slane %v274, 5
        %v966 = vsel %vm889, %v964, %v965
        %v967 = vrot.slane %v275, 5
        %v968 = vrot.slane %v967, 4
        %v969 = vrot.slane %v276, 5
        %v970 = vsel %vm889, %v968, %v969
        %v971 = vrot.slane %v969, 4
        %v972 = vrot.slane %v277, 5
        %v973 = vsel %vm889, %v971, %v972
        %v974 = vrot.slane %v278, 5
        %v975 = vrot.slane %v974, 4
        %v976 = vrot.slane %v279, 5
        %v977 = vsel %vm889, %v975, %v976
        %v978 = vrot.slane %v976, 4
        %v979 = vrot.slane %v280, 5
        %v980 = vsel %vm889, %v978, %v979
        %v981 = vrot.slane %v281, 5
        %v982 = vrot.slane %v981, 4
        %v983 = vrot.slane %v282, 5
        %v984 = vsel %vm889, %v982, %v983
        %v985 = vrot.slane %v983, 4
        %v986 = vrot.slane %v283, 5
        %v987 = vsel %vm889, %v985, %v986
        %v988 = vrot.slane %v284, 5
        %v989 = vrot.slane %v988, 4
        %v990 = vrot.slane %v285, 5
        %v991 = vsel %vm889, %v989, %v990
        %v992 = vrot.slane %v990, 4
        %v993 = vrot.slane %v286, 5
        %v994 = vsel %vm889, %v992, %v993
        %v995 = vrot.slane %v287, 5
        %v996 = vrot.slane %v995, 4
        %v997 = vrot.slane %v288, 5
        %v998 = vsel %vm889, %v996, %v997
        %v999 = vrot.slane %v997, 4
        %v1000 = vrot.slane %v289, 5
        %v1001 = vsel %vm889, %v999, %v1000
        %1034 = vst.msk [vmem:[#allocation2 + $0x4] sm:$0xf] %vm290, %v893
        %1035 = vst.msk [vmem:[#allocation2 + $0x18] sm:$0xf] %vm290, %v896
        %1036 = vst.msk [vmem:[#allocation2 + $0x2c] sm:$0xf] %vm290, %v900
        %1037 = vst.msk [vmem:[#allocation2 + $0x40] sm:$0xf] %vm290, %v903
        %1038 = vst.msk [vmem:[#allocation2 + $0x54] sm:$0xf] %vm290, %v907
        %1039 = vst.msk [vmem:[#allocation2 + $0x68] sm:$0xf] %vm290, %v910
        %1040 = vst.msk [vmem:[#allocation2 + $0x7c] sm:$0xf] %vm290, %v914
        %1041 = vst.msk [vmem:[#allocation2 + $0x90] sm:$0xf] %vm290, %v917
        %1042 = vst.msk [vmem:[#allocation2 + $0xa4] sm:$0xf] %vm290, %v921
        %1043 = vst.msk [vmem:[#allocation2 + $0xb8] sm:$0xf] %vm290, %v924
        %1044 = vst.msk [vmem:[#allocation2 + $0xcc] sm:$0xf] %vm290, %v928
        %1045 = vst.msk [vmem:[#allocation2 + $0xe0] sm:$0xf] %vm290, %v931
        %1046 = vst.msk [vmem:[#allocation2 + $0xf4] sm:$0xf] %vm290, %v935
        %1047 = vst.msk [vmem:[#allocation2 + $0x108] sm:$0xf] %vm290, %v938
        %1048 = vst.msk [vmem:[#allocation2 + $0x11c] sm:$0xf] %vm290, %v942
        %1049 = vst.msk [vmem:[#allocation2 + $0x130] sm:$0xf] %vm290, %v945
        %1050 = vst.msk [vmem:[#allocation2 + $0x144] sm:$0xf] %vm290, %v949
        %1051 = vst.msk [vmem:[#allocation2 + $0x158] sm:$0xf] %vm290, %v952
        %1052 = vst.msk [vmem:[#allocation2 + $0x16c] sm:$0xf] %vm290, %v956
        %1053 = vst.msk [vmem:[#allocation2 + $0x180] sm:$0xf] %vm290, %v959
        %1054 = vst.msk [vmem:[#allocation2 + $0x194] sm:$0xf] %vm290, %v963
        %1055 = vst.msk [vmem:[#allocation2 + $0x1a8] sm:$0xf] %vm290, %v966
        %1056 = vst.msk [vmem:[#allocation2 + $0x1bc] sm:$0xf] %vm290, %v970
        %1057 = vst.msk [vmem:[#allocation2 + $0x1d0] sm:$0xf] %vm290, %v973
        %1058 = vst.msk [vmem:[#allocation2 + $0x1e4] sm:$0xf] %vm290, %v977
        %1059 = vst.msk [vmem:[#allocation2 + $0x1f8] sm:$0xf] %vm290, %v980
        %1060 = vst.msk [vmem:[#allocation2 + $0x20c] sm:$0xf] %vm290, %v984
        %1061 = vst.msk [vmem:[#allocation2 + $0x220] sm:$0xf] %vm290, %v987
        %1062 = vst.msk [vmem:[#allocation2 + $0x234] sm:$0xf] %vm290, %v991
        %1063 = vst.msk [vmem:[#allocation2 + $0x248] sm:$0xf] %vm290, %v994
        %1064 = vst.msk [vmem:[#allocation2 + $0x25c] sm:$0xf] %vm290, %v998
        %1065 = vst.msk [vmem:[#allocation2 + $0x270] sm:$0xf] %vm290, %v1001
        %s1066 = sadd.s32 %s238, 1
        %s1067 = smul.u32 %s1066, 3
        %s1068 = smul.addr %s1067, 4
        %s1069 = scalar_lea.vmem %s225, %s1068
        %v1070 = vld [vmem:[%s1069] sm:$0xf]
        %v1071 = vld [vmem:[%s1069 + $0x4] sm:$0xf]
        %v1072 = vld [vmem:[%s1069 + $0x8] sm:$0x1]
        %v1073 = vld [vmem:[%s1069 + $0xc] sm:$0xf]
        %v1074 = vld [vmem:[%s1069 + $0x10] sm:$0xf]
        %v1075 = vld [vmem:[%s1069 + $0x14] sm:$0x1]
        %v1076 = vld [vmem:[%s1069 + $0x18] sm:$0xf]
        %v1077 = vld [vmem:[%s1069 + $0x1c] sm:$0xf]
        %v1078 = vld [vmem:[%s1069 + $0x20] sm:$0x1]
        %v1079 = vld [vmem:[%s1069 + $0x24] sm:$0xf]
        %v1080 = vld [vmem:[%s1069 + $0x28] sm:$0xf]
        %v1081 = vld [vmem:[%s1069 + $0x2c] sm:$0x1]
        %v1082 = vld [vmem:[%s1069 + $0x30] sm:$0xf]
        %v1083 = vld [vmem:[%s1069 + $0x34] sm:$0xf]
        %v1084 = vld [vmem:[%s1069 + $0x38] sm:$0x1]
        %v1085 = vld [vmem:[%s1069 + $0x3c] sm:$0xf]
        %v1086 = vld [vmem:[%s1069 + $0x40] sm:$0xf]
        %v1087 = vld [vmem:[%s1069 + $0x44] sm:$0x1]
        %v1088 = vld [vmem:[%s1069 + $0x48] sm:$0xf]
        %v1089 = vld [vmem:[%s1069 + $0x4c] sm:$0xf]
        %v1090 = vld [vmem:[%s1069 + $0x50] sm:$0x1]
        %v1091 = vld [vmem:[%s1069 + $0x54] sm:$0xf]
        %v1092 = vld [vmem:[%s1069 + $0x58] sm:$0xf]
        %v1093 = vld [vmem:[%s1069 + $0x5c] sm:$0x1]
        %v1094 = vld [vmem:[%s1069 + $0x60] sm:$0xf]
        %v1095 = vld [vmem:[%s1069 + $0x64] sm:$0xf]
        %v1096 = vld [vmem:[%s1069 + $0x68] sm:$0x1]
        %v1097 = vld [vmem:[%s1069 + $0x6c] sm:$0xf]
        %v1098 = vld [vmem:[%s1069 + $0x70] sm:$0xf]
        %v1099 = vld [vmem:[%s1069 + $0x74] sm:$0x1]
        %v1100 = vld [vmem:[%s1069 + $0x78] sm:$0xf]
        %v1101 = vld [vmem:[%s1069 + $0x7c] sm:$0xf]
        %v1102 = vld [vmem:[%s1069 + $0x80] sm:$0x1]
        %v1103 = vld [vmem:[%s1069 + $0x84] sm:$0xf]
        %v1104 = vld [vmem:[%s1069 + $0x88] sm:$0xf]
        %v1105 = vld [vmem:[%s1069 + $0x8c] sm:$0x1]
        %v1106 = vld [vmem:[%s1069 + $0x90] sm:$0xf]
        %v1107 = vld [vmem:[%s1069 + $0x94] sm:$0xf]
        %v1108 = vld [vmem:[%s1069 + $0x98] sm:$0x1]
        %v1109 = vld [vmem:[%s1069 + $0x9c] sm:$0xf]
        %v1110 = vld [vmem:[%s1069 + $0xa0] sm:$0xf]
        %v1111 = vld [vmem:[%s1069 + $0xa4] sm:$0x1]
        %v1112 = vld [vmem:[%s1069 + $0xa8] sm:$0xf]
        %v1113 = vld [vmem:[%s1069 + $0xac] sm:$0xf]
        %v1114 = vld [vmem:[%s1069 + $0xb0] sm:$0x1]
        %v1115 = vld [vmem:[%s1069 + $0xb4] sm:$0xf]
        %v1116 = vld [vmem:[%s1069 + $0xb8] sm:$0xf]
        %v1117 = vld [vmem:[%s1069 + $0xbc] sm:$0x1]
        %1150 = vrot.lane.b32.xlu0 %v1070, 64
        %v1151 = vpop.permute.xlu0 %1150
        %1152 = vrot.lane.b32.xlu0 %v1071, 64
        %v1153 = vpop.permute.xlu0 %1152
        %1154 = vrot.lane.b32.xlu0 %v1073, 64
        %v1155 = vpop.permute.xlu0 %1154
        %1156 = vrot.lane.b32.xlu0 %v1074, 64
        %v1157 = vpop.permute.xlu0 %1156
        %1158 = vrot.lane.b32.xlu0 %v1076, 64
        %v1159 = vpop.permute.xlu0 %1158
        %1160 = vrot.lane.b32.xlu0 %v1077, 64
        %v1161 = vpop.permute.xlu0 %1160
        %1162 = vrot.lane.b32.xlu0 %v1079, 64
        %v1163 = vpop.permute.xlu0 %1162
        %1164 = vrot.lane.b32.xlu0 %v1080, 64
        %v1165 = vpop.permute.xlu0 %1164
        %1166 = vrot.lane.b32.xlu0 %v1082, 64
        %v1167 = vpop.permute.xlu0 %1166
        %1168 = vrot.lane.b32.xlu0 %v1083, 64
        %v1169 = vpop.permute.xlu0 %1168
        %1170 = vrot.lane.b32.xlu0 %v1085, 64
        %v1171 = vpop.permute.xlu0 %1170
        %1172 = vrot.lane.b32.xlu0 %v1086, 64
        %v1173 = vpop.permute.xlu0 %1172
        %1174 = vrot.lane.b32.xlu0 %v1088, 64
        %v1175 = vpop.permute.xlu0 %1174
        %1176 = vrot.lane.b32.xlu0 %v1089, 64
        %v1177 = vpop.permute.xlu0 %1176
        %1178 = vrot.lane.b32.xlu0 %v1091, 64
        %v1179 = vpop.permute.xlu0 %1178
        %1180 = vrot.lane.b32.xlu0 %v1092, 64
        %v1181 = vpop.permute.xlu0 %1180
        %1182 = vrot.lane.b32.xlu0 %v1094, 64
        %v1183 = vpop.permute.xlu0 %1182
        %1184 = vrot.lane.b32.xlu0 %v1095, 64
        %v1185 = vpop.permute.xlu0 %1184
        %1186 = vrot.lane.b32.xlu0 %v1097, 64
        %v1187 = vpop.permute.xlu0 %1186
        %1188 = vrot.lane.b32.xlu0 %v1098, 64
        %v1189 = vpop.permute.xlu0 %1188
        %1190 = vrot.lane.b32.xlu0 %v1100, 64
        %v1191 = vpop.permute.xlu0 %1190
        %1192 = vrot.lane.b32.xlu0 %v1101, 64
        %v1193 = vpop.permute.xlu0 %1192
        %1194 = vrot.lane.b32.xlu0 %v1103, 64
        %v1195 = vpop.permute.xlu0 %1194
        %1196 = vrot.lane.b32.xlu0 %v1104, 64
        %v1197 = vpop.permute.xlu0 %1196
        %1198 = vrot.lane.b32.xlu0 %v1106, 64
        %v1199 = vpop.permute.xlu0 %1198
        %1200 = vrot.lane.b32.xlu0 %v1107, 64
        %v1201 = vpop.permute.xlu0 %1200
        %1202 = vrot.lane.b32.xlu0 %v1109, 64
        %v1203 = vpop.permute.xlu0 %1202
        %1204 = vrot.lane.b32.xlu0 %v1110, 64
        %v1205 = vpop.permute.xlu0 %1204
        %1206 = vrot.lane.b32.xlu0 %v1112, 64
        %v1207 = vpop.permute.xlu0 %1206
        %1208 = vrot.lane.b32.xlu0 %v1113, 64
        %v1209 = vpop.permute.xlu0 %1208
        %1210 = vrot.lane.b32.xlu0 %v1115, 64
        %v1211 = vpop.permute.xlu0 %1210
        %1212 = vrot.lane.b32.xlu0 %v1116, 64
        %v1213 = vpop.permute.xlu0 %1212
        %1246 = vst.msk [vmem:[#allocation2 + $0x4] sm:$0xf] %vm806, %v1151
        %1247 = vst.msk [vmem:[#allocation2 + $0x18] sm:$0xf] %vm806, %v1153
        %1248 = vst.msk [vmem:[#allocation2 + $0x2c] sm:$0xf] %vm806, %v1155
        %1249 = vst.msk [vmem:[#allocation2 + $0x40] sm:$0xf] %vm806, %v1157
        %1250 = vst.msk [vmem:[#allocation2 + $0x54] sm:$0xf] %vm806, %v1159
        %1251 = vst.msk [vmem:[#allocation2 + $0x68] sm:$0xf] %vm806, %v1161
        %1252 = vst.msk [vmem:[#allocation2 + $0x7c] sm:$0xf] %vm806, %v1163
        %1253 = vst.msk [vmem:[#allocation2 + $0x90] sm:$0xf] %vm806, %v1165
        %1254 = vst.msk [vmem:[#allocation2 + $0xa4] sm:$0xf] %vm806, %v1167
        %1255 = vst.msk [vmem:[#allocation2 + $0xb8] sm:$0xf] %vm806, %v1169
        %1256 = vst.msk [vmem:[#allocation2 + $0xcc] sm:$0xf] %vm806, %v1171
        %1257 = vst.msk [vmem:[#allocation2 + $0xe0] sm:$0xf] %vm806, %v1173
        %1258 = vst.msk [vmem:[#allocation2 + $0xf4] sm:$0xf] %vm806, %v1175
        %1259 = vst.msk [vmem:[#allocation2 + $0x108] sm:$0xf] %vm806, %v1177
        %1260 = vst.msk [vmem:[#allocation2 + $0x11c] sm:$0xf] %vm806, %v1179
        %1261 = vst.msk [vmem:[#allocation2 + $0x130] sm:$0xf] %vm806, %v1181
        %1262 = vst.msk [vmem:[#allocation2 + $0x144] sm:$0xf] %vm806, %v1183
        %1263 = vst.msk [vmem:[#allocation2 + $0x158] sm:$0xf] %vm806, %v1185
        %1264 = vst.msk [vmem:[#allocation2 + $0x16c] sm:$0xf] %vm806, %v1187
        %1265 = vst.msk [vmem:[#allocation2 + $0x180] sm:$0xf] %vm806, %v1189
        %1266 = vst.msk [vmem:[#allocation2 + $0x194] sm:$0xf] %vm806, %v1191
        %1267 = vst.msk [vmem:[#allocation2 + $0x1a8] sm:$0xf] %vm806, %v1193
        %1268 = vst.msk [vmem:[#allocation2 + $0x1bc] sm:$0xf] %vm806, %v1195
        %1269 = vst.msk [vmem:[#allocation2 + $0x1d0] sm:$0xf] %vm806, %v1197
        %1270 = vst.msk [vmem:[#allocation2 + $0x1e4] sm:$0xf] %vm806, %v1199
        %1271 = vst.msk [vmem:[#allocation2 + $0x1f8] sm:$0xf] %vm806, %v1201
        %1272 = vst.msk [vmem:[#allocation2 + $0x20c] sm:$0xf] %vm806, %v1203
        %1273 = vst.msk [vmem:[#allocation2 + $0x220] sm:$0xf] %vm806, %v1205
        %1274 = vst.msk [vmem:[#allocation2 + $0x234] sm:$0xf] %vm806, %v1207
        %1275 = vst.msk [vmem:[#allocation2 + $0x248] sm:$0xf] %vm806, %v1209
        %1276 = vst.msk [vmem:[#allocation2 + $0x25c] sm:$0xf] %vm806, %v1211
        %1277 = vst.msk [vmem:[#allocation2 + $0x270] sm:$0xf] %vm806, %v1213
        %v1279 = vshrl.u32 %v1070, 16
        %v1281 = vrot.slane %v1279, 4
        %v1282 = vshll.u32 %v1070, 16
        %v1284 = vrot.slane %v1282, 5
        %v1285 = vor.u32 %v1281, %v1284
        %v1286 = vrot.slane %v1285, 4
        %v1288 = vshll.u32 %v1071, 16
        %v1290 = vrot.slane %v1288, 5
        %v1291 = vsel %vm325, %v1286, %v1290
        %v1292 = vshrl.u32 %v1071, 16
        %v1294 = vrot.slane %v1292, 4
        %v1295 = vor.u32 %v1294, %v1290
        %v1296 = vrot.slane %v1295, 4
        %v1298 = vshll.u32 %v1072, 16
        %v1300 = vrot.slane %v1298, 5
        %v1301 = vsel %vm325, %v1296, %v1300
        %v1303 = vshrl.u32 %v1073, 16
        %v1305 = vrot.slane %v1303, 4
        %v1306 = vshll.u32 %v1073, 16
        %v1308 = vrot.slane %v1306, 5
        %v1309 = vor.u32 %v1305, %v1308
        %v1310 = vrot.slane %v1309, 4
        %v1312 = vshll.u32 %v1074, 16
        %v1314 = vrot.slane %v1312, 5
        %v1315 = vsel %vm325, %v1310, %v1314
        %v1316 = vshrl.u32 %v1074, 16
        %v1318 = vrot.slane %v1316, 4
        %v1319 = vor.u32 %v1318, %v1314
        %v1320 = vrot.slane %v1319, 4
        %v1322 = vshll.u32 %v1075, 16
        %v1324 = vrot.slane %v1322, 5
        %v1325 = vsel %vm325, %v1320, %v1324
        %v1327 = vshrl.u32 %v1076, 16
        %v1329 = vrot.slane %v1327, 4
        %v1330 = vshll.u32 %v1076, 16
        %v1332 = vrot.slane %v1330, 5
        %v1333 = vor.u32 %v1329, %v1332
        %v1334 = vrot.slane %v1333, 4
        %v1336 = vshll.u32 %v1077, 16
        %v1338 = vrot.slane %v1336, 5
        %v1339 = vsel %vm325, %v1334, %v1338
        %v1340 = vshrl.u32 %v1077, 16
        %v1342 = vrot.slane %v1340, 4
        %v1343 = vor.u32 %v1342, %v1338
        %v1344 = vrot.slane %v1343, 4
        %v1346 = vshll.u32 %v1078, 16
        %v1348 = vrot.slane %v1346, 5
        %v1349 = vsel %vm325, %v1344, %v1348
        %v1351 = vshrl.u32 %v1079, 16
        %v1353 = vrot.slane %v1351, 4
        %v1354 = vshll.u32 %v1079, 16
        %v1356 = vrot.slane %v1354, 5
        %v1357 = vor.u32 %v1353, %v1356
        %v1358 = vrot.slane %v1357, 4
        %v1360 = vshll.u32 %v1080, 16
        %v1362 = vrot.slane %v1360, 5
        %v1363 = vsel %vm325, %v1358, %v1362
        %v1364 = vshrl.u32 %v1080, 16
        %v1366 = vrot.slane %v1364, 4
        %v1367 = vor.u32 %v1366, %v1362
        %v1368 = vrot.slane %v1367, 4
        %v1370 = vshll.u32 %v1081, 16
        %v1372 = vrot.slane %v1370, 5
        %v1373 = vsel %vm325, %v1368, %v1372
        %v1375 = vshrl.u32 %v1082, 16
        %v1377 = vrot.slane %v1375, 4
        %v1378 = vshll.u32 %v1082, 16
        %v1380 = vrot.slane %v1378, 5
        %v1381 = vor.u32 %v1377, %v1380
        %v1382 = vrot.slane %v1381, 4
        %v1384 = vshll.u32 %v1083, 16
        %v1386 = vrot.slane %v1384, 5
        %v1387 = vsel %vm325, %v1382, %v1386
        %v1388 = vshrl.u32 %v1083, 16
        %v1390 = vrot.slane %v1388, 4
        %v1391 = vor.u32 %v1390, %v1386
        %v1392 = vrot.slane %v1391, 4
        %v1394 = vshll.u32 %v1084, 16
        %v1396 = vrot.slane %v1394, 5
        %v1397 = vsel %vm325, %v1392, %v1396
        %v1399 = vshrl.u32 %v1085, 16
        %v1401 = vrot.slane %v1399, 4
        %v1402 = vshll.u32 %v1085, 16
        %v1404 = vrot.slane %v1402, 5
        %v1405 = vor.u32 %v1401, %v1404
        %v1406 = vrot.slane %v1405, 4
        %v1408 = vshll.u32 %v1086, 16
        %v1410 = vrot.slane %v1408, 5
        %v1411 = vsel %vm325, %v1406, %v1410
        %v1412 = vshrl.u32 %v1086, 16
        %v1414 = vrot.slane %v1412, 4
        %v1415 = vor.u32 %v1414, %v1410
        %v1416 = vrot.slane %v1415, 4
        %v1418 = vshll.u32 %v1087, 16
        %v1420 = vrot.slane %v1418, 5
        %v1421 = vsel %vm325, %v1416, %v1420
        %v1423 = vshrl.u32 %v1088, 16
        %v1425 = vrot.slane %v1423, 4
        %v1426 = vshll.u32 %v1088, 16
        %v1428 = vrot.slane %v1426, 5
        %v1429 = vor.u32 %v1425, %v1428
        %v1430 = vrot.slane %v1429, 4
        %v1432 = vshll.u32 %v1089, 16
        %v1434 = vrot.slane %v1432, 5
        %v1435 = vsel %vm325, %v1430, %v1434
        %v1436 = vshrl.u32 %v1089, 16
        %v1438 = vrot.slane %v1436, 4
        %v1439 = vor.u32 %v1438, %v1434
        %v1440 = vrot.slane %v1439, 4
        %v1442 = vshll.u32 %v1090, 16
        %v1444 = vrot.slane %v1442, 5
        %v1445 = vsel %vm325, %v1440, %v1444
        %v1447 = vshrl.u32 %v1091, 16
        %v1449 = vrot.slane %v1447, 4
        %v1450 = vshll.u32 %v1091, 16
        %v1452 = vrot.slane %v1450, 5
        %v1453 = vor.u32 %v1449, %v1452
        %v1454 = vrot.slane %v1453, 4
        %v1456 = vshll.u32 %v1092, 16
        %v1458 = vrot.slane %v1456, 5
        %v1459 = vsel %vm325, %v1454, %v1458
        %v1460 = vshrl.u32 %v1092, 16
        %v1462 = vrot.slane %v1460, 4
        %v1463 = vor.u32 %v1462, %v1458
        %v1464 = vrot.slane %v1463, 4
        %v1466 = vshll.u32 %v1093, 16
        %v1468 = vrot.slane %v1466, 5
        %v1469 = vsel %vm325, %v1464, %v1468
        %v1471 = vshrl.u32 %v1094, 16
        %v1473 = vrot.slane %v1471, 4
        %v1474 = vshll.u32 %v1094, 16
        %v1476 = vrot.slane %v1474, 5
        %v1477 = vor.u32 %v1473, %v1476
        %v1478 = vrot.slane %v1477, 4
        %v1480 = vshll.u32 %v1095, 16
        %v1482 = vrot.slane %v1480, 5
        %v1483 = vsel %vm325, %v1478, %v1482
        %v1484 = vshrl.u32 %v1095, 16
        %v1486 = vrot.slane %v1484, 4
        %v1487 = vor.u32 %v1486, %v1482
        %v1488 = vrot.slane %v1487, 4
        %v1490 = vshll.u32 %v1096, 16
        %v1492 = vrot.slane %v1490, 5
        %v1493 = vsel %vm325, %v1488, %v1492
        %v1495 = vshrl.u32 %v1097, 16
        %v1497 = vrot.slane %v1495, 4
        %v1498 = vshll.u32 %v1097, 16
        %v1500 = vrot.slane %v1498, 5
        %v1501 = vor.u32 %v1497, %v1500
        %v1502 = vrot.slane %v1501, 4
        %v1504 = vshll.u32 %v1098, 16
        %v1506 = vrot.slane %v1504, 5
        %v1507 = vsel %vm325, %v1502, %v1506
        %v1508 = vshrl.u32 %v1098, 16
        %v1510 = vrot.slane %v1508, 4
        %v1511 = vor.u32 %v1510, %v1506
        %v1512 = vrot.slane %v1511, 4
        %v1514 = vshll.u32 %v1099, 16
        %v1516 = vrot.slane %v1514, 5
        %v1517 = vsel %vm325, %v1512, %v1516
        %v1519 = vshrl.u32 %v1100, 16
        %v1521 = vrot.slane %v1519, 4
        %v1522 = vshll.u32 %v1100, 16
        %v1524 = vrot.slane %v1522, 5
        %v1525 = vor.u32 %v1521, %v1524
        %v1526 = vrot.slane %v1525, 4
        %v1528 = vshll.u32 %v1101, 16
        %v1530 = vrot.slane %v1528, 5
        %v1531 = vsel %vm325, %v1526, %v1530
        %v1532 = vshrl.u32 %v1101, 16
        %v1534 = vrot.slane %v1532, 4
        %v1535 = vor.u32 %v1534, %v1530
        %v1536 = vrot.slane %v1535, 4
        %v1538 = vshll.u32 %v1102, 16
        %v1540 = vrot.slane %v1538, 5
        %v1541 = vsel %vm325, %v1536, %v1540
        %v1543 = vshrl.u32 %v1103, 16
        %v1545 = vrot.slane %v1543, 4
        %v1546 = vshll.u32 %v1103, 16
        %v1548 = vrot.slane %v1546, 5
        %v1549 = vor.u32 %v1545, %v1548
        %v1550 = vrot.slane %v1549, 4
        %v1552 = vshll.u32 %v1104, 16
        %v1554 = vrot.slane %v1552, 5
        %v1555 = vsel %vm325, %v1550, %v1554
        %v1556 = vshrl.u32 %v1104, 16
        %v1558 = vrot.slane %v1556, 4
        %v1559 = vor.u32 %v1558, %v1554
        %v1560 = vrot.slane %v1559, 4
        %v1562 = vshll.u32 %v1105, 16
        %v1564 = vrot.slane %v1562, 5
        %v1565 = vsel %vm325, %v1560, %v1564
        %v1567 = vshrl.u32 %v1106, 16
        %v1569 = vrot.slane %v1567, 4
        %v1570 = vshll.u32 %v1106, 16
        %v1572 = vrot.slane %v1570, 5
        %v1573 = vor.u32 %v1569, %v1572
        %v1574 = vrot.slane %v1573, 4
        %v1576 = vshll.u32 %v1107, 16
        %v1578 = vrot.slane %v1576, 5
        %v1579 = vsel %vm325, %v1574, %v1578
        %v1580 = vshrl.u32 %v1107, 16
        %v1582 = vrot.slane %v1580, 4
        %v1583 = vor.u32 %v1582, %v1578
        %v1584 = vrot.slane %v1583, 4
        %v1586 = vshll.u32 %v1108, 16
        %v1588 = vrot.slane %v1586, 5
        %v1589 = vsel %vm325, %v1584, %v1588
        %v1591 = vshrl.u32 %v1109, 16
        %v1593 = vrot.slane %v1591, 4
        %v1594 = vshll.u32 %v1109, 16
        %v1596 = vrot.slane %v1594, 5
        %v1597 = vor.u32 %v1593, %v1596
        %v1598 = vrot.slane %v1597, 4
        %v1600 = vshll.u32 %v1110, 16
        %v1602 = vrot.slane %v1600, 5
        %v1603 = vsel %vm325, %v1598, %v1602
        %v1604 = vshrl.u32 %v1110, 16
        %v1606 = vrot.slane %v1604, 4
        %v1607 = vor.u32 %v1606, %v1602
        %v1608 = vrot.slane %v1607, 4
        %v1610 = vshll.u32 %v1111, 16
        %v1612 = vrot.slane %v1610, 5
        %v1613 = vsel %vm325, %v1608, %v1612
        %v1615 = vshrl.u32 %v1112, 16
        %v1617 = vrot.slane %v1615, 4
        %v1618 = vshll.u32 %v1112, 16
        %v1620 = vrot.slane %v1618, 5
        %v1621 = vor.u32 %v1617, %v1620
        %v1622 = vrot.slane %v1621, 4
        %v1624 = vshll.u32 %v1113, 16
        %v1626 = vrot.slane %v1624, 5
        %v1627 = vsel %vm325, %v1622, %v1626
        %v1628 = vshrl.u32 %v1113, 16
        %v1630 = vrot.slane %v1628, 4
        %v1631 = vor.u32 %v1630, %v1626
        %v1632 = vrot.slane %v1631, 4
        %v1634 = vshll.u32 %v1114, 16
        %v1636 = vrot.slane %v1634, 5
        %v1637 = vsel %vm325, %v1632, %v1636
        %v1639 = vshrl.u32 %v1115, 16
        %v1641 = vrot.slane %v1639, 4
        %v1642 = vshll.u32 %v1115, 16
        %v1644 = vrot.slane %v1642, 5
        %v1645 = vor.u32 %v1641, %v1644
        %v1646 = vrot.slane %v1645, 4
        %v1648 = vshll.u32 %v1116, 16
        %v1650 = vrot.slane %v1648, 5
        %v1651 = vsel %vm325, %v1646, %v1650
        %v1652 = vshrl.u32 %v1116, 16
        %v1654 = vrot.slane %v1652, 4
        %v1655 = vor.u32 %v1654, %v1650
        %v1656 = vrot.slane %v1655, 4
        %v1658 = vshll.u32 %v1117, 16
        %v1660 = vrot.slane %v1658, 5
        %v1661 = vsel %vm325, %v1656, %v1660
        %1694 = vst.msk [vmem:[#allocation2 + $0x8] sm:$0xf] %vm290, %v1291
        %1695 = vst.msk [vmem:[#allocation2 + $0x1c] sm:$0xf] %vm290, %v1301
        %1696 = vst.msk [vmem:[#allocation2 + $0x30] sm:$0xf] %vm290, %v1315
        %1697 = vst.msk [vmem:[#allocation2 + $0x44] sm:$0xf] %vm290, %v1325
        %1698 = vst.msk [vmem:[#allocation2 + $0x58] sm:$0xf] %vm290, %v1339
        %1699 = vst.msk [vmem:[#allocation2 + $0x6c] sm:$0xf] %vm290, %v1349
        %1700 = vst.msk [vmem:[#allocation2 + $0x80] sm:$0xf] %vm290, %v1363
        %1701 = vst.msk [vmem:[#allocation2 + $0x94] sm:$0xf] %vm290, %v1373
        %1702 = vst.msk [vmem:[#allocation2 + $0xa8] sm:$0xf] %vm290, %v1387
        %1703 = vst.msk [vmem:[#allocation2 + $0xbc] sm:$0xf] %vm290, %v1397
        %1704 = vst.msk [vmem:[#allocation2 + $0xd0] sm:$0xf] %vm290, %v1411
        %1705 = vst.msk [vmem:[#allocation2 + $0xe4] sm:$0xf] %vm290, %v1421
        %1706 = vst.msk [vmem:[#allocation2 + $0xf8] sm:$0xf] %vm290, %v1435
        %1707 = vst.msk [vmem:[#allocation2 + $0x10c] sm:$0xf] %vm290, %v1445
        %1708 = vst.msk [vmem:[#allocation2 + $0x120] sm:$0xf] %vm290, %v1459
        %1709 = vst.msk [vmem:[#allocation2 + $0x134] sm:$0xf] %vm290, %v1469
        %1710 = vst.msk [vmem:[#allocation2 + $0x148] sm:$0xf] %vm290, %v1483
        %1711 = vst.msk [vmem:[#allocation2 + $0x15c] sm:$0xf] %vm290, %v1493
        %1712 = vst.msk [vmem:[#allocation2 + $0x170] sm:$0xf] %vm290, %v1507
        %1713 = vst.msk [vmem:[#allocation2 + $0x184] sm:$0xf] %vm290, %v1517
        %1714 = vst.msk [vmem:[#allocation2 + $0x198] sm:$0xf] %vm290, %v1531
        %1715 = vst.msk [vmem:[#allocation2 + $0x1ac] sm:$0xf] %vm290, %v1541
        %1716 = vst.msk [vmem:[#allocation2 + $0x1c0] sm:$0xf] %vm290, %v1555
        %1717 = vst.msk [vmem:[#allocation2 + $0x1d4] sm:$0xf] %vm290, %v1565
        %1718 = vst.msk [vmem:[#allocation2 + $0x1e8] sm:$0xf] %vm290, %v1579
        %1719 = vst.msk [vmem:[#allocation2 + $0x1fc] sm:$0xf] %vm290, %v1589
        %1720 = vst.msk [vmem:[#allocation2 + $0x210] sm:$0xf] %vm290, %v1603
        %1721 = vst.msk [vmem:[#allocation2 + $0x224] sm:$0xf] %vm290, %v1613
        %1722 = vst.msk [vmem:[#allocation2 + $0x238] sm:$0xf] %vm290, %v1627
        %1723 = vst.msk [vmem:[#allocation2 + $0x24c] sm:$0xf] %vm290, %v1637
        %1724 = vst.msk [vmem:[#allocation2 + $0x260] sm:$0xf] %vm290, %v1651
        %1725 = vst.msk [vmem:[#allocation2 + $0x274] sm:$0xf] %vm290, %v1661
        %v1742 = vrot.slane %v1070, 5
        %v1743 = vrot.slane %v1742, 4
        %v1744 = vrot.slane %v1071, 5
        %v1745 = vsel %vm889, %v1743, %v1744
        %v1746 = vrot.slane %v1744, 4
        %v1747 = vrot.slane %v1072, 5
        %v1748 = vsel %vm889, %v1746, %v1747
        %v1749 = vrot.slane %v1073, 5
        %v1750 = vrot.slane %v1749, 4
        %v1751 = vrot.slane %v1074, 5
        %v1752 = vsel %vm889, %v1750, %v1751
        %v1753 = vrot.slane %v1751, 4
        %v1754 = vrot.slane %v1075, 5
        %v1755 = vsel %vm889, %v1753, %v1754
        %v1756 = vrot.slane %v1076, 5
        %v1757 = vrot.slane %v1756, 4
        %v1758 = vrot.slane %v1077, 5
        %v1759 = vsel %vm889, %v1757, %v1758
        %v1760 = vrot.slane %v1758, 4
        %v1761 = vrot.slane %v1078, 5
        %v1762 = vsel %vm889, %v1760, %v1761
        %v1763 = vrot.slane %v1079, 5
        %v1764 = vrot.slane %v1763, 4
        %v1765 = vrot.slane %v1080, 5
        %v1766 = vsel %vm889, %v1764, %v1765
        %v1767 = vrot.slane %v1765, 4
        %v1768 = vrot.slane %v1081, 5
        %v1769 = vsel %vm889, %v1767, %v1768
        %v1770 = vrot.slane %v1082, 5
        %v1771 = vrot.slane %v1770, 4
        %v1772 = vrot.slane %v1083, 5
        %v1773 = vsel %vm889, %v1771, %v1772
        %v1774 = vrot.slane %v1772, 4
        %v1775 = vrot.slane %v1084, 5
        %v1776 = vsel %vm889, %v1774, %v1775
        %v1777 = vrot.slane %v1085, 5
        %v1778 = vrot.slane %v1777, 4
        %v1779 = vrot.slane %v1086, 5
        %v1780 = vsel %vm889, %v1778, %v1779
        %v1781 = vrot.slane %v1779, 4
        %v1782 = vrot.slane %v1087, 5
        %v1783 = vsel %vm889, %v1781, %v1782
        %v1784 = vrot.slane %v1088, 5
        %v1785 = vrot.slane %v1784, 4
        %v1786 = vrot.slane %v1089, 5
        %v1787 = vsel %vm889, %v1785, %v1786
        %v1788 = vrot.slane %v1786, 4
        %v1789 = vrot.slane %v1090, 5
        %v1790 = vsel %vm889, %v1788, %v1789
        %v1791 = vrot.slane %v1091, 5
        %v1792 = vrot.slane %v1791, 4
        %v1793 = vrot.slane %v1092, 5
        %v1794 = vsel %vm889, %v1792, %v1793
        %v1795 = vrot.slane %v1793, 4
        %v1796 = vrot.slane %v1093, 5
        %v1797 = vsel %vm889, %v1795, %v1796
        %v1798 = vrot.slane %v1094, 5
        %v1799 = vrot.slane %v1798, 4
        %v1800 = vrot.slane %v1095, 5
        %v1801 = vsel %vm889, %v1799, %v1800
        %v1802 = vrot.slane %v1800, 4
        %v1803 = vrot.slane %v1096, 5
        %v1804 = vsel %vm889, %v1802, %v1803
        %v1805 = vrot.slane %v1097, 5
        %v1806 = vrot.slane %v1805, 4
        %v1807 = vrot.slane %v1098, 5
        %v1808 = vsel %vm889, %v1806, %v1807
        %v1809 = vrot.slane %v1807, 4
        %v1810 = vrot.slane %v1099, 5
        %v1811 = vsel %vm889, %v1809, %v1810
        %v1812 = vrot.slane %v1100, 5
        %v1813 = vrot.slane %v1812, 4
        %v1814 = vrot.slane %v1101, 5
        %v1815 = vsel %vm889, %v1813, %v1814
        %v1816 = vrot.slane %v1814, 4
        %v1817 = vrot.slane %v1102, 5
        %v1818 = vsel %vm889, %v1816, %v1817
        %v1819 = vrot.slane %v1103, 5
        %v1820 = vrot.slane %v1819, 4
        %v1821 = vrot.slane %v1104, 5
        %v1822 = vsel %vm889, %v1820, %v1821
        %v1823 = vrot.slane %v1821, 4
        %v1824 = vrot.slane %v1105, 5
        %v1825 = vsel %vm889, %v1823, %v1824
        %v1826 = vrot.slane %v1106, 5
        %v1827 = vrot.slane %v1826, 4
        %v1828 = vrot.slane %v1107, 5
        %v1829 = vsel %vm889, %v1827, %v1828
        %v1830 = vrot.slane %v1828, 4
        %v1831 = vrot.slane %v1108, 5
        %v1832 = vsel %vm889, %v1830, %v1831
        %v1833 = vrot.slane %v1109, 5
        %v1834 = vrot.slane %v1833, 4
        %v1835 = vrot.slane %v1110, 5
        %v1836 = vsel %vm889, %v1834, %v1835
        %v1837 = vrot.slane %v1835, 4
        %v1838 = vrot.slane %v1111, 5
        %v1839 = vsel %vm889, %v1837, %v1838
        %v1840 = vrot.slane %v1112, 5
        %v1841 = vrot.slane %v1840, 4
        %v1842 = vrot.slane %v1113, 5
        %v1843 = vsel %vm889, %v1841, %v1842
        %v1844 = vrot.slane %v1842, 4
        %v1845 = vrot.slane %v1114, 5
        %v1846 = vsel %vm889, %v1844, %v1845
        %v1847 = vrot.slane %v1115, 5
        %v1848 = vrot.slane %v1847, 4
        %v1849 = vrot.slane %v1116, 5
        %v1850 = vsel %vm889, %v1848, %v1849
        %v1851 = vrot.slane %v1849, 4
        %v1852 = vrot.slane %v1117, 5
        %v1853 = vsel %vm889, %v1851, %v1852
        %1854 = vrot.lane.b32.xlu0 %v1745, 64
        %v1855 = vpop.permute.xlu0 %1854
        %1856 = vrot.lane.b32.xlu0 %v1748, 64
        %v1857 = vpop.permute.xlu0 %1856
        %1858 = vrot.lane.b32.xlu0 %v1752, 64
        %v1859 = vpop.permute.xlu0 %1858
        %1860 = vrot.lane.b32.xlu0 %v1755, 64
        %v1861 = vpop.permute.xlu0 %1860
        %1862 = vrot.lane.b32.xlu0 %v1759, 64
        %v1863 = vpop.permute.xlu0 %1862
        %1864 = vrot.lane.b32.xlu0 %v1762, 64
        %v1865 = vpop.permute.xlu0 %1864
        %1866 = vrot.lane.b32.xlu0 %v1766, 64
        %v1867 = vpop.permute.xlu0 %1866
        %1868 = vrot.lane.b32.xlu0 %v1769, 64
        %v1869 = vpop.permute.xlu0 %1868
        %1870 = vrot.lane.b32.xlu0 %v1773, 64
        %v1871 = vpop.permute.xlu0 %1870
        %1872 = vrot.lane.b32.xlu0 %v1776, 64
        %v1873 = vpop.permute.xlu0 %1872
        %1874 = vrot.lane.b32.xlu0 %v1780, 64
        %v1875 = vpop.permute.xlu0 %1874
        %1876 = vrot.lane.b32.xlu0 %v1783, 64
        %v1877 = vpop.permute.xlu0 %1876
        %1878 = vrot.lane.b32.xlu0 %v1787, 64
        %v1879 = vpop.permute.xlu0 %1878
        %1880 = vrot.lane.b32.xlu0 %v1790, 64
        %v1881 = vpop.permute.xlu0 %1880
        %1882 = vrot.lane.b32.xlu0 %v1794, 64
        %v1883 = vpop.permute.xlu0 %1882
        %1884 = vrot.lane.b32.xlu0 %v1797, 64
        %v1885 = vpop.permute.xlu0 %1884
        %1886 = vrot.lane.b32.xlu0 %v1801, 64
        %v1887 = vpop.permute.xlu0 %1886
        %1888 = vrot.lane.b32.xlu0 %v1804, 64
        %v1889 = vpop.permute.xlu0 %1888
        %1890 = vrot.lane.b32.xlu0 %v1808, 64
        %v1891 = vpop.permute.xlu0 %1890
        %1892 = vrot.lane.b32.xlu0 %v1811, 64
        %v1893 = vpop.permute.xlu0 %1892
        %1894 = vrot.lane.b32.xlu0 %v1815, 64
        %v1895 = vpop.permute.xlu0 %1894
        %1896 = vrot.lane.b32.xlu0 %v1818, 64
        %v1897 = vpop.permute.xlu0 %1896
        %1898 = vrot.lane.b32.xlu0 %v1822, 64
        %v1899 = vpop.permute.xlu0 %1898
        %1900 = vrot.lane.b32.xlu0 %v1825, 64
        %v1901 = vpop.permute.xlu0 %1900
        %1902 = vrot.lane.b32.xlu0 %v1829, 64
        %v1903 = vpop.permute.xlu0 %1902
        %1904 = vrot.lane.b32.xlu0 %v1832, 64
        %v1905 = vpop.permute.xlu0 %1904
        %1906 = vrot.lane.b32.xlu0 %v1836, 64
        %v1907 = vpop.permute.xlu0 %1906
        %1908 = vrot.lane.b32.xlu0 %v1839, 64
        %v1909 = vpop.permute.xlu0 %1908
        %1910 = vrot.lane.b32.xlu0 %v1843, 64
        %v1911 = vpop.permute.xlu0 %1910
        %1912 = vrot.lane.b32.xlu0 %v1846, 64
        %v1913 = vpop.permute.xlu0 %1912
        %1914 = vrot.lane.b32.xlu0 %v1850, 64
        %v1915 = vpop.permute.xlu0 %1914
        %1916 = vrot.lane.b32.xlu0 %v1853, 64
        %v1917 = vpop.permute.xlu0 %1916
        %1950 = vst.msk [vmem:[#allocation2 + $0x8] sm:$0xf] %vm806, %v1855
        %1951 = vst.msk [vmem:[#allocation2 + $0x1c] sm:$0xf] %vm806, %v1857
        %1952 = vst.msk [vmem:[#allocation2 + $0x30] sm:$0xf] %vm806, %v1859
        %1953 = vst.msk [vmem:[#allocation2 + $0x44] sm:$0xf] %vm806, %v1861
        %1954 = vst.msk [vmem:[#allocation2 + $0x58] sm:$0xf] %vm806, %v1863
        %1955 = vst.msk [vmem:[#allocation2 + $0x6c] sm:$0xf] %vm806, %v1865
        %1956 = vst.msk [vmem:[#allocation2 + $0x80] sm:$0xf] %vm806, %v1867
        %1957 = vst.msk [vmem:[#allocation2 + $0x94] sm:$0xf] %vm806, %v1869
        %1958 = vst.msk [vmem:[#allocation2 + $0xa8] sm:$0xf] %vm806, %v1871
        %1959 = vst.msk [vmem:[#allocation2 + $0xbc] sm:$0xf] %vm806, %v1873
        %1960 = vst.msk [vmem:[#allocation2 + $0xd0] sm:$0xf] %vm806, %v1875
        %1961 = vst.msk [vmem:[#allocation2 + $0xe4] sm:$0xf] %vm806, %v1877
        %1962 = vst.msk [vmem:[#allocation2 + $0xf8] sm:$0xf] %vm806, %v1879
        %1963 = vst.msk [vmem:[#allocation2 + $0x10c] sm:$0xf] %vm806, %v1881
        %1964 = vst.msk [vmem:[#allocation2 + $0x120] sm:$0xf] %vm806, %v1883
        %1965 = vst.msk [vmem:[#allocation2 + $0x134] sm:$0xf] %vm806, %v1885
        %1966 = vst.msk [vmem:[#allocation2 + $0x148] sm:$0xf] %vm806, %v1887
        %1967 = vst.msk [vmem:[#allocation2 + $0x15c] sm:$0xf] %vm806, %v1889
        %1968 = vst.msk [vmem:[#allocation2 + $0x170] sm:$0xf] %vm806, %v1891
        %1969 = vst.msk [vmem:[#allocation2 + $0x184] sm:$0xf] %vm806, %v1893
        %1970 = vst.msk [vmem:[#allocation2 + $0x198] sm:$0xf] %vm806, %v1895
        %1971 = vst.msk [vmem:[#allocation2 + $0x1ac] sm:$0xf] %vm806, %v1897
        %1972 = vst.msk [vmem:[#allocation2 + $0x1c0] sm:$0xf] %vm806, %v1899
        %1973 = vst.msk [vmem:[#allocation2 + $0x1d4] sm:$0xf] %vm806, %v1901
        %1974 = vst.msk [vmem:[#allocation2 + $0x1e8] sm:$0xf] %vm806, %v1903
        %1975 = vst.msk [vmem:[#allocation2 + $0x1fc] sm:$0xf] %vm806, %v1905
        %1976 = vst.msk [vmem:[#allocation2 + $0x210] sm:$0xf] %vm806, %v1907
        %1977 = vst.msk [vmem:[#allocation2 + $0x224] sm:$0xf] %vm806, %v1909
        %1978 = vst.msk [vmem:[#allocation2 + $0x238] sm:$0xf] %vm806, %v1911
        %1979 = vst.msk [vmem:[#allocation2 + $0x24c] sm:$0xf] %vm806, %v1913
        %1980 = vst.msk [vmem:[#allocation2 + $0x260] sm:$0xf] %vm806, %v1915
        %1981 = vst.msk [vmem:[#allocation2 + $0x274] sm:$0xf] %vm806, %v1917
        %s1982 = sadd.s32 %s238, 2
        %s1983 = smul.u32 %s1982, 3
        %s1984 = smul.addr %s1983, 4
        %s1985 = scalar_lea.vmem %s225, %s1984
        %v1986 = vld [vmem:[%s1985] sm:$0xf]
        %v1987 = vld [vmem:[%s1985 + $0x4] sm:$0xf]
        %v1988 = vld [vmem:[%s1985 + $0x8] sm:$0x1]
        %v1989 = vld [vmem:[%s1985 + $0xc] sm:$0xf]
        %v1990 = vld [vmem:[%s1985 + $0x10] sm:$0xf]
        %v1991 = vld [vmem:[%s1985 + $0x14] sm:$0x1]
        %v1992 = vld [vmem:[%s1985 + $0x18] sm:$0xf]
        %v1993 = vld [vmem:[%s1985 + $0x1c] sm:$0xf]
        %v1994 = vld [vmem:[%s1985 + $0x20] sm:$0x1]
        %v1995 = vld [vmem:[%s1985 + $0x24] sm:$0xf]
        %v1996 = vld [vmem:[%s1985 + $0x28] sm:$0xf]
        %v1997 = vld [vmem:[%s1985 + $0x2c] sm:$0x1]
        %v1998 = vld [vmem:[%s1985 + $0x30] sm:$0xf]
        %v1999 = vld [vmem:[%s1985 + $0x34] sm:$0xf]
        %v2000 = vld [vmem:[%s1985 + $0x38] sm:$0x1]
        %v2001 = vld [vmem:[%s1985 + $0x3c] sm:$0xf]
        %v2002 = vld [vmem:[%s1985 + $0x40] sm:$0xf]
        %v2003 = vld [vmem:[%s1985 + $0x44] sm:$0x1]
        %v2004 = vld [vmem:[%s1985 + $0x48] sm:$0xf]
        %v2005 = vld [vmem:[%s1985 + $0x4c] sm:$0xf]
        %v2006 = vld [vmem:[%s1985 + $0x50] sm:$0x1]
        %v2007 = vld [vmem:[%s1985 + $0x54] sm:$0xf]
        %v2008 = vld [vmem:[%s1985 + $0x58] sm:$0xf]
        %v2009 = vld [vmem:[%s1985 + $0x5c] sm:$0x1]
        %v2010 = vld [vmem:[%s1985 + $0x60] sm:$0xf]
        %v2011 = vld [vmem:[%s1985 + $0x64] sm:$0xf]
        %v2012 = vld [vmem:[%s1985 + $0x68] sm:$0x1]
        %v2013 = vld [vmem:[%s1985 + $0x6c] sm:$0xf]
        %v2014 = vld [vmem:[%s1985 + $0x70] sm:$0xf]
        %v2015 = vld [vmem:[%s1985 + $0x74] sm:$0x1]
        %v2016 = vld [vmem:[%s1985 + $0x78] sm:$0xf]
        %v2017 = vld [vmem:[%s1985 + $0x7c] sm:$0xf]
        %v2018 = vld [vmem:[%s1985 + $0x80] sm:$0x1]
        %v2019 = vld [vmem:[%s1985 + $0x84] sm:$0xf]
        %v2020 = vld [vmem:[%s1985 + $0x88] sm:$0xf]
        %v2021 = vld [vmem:[%s1985 + $0x8c] sm:$0x1]
        %v2022 = vld [vmem:[%s1985 + $0x90] sm:$0xf]
        %v2023 = vld [vmem:[%s1985 + $0x94] sm:$0xf]
        %v2024 = vld [vmem:[%s1985 + $0x98] sm:$0x1]
        %v2025 = vld [vmem:[%s1985 + $0x9c] sm:$0xf]
        %v2026 = vld [vmem:[%s1985 + $0xa0] sm:$0xf]
        %v2027 = vld [vmem:[%s1985 + $0xa4] sm:$0x1]
        %v2028 = vld [vmem:[%s1985 + $0xa8] sm:$0xf]
        %v2029 = vld [vmem:[%s1985 + $0xac] sm:$0xf]
        %v2030 = vld [vmem:[%s1985 + $0xb0] sm:$0x1]
        %v2031 = vld [vmem:[%s1985 + $0xb4] sm:$0xf]
        %v2032 = vld [vmem:[%s1985 + $0xb8] sm:$0xf]
        %v2033 = vld [vmem:[%s1985 + $0xbc] sm:$0x1]
        %2034 = vst.msk [vmem:[#allocation2 + $0xc] sm:$0xf] %vm290, %v1986
        %2035 = vst.msk [vmem:[#allocation2 + $0x20] sm:$0xf] %vm290, %v1987
        %2036 = vst.msk [vmem:[#allocation2 + $0x34] sm:$0xf] %vm290, %v1989
        %2037 = vst.msk [vmem:[#allocation2 + $0x48] sm:$0xf] %vm290, %v1990
        %2038 = vst.msk [vmem:[#allocation2 + $0x5c] sm:$0xf] %vm290, %v1992
        %2039 = vst.msk [vmem:[#allocation2 + $0x70] sm:$0xf] %vm290, %v1993
        %2040 = vst.msk [vmem:[#allocation2 + $0x84] sm:$0xf] %vm290, %v1995
        %2041 = vst.msk [vmem:[#allocation2 + $0x98] sm:$0xf] %vm290, %v1996
        %2042 = vst.msk [vmem:[#allocation2 + $0xac] sm:$0xf] %vm290, %v1998
        %2043 = vst.msk [vmem:[#allocation2 + $0xc0] sm:$0xf] %vm290, %v1999
        %2044 = vst.msk [vmem:[#allocation2 + $0xd4] sm:$0xf] %vm290, %v2001
        %2045 = vst.msk [vmem:[#allocation2 + $0xe8] sm:$0xf] %vm290, %v2002
        %2046 = vst.msk [vmem:[#allocation2 + $0xfc] sm:$0xf] %vm290, %v2004
        %2047 = vst.msk [vmem:[#allocation2 + $0x110] sm:$0xf] %vm290, %v2005
        %2048 = vst.msk [vmem:[#allocation2 + $0x124] sm:$0xf] %vm290, %v2007
        %2049 = vst.msk [vmem:[#allocation2 + $0x138] sm:$0xf] %vm290, %v2008
        %2050 = vst.msk [vmem:[#allocation2 + $0x14c] sm:$0xf] %vm290, %v2010
        %2051 = vst.msk [vmem:[#allocation2 + $0x160] sm:$0xf] %vm290, %v2011
        %2052 = vst.msk [vmem:[#allocation2 + $0x174] sm:$0xf] %vm290, %v2013
        %2053 = vst.msk [vmem:[#allocation2 + $0x188] sm:$0xf] %vm290, %v2014
        %2054 = vst.msk [vmem:[#allocation2 + $0x19c] sm:$0xf] %vm290, %v2016
        %2055 = vst.msk [vmem:[#allocation2 + $0x1b0] sm:$0xf] %vm290, %v2017
        %2056 = vst.msk [vmem:[#allocation2 + $0x1c4] sm:$0xf] %vm290, %v2019
        %2057 = vst.msk [vmem:[#allocation2 + $0x1d8] sm:$0xf] %vm290, %v2020
        %2058 = vst.msk [vmem:[#allocation2 + $0x1ec] sm:$0xf] %vm290, %v2022
        %2059 = vst.msk [vmem:[#allocation2 + $0x200] sm:$0xf] %vm290, %v2023
        %2060 = vst.msk [vmem:[#allocation2 + $0x214] sm:$0xf] %vm290, %v2025
        %2061 = vst.msk [vmem:[#allocation2 + $0x228] sm:$0xf] %vm290, %v2026
        %2062 = vst.msk [vmem:[#allocation2 + $0x23c] sm:$0xf] %vm290, %v2028
        %2063 = vst.msk [vmem:[#allocation2 + $0x250] sm:$0xf] %vm290, %v2029
        %2064 = vst.msk [vmem:[#allocation2 + $0x264] sm:$0xf] %vm290, %v2031
        %2065 = vst.msk [vmem:[#allocation2 + $0x278] sm:$0xf] %vm290, %v2032
        %v2067 = vshrl.u32 %v1986, 16
        %v2069 = vrot.slane %v2067, 4
        %v2070 = vshll.u32 %v1986, 16
        %v2072 = vrot.slane %v2070, 5
        %v2073 = vor.u32 %v2069, %v2072
        %v2074 = vrot.slane %v2073, 4
        %v2076 = vshll.u32 %v1987, 16
        %v2078 = vrot.slane %v2076, 5
        %v2079 = vsel %vm325, %v2074, %v2078
        %v2080 = vshrl.u32 %v1987, 16
        %v2082 = vrot.slane %v2080, 4
        %v2083 = vor.u32 %v2082, %v2078
        %v2084 = vrot.slane %v2083, 4
        %v2086 = vshll.u32 %v1988, 16
        %v2088 = vrot.slane %v2086, 5
        %v2089 = vsel %vm325, %v2084, %v2088
        %v2091 = vshrl.u32 %v1989, 16
        %v2093 = vrot.slane %v2091, 4
        %v2094 = vshll.u32 %v1989, 16
        %v2096 = vrot.slane %v2094, 5
        %v2097 = vor.u32 %v2093, %v2096
        %v2098 = vrot.slane %v2097, 4
        %v2100 = vshll.u32 %v1990, 16
        %v2102 = vrot.slane %v2100, 5
        %v2103 = vsel %vm325, %v2098, %v2102
        %v2104 = vshrl.u32 %v1990, 16
        %v2106 = vrot.slane %v2104, 4
        %v2107 = vor.u32 %v2106, %v2102
        %v2108 = vrot.slane %v2107, 4
        %v2110 = vshll.u32 %v1991, 16
        %v2112 = vrot.slane %v2110, 5
        %v2113 = vsel %vm325, %v2108, %v2112
        %v2115 = vshrl.u32 %v1992, 16
        %v2117 = vrot.slane %v2115, 4
        %v2118 = vshll.u32 %v1992, 16
        %v2120 = vrot.slane %v2118, 5
        %v2121 = vor.u32 %v2117, %v2120
        %v2122 = vrot.slane %v2121, 4
        %v2124 = vshll.u32 %v1993, 16
        %v2126 = vrot.slane %v2124, 5
        %v2127 = vsel %vm325, %v2122, %v2126
        %v2128 = vshrl.u32 %v1993, 16
        %v2130 = vrot.slane %v2128, 4
        %v2131 = vor.u32 %v2130, %v2126
        %v2132 = vrot.slane %v2131, 4
        %v2134 = vshll.u32 %v1994, 16
        %v2136 = vrot.slane %v2134, 5
        %v2137 = vsel %vm325, %v2132, %v2136
        %v2139 = vshrl.u32 %v1995, 16
        %v2141 = vrot.slane %v2139, 4
        %v2142 = vshll.u32 %v1995, 16
        %v2144 = vrot.slane %v2142, 5
        %v2145 = vor.u32 %v2141, %v2144
        %v2146 = vrot.slane %v2145, 4
        %v2148 = vshll.u32 %v1996, 16
        %v2150 = vrot.slane %v2148, 5
        %v2151 = vsel %vm325, %v2146, %v2150
        %v2152 = vshrl.u32 %v1996, 16
        %v2154 = vrot.slane %v2152, 4
        %v2155 = vor.u32 %v2154, %v2150
        %v2156 = vrot.slane %v2155, 4
        %v2158 = vshll.u32 %v1997, 16
        %v2160 = vrot.slane %v2158, 5
        %v2161 = vsel %vm325, %v2156, %v2160
        %v2163 = vshrl.u32 %v1998, 16
        %v2165 = vrot.slane %v2163, 4
        %v2166 = vshll.u32 %v1998, 16
        %v2168 = vrot.slane %v2166, 5
        %v2169 = vor.u32 %v2165, %v2168
        %v2170 = vrot.slane %v2169, 4
        %v2172 = vshll.u32 %v1999, 16
        %v2174 = vrot.slane %v2172, 5
        %v2175 = vsel %vm325, %v2170, %v2174
        %v2176 = vshrl.u32 %v1999, 16
        %v2178 = vrot.slane %v2176, 4
        %v2179 = vor.u32 %v2178, %v2174
        %v2180 = vrot.slane %v2179, 4
        %v2182 = vshll.u32 %v2000, 16
        %v2184 = vrot.slane %v2182, 5
        %v2185 = vsel %vm325, %v2180, %v2184
        %v2187 = vshrl.u32 %v2001, 16
        %v2189 = vrot.slane %v2187, 4
        %v2190 = vshll.u32 %v2001, 16
        %v2192 = vrot.slane %v2190, 5
        %v2193 = vor.u32 %v2189, %v2192
        %v2194 = vrot.slane %v2193, 4
        %v2196 = vshll.u32 %v2002, 16
        %v2198 = vrot.slane %v2196, 5
        %v2199 = vsel %vm325, %v2194, %v2198
        %v2200 = vshrl.u32 %v2002, 16
        %v2202 = vrot.slane %v2200, 4
        %v2203 = vor.u32 %v2202, %v2198
        %v2204 = vrot.slane %v2203, 4
        %v2206 = vshll.u32 %v2003, 16
        %v2208 = vrot.slane %v2206, 5
        %v2209 = vsel %vm325, %v2204, %v2208
        %v2211 = vshrl.u32 %v2004, 16
        %v2213 = vrot.slane %v2211, 4
        %v2214 = vshll.u32 %v2004, 16
        %v2216 = vrot.slane %v2214, 5
        %v2217 = vor.u32 %v2213, %v2216
        %v2218 = vrot.slane %v2217, 4
        %v2220 = vshll.u32 %v2005, 16
        %v2222 = vrot.slane %v2220, 5
        %v2223 = vsel %vm325, %v2218, %v2222
        %v2224 = vshrl.u32 %v2005, 16
        %v2226 = vrot.slane %v2224, 4
        %v2227 = vor.u32 %v2226, %v2222
        %v2228 = vrot.slane %v2227, 4
        %v2230 = vshll.u32 %v2006, 16
        %v2232 = vrot.slane %v2230, 5
        %v2233 = vsel %vm325, %v2228, %v2232
        %v2235 = vshrl.u32 %v2007, 16
        %v2237 = vrot.slane %v2235, 4
        %v2238 = vshll.u32 %v2007, 16
        %v2240 = vrot.slane %v2238, 5
        %v2241 = vor.u32 %v2237, %v2240
        %v2242 = vrot.slane %v2241, 4
        %v2244 = vshll.u32 %v2008, 16
        %v2246 = vrot.slane %v2244, 5
        %v2247 = vsel %vm325, %v2242, %v2246
        %v2248 = vshrl.u32 %v2008, 16
        %v2250 = vrot.slane %v2248, 4
        %v2251 = vor.u32 %v2250, %v2246
        %v2252 = vrot.slane %v2251, 4
        %v2254 = vshll.u32 %v2009, 16
        %v2256 = vrot.slane %v2254, 5
        %v2257 = vsel %vm325, %v2252, %v2256
        %v2259 = vshrl.u32 %v2010, 16
        %v2261 = vrot.slane %v2259, 4
        %v2262 = vshll.u32 %v2010, 16
        %v2264 = vrot.slane %v2262, 5
        %v2265 = vor.u32 %v2261, %v2264
        %v2266 = vrot.slane %v2265, 4
        %v2268 = vshll.u32 %v2011, 16
        %v2270 = vrot.slane %v2268, 5
        %v2271 = vsel %vm325, %v2266, %v2270
        %v2272 = vshrl.u32 %v2011, 16
        %v2274 = vrot.slane %v2272, 4
        %v2275 = vor.u32 %v2274, %v2270
        %v2276 = vrot.slane %v2275, 4
        %v2278 = vshll.u32 %v2012, 16
        %v2280 = vrot.slane %v2278, 5
        %v2281 = vsel %vm325, %v2276, %v2280
        %v2283 = vshrl.u32 %v2013, 16
        %v2285 = vrot.slane %v2283, 4
        %v2286 = vshll.u32 %v2013, 16
        %v2288 = vrot.slane %v2286, 5
        %v2289 = vor.u32 %v2285, %v2288
        %v2290 = vrot.slane %v2289, 4
        %v2292 = vshll.u32 %v2014, 16
        %v2294 = vrot.slane %v2292, 5
        %v2295 = vsel %vm325, %v2290, %v2294
        %v2296 = vshrl.u32 %v2014, 16
        %v2298 = vrot.slane %v2296, 4
        %v2299 = vor.u32 %v2298, %v2294
        %v2300 = vrot.slane %v2299, 4
        %v2302 = vshll.u32 %v2015, 16
        %v2304 = vrot.slane %v2302, 5
        %v2305 = vsel %vm325, %v2300, %v2304
        %v2307 = vshrl.u32 %v2016, 16
        %v2309 = vrot.slane %v2307, 4
        %v2310 = vshll.u32 %v2016, 16
        %v2312 = vrot.slane %v2310, 5
        %v2313 = vor.u32 %v2309, %v2312
        %v2314 = vrot.slane %v2313, 4
        %v2316 = vshll.u32 %v2017, 16
        %v2318 = vrot.slane %v2316, 5
        %v2319 = vsel %vm325, %v2314, %v2318
        %v2320 = vshrl.u32 %v2017, 16
        %v2322 = vrot.slane %v2320, 4
        %v2323 = vor.u32 %v2322, %v2318
        %v2324 = vrot.slane %v2323, 4
        %v2326 = vshll.u32 %v2018, 16
        %v2328 = vrot.slane %v2326, 5
        %v2329 = vsel %vm325, %v2324, %v2328
        %v2331 = vshrl.u32 %v2019, 16
        %v2333 = vrot.slane %v2331, 4
        %v2334 = vshll.u32 %v2019, 16
        %v2336 = vrot.slane %v2334, 5
        %v2337 = vor.u32 %v2333, %v2336
        %v2338 = vrot.slane %v2337, 4
        %v2340 = vshll.u32 %v2020, 16
        %v2342 = vrot.slane %v2340, 5
        %v2343 = vsel %vm325, %v2338, %v2342
        %v2344 = vshrl.u32 %v2020, 16
        %v2346 = vrot.slane %v2344, 4
        %v2347 = vor.u32 %v2346, %v2342
        %v2348 = vrot.slane %v2347, 4
        %v2350 = vshll.u32 %v2021, 16
        %v2352 = vrot.slane %v2350, 5
        %v2353 = vsel %vm325, %v2348, %v2352
        %v2355 = vshrl.u32 %v2022, 16
        %v2357 = vrot.slane %v2355, 4
        %v2358 = vshll.u32 %v2022, 16
        %v2360 = vrot.slane %v2358, 5
        %v2361 = vor.u32 %v2357, %v2360
        %v2362 = vrot.slane %v2361, 4
        %v2364 = vshll.u32 %v2023, 16
        %v2366 = vrot.slane %v2364, 5
        %v2367 = vsel %vm325, %v2362, %v2366
        %v2368 = vshrl.u32 %v2023, 16
        %v2370 = vrot.slane %v2368, 4
        %v2371 = vor.u32 %v2370, %v2366
        %v2372 = vrot.slane %v2371, 4
        %v2374 = vshll.u32 %v2024, 16
        %v2376 = vrot.slane %v2374, 5
        %v2377 = vsel %vm325, %v2372, %v2376
        %v2379 = vshrl.u32 %v2025, 16
        %v2381 = vrot.slane %v2379, 4
        %v2382 = vshll.u32 %v2025, 16
        %v2384 = vrot.slane %v2382, 5
        %v2385 = vor.u32 %v2381, %v2384
        %v2386 = vrot.slane %v2385, 4
        %v2388 = vshll.u32 %v2026, 16
        %v2390 = vrot.slane %v2388, 5
        %v2391 = vsel %vm325, %v2386, %v2390
        %v2392 = vshrl.u32 %v2026, 16
        %v2394 = vrot.slane %v2392, 4
        %v2395 = vor.u32 %v2394, %v2390
        %v2396 = vrot.slane %v2395, 4
        %v2398 = vshll.u32 %v2027, 16
        %v2400 = vrot.slane %v2398, 5
        %v2401 = vsel %vm325, %v2396, %v2400
        %v2403 = vshrl.u32 %v2028, 16
        %v2405 = vrot.slane %v2403, 4
        %v2406 = vshll.u32 %v2028, 16
        %v2408 = vrot.slane %v2406, 5
        %v2409 = vor.u32 %v2405, %v2408
        %v2410 = vrot.slane %v2409, 4
        %v2412 = vshll.u32 %v2029, 16
        %v2414 = vrot.slane %v2412, 5
        %v2415 = vsel %vm325, %v2410, %v2414
        %v2416 = vshrl.u32 %v2029, 16
        %v2418 = vrot.slane %v2416, 4
        %v2419 = vor.u32 %v2418, %v2414
        %v2420 = vrot.slane %v2419, 4
        %v2422 = vshll.u32 %v2030, 16
        %v2424 = vrot.slane %v2422, 5
        %v2425 = vsel %vm325, %v2420, %v2424
        %v2427 = vshrl.u32 %v2031, 16
        %v2429 = vrot.slane %v2427, 4
        %v2430 = vshll.u32 %v2031, 16
        %v2432 = vrot.slane %v2430, 5
        %v2433 = vor.u32 %v2429, %v2432
        %v2434 = vrot.slane %v2433, 4
        %v2436 = vshll.u32 %v2032, 16
        %v2438 = vrot.slane %v2436, 5
        %v2439 = vsel %vm325, %v2434, %v2438
        %v2440 = vshrl.u32 %v2032, 16
        %v2442 = vrot.slane %v2440, 4
        %v2443 = vor.u32 %v2442, %v2438
        %v2444 = vrot.slane %v2443, 4
        %v2446 = vshll.u32 %v2033, 16
        %v2448 = vrot.slane %v2446, 5
        %v2449 = vsel %vm325, %v2444, %v2448
        %2450 = vrot.lane.b32.xlu0 %v2079, 64
        %v2451 = vpop.permute.xlu0 %2450
        %2452 = vrot.lane.b32.xlu0 %v2089, 64
        %v2453 = vpop.permute.xlu0 %2452
        %2454 = vrot.lane.b32.xlu0 %v2103, 64
        %v2455 = vpop.permute.xlu0 %2454
        %2456 = vrot.lane.b32.xlu0 %v2113, 64
        %v2457 = vpop.permute.xlu0 %2456
        %2458 = vrot.lane.b32.xlu0 %v2127, 64
        %v2459 = vpop.permute.xlu0 %2458
        %2460 = vrot.lane.b32.xlu0 %v2137, 64
        %v2461 = vpop.permute.xlu0 %2460
        %2462 = vrot.lane.b32.xlu0 %v2151, 64
        %v2463 = vpop.permute.xlu0 %2462
        %2464 = vrot.lane.b32.xlu0 %v2161, 64
        %v2465 = vpop.permute.xlu0 %2464
        %2466 = vrot.lane.b32.xlu0 %v2175, 64
        %v2467 = vpop.permute.xlu0 %2466
        %2468 = vrot.lane.b32.xlu0 %v2185, 64
        %v2469 = vpop.permute.xlu0 %2468
        %2470 = vrot.lane.b32.xlu0 %v2199, 64
        %v2471 = vpop.permute.xlu0 %2470
        %2472 = vrot.lane.b32.xlu0 %v2209, 64
        %v2473 = vpop.permute.xlu0 %2472
        %2474 = vrot.lane.b32.xlu0 %v2223, 64
        %v2475 = vpop.permute.xlu0 %2474
        %2476 = vrot.lane.b32.xlu0 %v2233, 64
        %v2477 = vpop.permute.xlu0 %2476
        %2478 = vrot.lane.b32.xlu0 %v2247, 64
        %v2479 = vpop.permute.xlu0 %2478
        %2480 = vrot.lane.b32.xlu0 %v2257, 64
        %v2481 = vpop.permute.xlu0 %2480
        %2482 = vrot.lane.b32.xlu0 %v2271, 64
        %v2483 = vpop.permute.xlu0 %2482
        %2484 = vrot.lane.b32.xlu0 %v2281, 64
        %v2485 = vpop.permute.xlu0 %2484
        %2486 = vrot.lane.b32.xlu0 %v2295, 64
        %v2487 = vpop.permute.xlu0 %2486
        %2488 = vrot.lane.b32.xlu0 %v2305, 64
        %v2489 = vpop.permute.xlu0 %2488
        %2490 = vrot.lane.b32.xlu0 %v2319, 64
        %v2491 = vpop.permute.xlu0 %2490
        %2492 = vrot.lane.b32.xlu0 %v2329, 64
        %v2493 = vpop.permute.xlu0 %2492
        %2494 = vrot.lane.b32.xlu0 %v2343, 64
        %v2495 = vpop.permute.xlu0 %2494
        %2496 = vrot.lane.b32.xlu0 %v2353, 64
        %v2497 = vpop.permute.xlu0 %2496
        %2498 = vrot.lane.b32.xlu0 %v2367, 64
        %v2499 = vpop.permute.xlu0 %2498
        %2500 = vrot.lane.b32.xlu0 %v2377, 64
        %v2501 = vpop.permute.xlu0 %2500
        %2502 = vrot.lane.b32.xlu0 %v2391, 64
        %v2503 = vpop.permute.xlu0 %2502
        %2504 = vrot.lane.b32.xlu0 %v2401, 64
        %v2505 = vpop.permute.xlu0 %2504
        %2506 = vrot.lane.b32.xlu0 %v2415, 64
        %v2507 = vpop.permute.xlu0 %2506
        %2508 = vrot.lane.b32.xlu0 %v2425, 64
        %v2509 = vpop.permute.xlu0 %2508
        %2510 = vrot.lane.b32.xlu0 %v2439, 64
        %v2511 = vpop.permute.xlu0 %2510
        %2512 = vrot.lane.b32.xlu0 %v2449, 64
        %v2513 = vpop.permute.xlu0 %2512
        %2546 = vst.msk [vmem:[#allocation2 + $0xc] sm:$0xf] %vm806, %v2451
        %2547 = vst.msk [vmem:[#allocation2 + $0x20] sm:$0xf] %vm806, %v2453
        %2548 = vst.msk [vmem:[#allocation2 + $0x34] sm:$0xf] %vm806, %v2455
        %2549 = vst.msk [vmem:[#allocation2 + $0x48] sm:$0xf] %vm806, %v2457
        %2550 = vst.msk [vmem:[#allocation2 + $0x5c] sm:$0xf] %vm806, %v2459
        %2551 = vst.msk [vmem:[#allocation2 + $0x70] sm:$0xf] %vm806, %v2461
        %2552 = vst.msk [vmem:[#allocation2 + $0x84] sm:$0xf] %vm806, %v2463
        %2553 = vst.msk [vmem:[#allocation2 + $0x98] sm:$0xf] %vm806, %v2465
        %2554 = vst.msk [vmem:[#allocation2 + $0xac] sm:$0xf] %vm806, %v2467
        %2555 = vst.msk [vmem:[#allocation2 + $0xc0] sm:$0xf] %vm806, %v2469
        %2556 = vst.msk [vmem:[#allocation2 + $0xd4] sm:$0xf] %vm806, %v2471
        %2557 = vst.msk [vmem:[#allocation2 + $0xe8] sm:$0xf] %vm806, %v2473
        %2558 = vst.msk [vmem:[#allocation2 + $0xfc] sm:$0xf] %vm806, %v2475
        %2559 = vst.msk [vmem:[#allocation2 + $0x110] sm:$0xf] %vm806, %v2477
        %2560 = vst.msk [vmem:[#allocation2 + $0x124] sm:$0xf] %vm806, %v2479
        %2561 = vst.msk [vmem:[#allocation2 + $0x138] sm:$0xf] %vm806, %v2481
        %2562 = vst.msk [vmem:[#allocation2 + $0x14c] sm:$0xf] %vm806, %v2483
        %2563 = vst.msk [vmem:[#allocation2 + $0x160] sm:$0xf] %vm806, %v2485
        %2564 = vst.msk [vmem:[#allocation2 + $0x174] sm:$0xf] %vm806, %v2487
        %2565 = vst.msk [vmem:[#allocation2 + $0x188] sm:$0xf] %vm806, %v2489
        %2566 = vst.msk [vmem:[#allocation2 + $0x19c] sm:$0xf] %vm806, %v2491
        %2567 = vst.msk [vmem:[#allocation2 + $0x1b0] sm:$0xf] %vm806, %v2493
        %2568 = vst.msk [vmem:[#allocation2 + $0x1c4] sm:$0xf] %vm806, %v2495
        %2569 = vst.msk [vmem:[#allocation2 + $0x1d8] sm:$0xf] %vm806, %v2497
        %2570 = vst.msk [vmem:[#allocation2 + $0x1ec] sm:$0xf] %vm806, %v2499
        %2571 = vst.msk [vmem:[#allocation2 + $0x200] sm:$0xf] %vm806, %v2501
        %2572 = vst.msk [vmem:[#allocation2 + $0x214] sm:$0xf] %vm806, %v2503
        %2573 = vst.msk [vmem:[#allocation2 + $0x228] sm:$0xf] %vm806, %v2505
        %2574 = vst.msk [vmem:[#allocation2 + $0x23c] sm:$0xf] %vm806, %v2507
        %2575 = vst.msk [vmem:[#allocation2 + $0x250] sm:$0xf] %vm806, %v2509
        %2576 = vst.msk [vmem:[#allocation2 + $0x264] sm:$0xf] %vm806, %v2511
        %2577 = vst.msk [vmem:[#allocation2 + $0x278] sm:$0xf] %vm806, %v2513
        %v2626 = vrot.slane %v1986, 5
        %v2627 = vrot.slane %v2626, 4
        %v2628 = vrot.slane %v1987, 5
        %v2629 = vsel %vm889, %v2627, %v2628
        %v2630 = vrot.slane %v2628, 4
        %v2631 = vrot.slane %v1988, 5
        %v2632 = vsel %vm889, %v2630, %v2631
        %v2633 = vrot.slane %v1989, 5
        %v2634 = vrot.slane %v2633, 4
        %v2635 = vrot.slane %v1990, 5
        %v2636 = vsel %vm889, %v2634, %v2635
        %v2637 = vrot.slane %v2635, 4
        %v2638 = vrot.slane %v1991, 5
        %v2639 = vsel %vm889, %v2637, %v2638
        %v2640 = vrot.slane %v1992, 5
        %v2641 = vrot.slane %v2640, 4
        %v2642 = vrot.slane %v1993, 5
        %v2643 = vsel %vm889, %v2641, %v2642
        %v2644 = vrot.slane %v2642, 4
        %v2645 = vrot.slane %v1994, 5
        %v2646 = vsel %vm889, %v2644, %v2645
        %v2647 = vrot.slane %v1995, 5
        %v2648 = vrot.slane %v2647, 4
        %v2649 = vrot.slane %v1996, 5
        %v2650 = vsel %vm889, %v2648, %v2649
        %v2651 = vrot.slane %v2649, 4
        %v2652 = vrot.slane %v1997, 5
        %v2653 = vsel %vm889, %v2651, %v2652
        %v2654 = vrot.slane %v1998, 5
        %v2655 = vrot.slane %v2654, 4
        %v2656 = vrot.slane %v1999, 5
        %v2657 = vsel %vm889, %v2655, %v2656
        %v2658 = vrot.slane %v2656, 4
        %v2659 = vrot.slane %v2000, 5
        %v2660 = vsel %vm889, %v2658, %v2659
        %v2661 = vrot.slane %v2001, 5
        %v2662 = vrot.slane %v2661, 4
        %v2663 = vrot.slane %v2002, 5
        %v2664 = vsel %vm889, %v2662, %v2663
        %v2665 = vrot.slane %v2663, 4
        %v2666 = vrot.slane %v2003, 5
        %v2667 = vsel %vm889, %v2665, %v2666
        %v2668 = vrot.slane %v2004, 5
        %v2669 = vrot.slane %v2668, 4
        %v2670 = vrot.slane %v2005, 5
        %v2671 = vsel %vm889, %v2669, %v2670
        %v2672 = vrot.slane %v2670, 4
        %v2673 = vrot.slane %v2006, 5
        %v2674 = vsel %vm889, %v2672, %v2673
        %v2675 = vrot.slane %v2007, 5
        %v2676 = vrot.slane %v2675, 4
        %v2677 = vrot.slane %v2008, 5
        %v2678 = vsel %vm889, %v2676, %v2677
        %v2679 = vrot.slane %v2677, 4
        %v2680 = vrot.slane %v2009, 5
        %v2681 = vsel %vm889, %v2679, %v2680
        %v2682 = vrot.slane %v2010, 5
        %v2683 = vrot.slane %v2682, 4
        %v2684 = vrot.slane %v2011, 5
        %v2685 = vsel %vm889, %v2683, %v2684
        %v2686 = vrot.slane %v2684, 4
        %v2687 = vrot.slane %v2012, 5
        %v2688 = vsel %vm889, %v2686, %v2687
        %v2689 = vrot.slane %v2013, 5
        %v2690 = vrot.slane %v2689, 4
        %v2691 = vrot.slane %v2014, 5
        %v2692 = vsel %vm889, %v2690, %v2691
        %v2693 = vrot.slane %v2691, 4
        %v2694 = vrot.slane %v2015, 5
        %v2695 = vsel %vm889, %v2693, %v2694
        %v2696 = vrot.slane %v2016, 5
        %v2697 = vrot.slane %v2696, 4
        %v2698 = vrot.slane %v2017, 5
        %v2699 = vsel %vm889, %v2697, %v2698
        %v2700 = vrot.slane %v2698, 4
        %v2701 = vrot.slane %v2018, 5
        %v2702 = vsel %vm889, %v2700, %v2701
        %v2703 = vrot.slane %v2019, 5
        %v2704 = vrot.slane %v2703, 4
        %v2705 = vrot.slane %v2020, 5
        %v2706 = vsel %vm889, %v2704, %v2705
        %v2707 = vrot.slane %v2705, 4
        %v2708 = vrot.slane %v2021, 5
        %v2709 = vsel %vm889, %v2707, %v2708
        %v2710 = vrot.slane %v2022, 5
        %v2711 = vrot.slane %v2710, 4
        %v2712 = vrot.slane %v2023, 5
        %v2713 = vsel %vm889, %v2711, %v2712
        %v2714 = vrot.slane %v2712, 4
        %v2715 = vrot.slane %v2024, 5
        %v2716 = vsel %vm889, %v2714, %v2715
        %v2717 = vrot.slane %v2025, 5
        %v2718 = vrot.slane %v2717, 4
        %v2719 = vrot.slane %v2026, 5
        %v2720 = vsel %vm889, %v2718, %v2719
        %v2721 = vrot.slane %v2719, 4
        %v2722 = vrot.slane %v2027, 5
        %v2723 = vsel %vm889, %v2721, %v2722
        %v2724 = vrot.slane %v2028, 5
        %v2725 = vrot.slane %v2724, 4
        %v2726 = vrot.slane %v2029, 5
        %v2727 = vsel %vm889, %v2725, %v2726
        %v2728 = vrot.slane %v2726, 4
        %v2729 = vrot.slane %v2030, 5
        %v2730 = vsel %vm889, %v2728, %v2729
        %v2731 = vrot.slane %v2031, 5
        %v2732 = vrot.slane %v2731, 4
        %v2733 = vrot.slane %v2032, 5
        %v2734 = vsel %vm889, %v2732, %v2733
        %v2735 = vrot.slane %v2733, 4
        %v2736 = vrot.slane %v2033, 5
        %v2737 = vsel %vm889, %v2735, %v2736
        %2770 = vst.msk [vmem:[#allocation2 + $0x10] sm:$0xf] %vm290, %v2629
        %2771 = vst.msk [vmem:[#allocation2 + $0x24] sm:$0xf] %vm290, %v2632
        %2772 = vst.msk [vmem:[#allocation2 + $0x38] sm:$0xf] %vm290, %v2636
        %2773 = vst.msk [vmem:[#allocation2 + $0x4c] sm:$0xf] %vm290, %v2639
        %2774 = vst.msk [vmem:[#allocation2 + $0x60] sm:$0xf] %vm290, %v2643
        %2775 = vst.msk [vmem:[#allocation2 + $0x74] sm:$0xf] %vm290, %v2646
        %2776 = vst.msk [vmem:[#allocation2 + $0x88] sm:$0xf] %vm290, %v2650
        %2777 = vst.msk [vmem:[#allocation2 + $0x9c] sm:$0xf] %vm290, %v2653
        %2778 = vst.msk [vmem:[#allocation2 + $0xb0] sm:$0xf] %vm290, %v2657
        %2779 = vst.msk [vmem:[#allocation2 + $0xc4] sm:$0xf] %vm290, %v2660
        %2780 = vst.msk [vmem:[#allocation2 + $0xd8] sm:$0xf] %vm290, %v2664
        %2781 = vst.msk [vmem:[#allocation2 + $0xec] sm:$0xf] %vm290, %v2667
        %2782 = vst.msk [vmem:[#allocation2 + $0x100] sm:$0xf] %vm290, %v2671
        %2783 = vst.msk [vmem:[#allocation2 + $0x114] sm:$0xf] %vm290, %v2674
        %2784 = vst.msk [vmem:[#allocation2 + $0x128] sm:$0xf] %vm290, %v2678
        %2785 = vst.msk [vmem:[#allocation2 + $0x13c] sm:$0xf] %vm290, %v2681
        %2786 = vst.msk [vmem:[#allocation2 + $0x150] sm:$0xf] %vm290, %v2685
        %2787 = vst.msk [vmem:[#allocation2 + $0x164] sm:$0xf] %vm290, %v2688
        %2788 = vst.msk [vmem:[#allocation2 + $0x178] sm:$0xf] %vm290, %v2692
        %2789 = vst.msk [vmem:[#allocation2 + $0x18c] sm:$0xf] %vm290, %v2695
        %2790 = vst.msk [vmem:[#allocation2 + $0x1a0] sm:$0xf] %vm290, %v2699
        %2791 = vst.msk [vmem:[#allocation2 + $0x1b4] sm:$0xf] %vm290, %v2702
        %2792 = vst.msk [vmem:[#allocation2 + $0x1c8] sm:$0xf] %vm290, %v2706
        %2793 = vst.msk [vmem:[#allocation2 + $0x1dc] sm:$0xf] %vm290, %v2709
        %2794 = vst.msk [vmem:[#allocation2 + $0x1f0] sm:$0xf] %vm290, %v2713
        %2795 = vst.msk [vmem:[#allocation2 + $0x204] sm:$0xf] %vm290, %v2716
        %2796 = vst.msk [vmem:[#allocation2 + $0x218] sm:$0xf] %vm290, %v2720
        %2797 = vst.msk [vmem:[#allocation2 + $0x22c] sm:$0xf] %vm290, %v2723
        %2798 = vst.msk [vmem:[#allocation2 + $0x240] sm:$0xf] %vm290, %v2727
        %2799 = vst.msk [vmem:[#allocation2 + $0x254] sm:$0xf] %vm290, %v2730
        %2800 = vst.msk [vmem:[#allocation2 + $0x268] sm:$0xf] %vm290, %v2734
        %2801 = vst.msk [vmem:[#allocation2 + $0x27c] sm:$0xf] %vm290, %v2737
        %v2802 = vld [vmem:[#allocation2] sm:$0xff]
        %v2803 = vld [vmem:[#allocation2 + $0x8] sm:$0xff]
        %v2804 = vld [vmem:[#allocation2 + $0x10] sm:$0xf]
        %v2805 = vld [vmem:[#allocation2 + $0x14] sm:$0xff]
        %v2806 = vld [vmem:[#allocation2 + $0x1c] sm:$0xff]
        %v2807 = vld [vmem:[#allocation2 + $0x24] sm:$0xf]
        %v2808 = vld [vmem:[#allocation2 + $0x28] sm:$0xff]
        %v2809 = vld [vmem:[#allocation2 + $0x30] sm:$0xff]
        %v2810 = vld [vmem:[#allocation2 + $0x38] sm:$0xf]
        %v2811 = vld [vmem:[#allocation2 + $0x3c] sm:$0xff]
        %v2812 = vld [vmem:[#allocation2 + $0x44] sm:$0xff]
        %v2813 = vld [vmem:[#allocation2 + $0x4c] sm:$0xf]
        %v2814 = vld [vmem:[#allocation2 + $0x50] sm:$0xff]
        %v2815 = vld [vmem:[#allocation2 + $0x58] sm:$0xff]
        %v2816 = vld [vmem:[#allocation2 + $0x60] sm:$0xf]
        %v2817 = vld [vmem:[#allocation2 + $0x64] sm:$0xff]
        %v2818 = vld [vmem:[#allocation2 + $0x6c] sm:$0xff]
        %v2819 = vld [vmem:[#allocation2 + $0x74] sm:$0xf]
        %v2820 = vld [vmem:[#allocation2 + $0x78] sm:$0xff]
        %v2821 = vld [vmem:[#allocation2 + $0x80] sm:$0xff]
        %v2822 = vld [vmem:[#allocation2 + $0x88] sm:$0xf]
        %v2823 = vld [vmem:[#allocation2 + $0x8c] sm:$0xff]
        %v2824 = vld [vmem:[#allocation2 + $0x94] sm:$0xff]
        %v2825 = vld [vmem:[#allocation2 + $0x9c] sm:$0xf]
        %v2826 = vld [vmem:[#allocation2 + $0xa0] sm:$0xff]
        %v2827 = vld [vmem:[#allocation2 + $0xa8] sm:$0xff]
        %v2828 = vld [vmem:[#allocation2 + $0xb0] sm:$0xf]
        %v2829 = vld [vmem:[#allocation2 + $0xb4] sm:$0xff]
        %v2830 = vld [vmem:[#allocation2 + $0xbc] sm:$0xff]
        %v2831 = vld [vmem:[#allocation2 + $0xc4] sm:$0xf]
        %v2832 = vld [vmem:[#allocation2 + $0xc8] sm:$0xff]
        %v2833 = vld [vmem:[#allocation2 + $0xd0] sm:$0xff]
        %v2834 = vld [vmem:[#allocation2 + $0xd8] sm:$0xf]
        %v2835 = vld [vmem:[#allocation2 + $0xdc] sm:$0xff]
        %v2836 = vld [vmem:[#allocation2 + $0xe4] sm:$0xff]
        %v2837 = vld [vmem:[#allocation2 + $0xec] sm:$0xf]
        %v2838 = vld [vmem:[#allocation2 + $0xf0] sm:$0xff]
        %v2839 = vld [vmem:[#allocation2 + $0xf8] sm:$0xff]
        %v2840 = vld [vmem:[#allocation2 + $0x100] sm:$0xf]
        %v2841 = vld [vmem:[#allocation2 + $0x104] sm:$0xff]
        %v2842 = vld [vmem:[#allocation2 + $0x10c] sm:$0xff]
        %v2843 = vld [vmem:[#allocation2 + $0x114] sm:$0xf]
        %v2844 = vld [vmem:[#allocation2 + $0x118] sm:$0xff]
        %v2845 = vld [vmem:[#allocation2 + $0x120] sm:$0xff]
        %v2846 = vld [vmem:[#allocation2 + $0x128] sm:$0xf]
        %v2847 = vld [vmem:[#allocation2 + $0x12c] sm:$0xff]
        %v2848 = vld [vmem:[#allocation2 + $0x134] sm:$0xff]
        %v2849 = vld [vmem:[#allocation2 + $0x13c] sm:$0xf]
        %v2850 = vld [vmem:[#allocation2 + $0x140] sm:$0xff]
        %v2851 = vld [vmem:[#allocation2 + $0x148] sm:$0xff]
        %v2852 = vld [vmem:[#allocation2 + $0x150] sm:$0xf]
        %v2853 = vld [vmem:[#allocation2 + $0x154] sm:$0xff]
        %v2854 = vld [vmem:[#allocation2 + $0x15c] sm:$0xff]
        %v2855 = vld [vmem:[#allocation2 + $0x164] sm:$0xf]
        %v2856 = vld [vmem:[#allocation2 + $0x168] sm:$0xff]
        %v2857 = vld [vmem:[#allocation2 + $0x170] sm:$0xff]
        %v2858 = vld [vmem:[#allocation2 + $0x178] sm:$0xf]
        %v2859 = vld [vmem:[#allocation2 + $0x17c] sm:$0xff]
        %v2860 = vld [vmem:[#allocation2 + $0x184] sm:$0xff]
        %v2861 = vld [vmem:[#allocation2 + $0x18c] sm:$0xf]
        %v2862 = vld [vmem:[#allocation2 + $0x190] sm:$0xff]
        %v2863 = vld [vmem:[#allocation2 + $0x198] sm:$0xff]
        %v2864 = vld [vmem:[#allocation2 + $0x1a0] sm:$0xf]
        %v2865 = vld [vmem:[#allocation2 + $0x1a4] sm:$0xff]
        %v2866 = vld [vmem:[#allocation2 + $0x1ac] sm:$0xff]
        %v2867 = vld [vmem:[#allocation2 + $0x1b4] sm:$0xf]
        %v2868 = vld [vmem:[#allocation2 + $0x1b8] sm:$0xff]
        %v2869 = vld [vmem:[#allocation2 + $0x1c0] sm:$0xff]
        %v2870 = vld [vmem:[#allocation2 + $0x1c8] sm:$0xf]
        %v2871 = vld [vmem:[#allocation2 + $0x1cc] sm:$0xff]
        %v2872 = vld [vmem:[#allocation2 + $0x1d4] sm:$0xff]
        %v2873 = vld [vmem:[#allocation2 + $0x1dc] sm:$0xf]
        %v2874 = vld [vmem:[#allocation2 + $0x1e0] sm:$0xff]
        %v2875 = vld [vmem:[#allocation2 + $0x1e8] sm:$0xff]
        %v2876 = vld [vmem:[#allocation2 + $0x1f0] sm:$0xf]
        %v2877 = vld [vmem:[#allocation2 + $0x1f4] sm:$0xff]
        %v2878 = vld [vmem:[#allocation2 + $0x1fc] sm:$0xff]
        %v2879 = vld [vmem:[#allocation2 + $0x204] sm:$0xf]
        %v2880 = vld [vmem:[#allocation2 + $0x208] sm:$0xff]
        %v2881 = vld [vmem:[#allocation2 + $0x210] sm:$0xff]
        %v2882 = vld [vmem:[#allocation2 + $0x218] sm:$0xf]
        %v2883 = vld [vmem:[#allocation2 + $0x21c] sm:$0xff]
        %v2884 = vld [vmem:[#allocation2 + $0x224] sm:$0xff]
        %v2885 = vld [vmem:[#allocation2 + $0x22c] sm:$0xf]
        %v2886 = vld [vmem:[#allocation2 + $0x230] sm:$0xff]
        %v2887 = vld [vmem:[#allocation2 + $0x238] sm:$0xff]
        %v2888 = vld [vmem:[#allocation2 + $0x240] sm:$0xf]
        %v2889 = vld [vmem:[#allocation2 + $0x244] sm:$0xff]
        %v2890 = vld [vmem:[#allocation2 + $0x24c] sm:$0xff]
        %v2891 = vld [vmem:[#allocation2 + $0x254] sm:$0xf]
        %v2892 = vld [vmem:[#allocation2 + $0x258] sm:$0xff]
        %v2893 = vld [vmem:[#allocation2 + $0x260] sm:$0xff]
        %v2894 = vld [vmem:[#allocation2 + $0x268] sm:$0xf]
        %v2895 = vld [vmem:[#allocation2 + $0x26c] sm:$0xff]
        %v2896 = vld [vmem:[#allocation2 + $0x274] sm:$0xff]
        %v2897 = vld [vmem:[#allocation2 + $0x27c] sm:$0xf]
        %v2898 = vld [vmem:[%s1] sm:$0xff]
        %v2899 = vld [vmem:[%s1 + $0x8] sm:$0xff]
        %v2900 = vld [vmem:[%s1 + $0x10] sm:$0xff]
        %v2901 = vld [vmem:[%s1 + $0x18] sm:$0xff]
        %v2902 = vld [vmem:[%s1 + $0x20] sm:$0xff]
        %v2903 = vld [vmem:[%s1 + $0x28] sm:$0xff]
        %v2904 = vld [vmem:[%s1 + $0x30] sm:$0xff]
        %v2905 = vld [vmem:[%s1 + $0x38] sm:$0xff]
        %v2906 = vld [vmem:[%s1 + $0x40] sm:$0xff]
        %v2907 = vld [vmem:[%s1 + $0x48] sm:$0xff]
        %v2908 = vld [vmem:[%s1 + $0x50] sm:$0xff]
        %v2909 = vld [vmem:[%s1 + $0x58] sm:$0xff]
        %v2910 = vld [vmem:[%s1 + $0x60] sm:$0xff]
        %v2911 = vld [vmem:[%s1 + $0x68] sm:$0xff]
        %v2912 = vld [vmem:[%s1 + $0x70] sm:$0xff]
        %v2913 = vld [vmem:[%s1 + $0x78] sm:$0xff]
        %v2914 = vld [vmem:[%s1 + $0x80] sm:$0xff]
        %v2915 = vld [vmem:[%s1 + $0x88] sm:$0xff]
        %v2916 = vld [vmem:[%s1 + $0x90] sm:$0xff]
        %v2917 = vld [vmem:[%s1 + $0x98] sm:$0xff]
        %v2918 = vld [vmem:[%s1 + $0xa0] sm:$0xff]
        %v2919 = vld [vmem:[%s1 + $0xa8] sm:$0xff]
        %v2920 = vld [vmem:[%s1 + $0xb0] sm:$0xff]
        %v2921 = vld [vmem:[%s1 + $0xb8] sm:$0xff]
        %v2922 = vld [vmem:[%s1 + $0xc0] sm:$0xff]
        %v2923 = vld [vmem:[%s1 + $0xc8] sm:$0xff]
        %v2924 = vld [vmem:[%s1 + $0xd0] sm:$0xff]
        %v2925 = vld [vmem:[%s1 + $0xd8] sm:$0xff]
        %v2926 = vld [vmem:[%s1 + $0xe0] sm:$0xff]
        %v2927 = vld [vmem:[%s1 + $0xe8] sm:$0xff]
        %v2928 = vld [vmem:[%s1 + $0xf0] sm:$0xff]
        %v2929 = vld [vmem:[%s1 + $0xf8] sm:$0xff]
        %v2930 = vld [vmem:[%s1 + $0x100] sm:$0xff]
        %v2931 = vld [vmem:[%s1 + $0x108] sm:$0xff]
        %v2932 = vld [vmem:[%s1 + $0x110] sm:$0xff]
        %v2933 = vld [vmem:[%s1 + $0x118] sm:$0xff]
        %v2934 = vld [vmem:[%s1 + $0x120] sm:$0xff]
        %v2935 = vld [vmem:[%s1 + $0x128] sm:$0xff]
        %v2936 = vld [vmem:[%s1 + $0x130] sm:$0xff]
        %v2937 = vld [vmem:[%s1 + $0x138] sm:$0xff]
        %v2938 = vld [vmem:[%s1 + $0x140] sm:$0xff]
        %v2939 = vld [vmem:[%s1 + $0x148] sm:$0xff]
        %v2940 = vld [vmem:[%s1 + $0x150] sm:$0xff]
        %v2941 = vld [vmem:[%s1 + $0x158] sm:$0xff]
        %v2942 = vld [vmem:[%s1 + $0x160] sm:$0xff]
        %v2943 = vld [vmem:[%s1 + $0x168] sm:$0xff]
        %v2944 = vld [vmem:[%s1 + $0x170] sm:$0xff]
        %v2945 = vld [vmem:[%s1 + $0x178] sm:$0xff]
        %v2946 = vld [vmem:[%s1 + $0x180] sm:$0xff]
        %v2947 = vld [vmem:[%s1 + $0x188] sm:$0xff]
        %v2948 = vld [vmem:[%s1 + $0x190] sm:$0xff]
        %v2949 = vld [vmem:[%s1 + $0x198] sm:$0xff]
        %v2950 = vld [vmem:[%s1 + $0x1a0] sm:$0xff]
        %v2951 = vld [vmem:[%s1 + $0x1a8] sm:$0xff]
        %v2952 = vld [vmem:[%s1 + $0x1b0] sm:$0xff]
        %v2953 = vld [vmem:[%s1 + $0x1b8] sm:$0xff]
        %v2954 = vld [vmem:[%s1 + $0x1c0] sm:$0xff]
        %v2955 = vld [vmem:[%s1 + $0x1c8] sm:$0xff]
        %v2956 = vld [vmem:[%s1 + $0x1d0] sm:$0xff]
        %v2957 = vld [vmem:[%s1 + $0x1d8] sm:$0xff]
        %v2958 = vld [vmem:[%s1 + $0x1e0] sm:$0xff]
        %v2959 = vld [vmem:[%s1 + $0x1e8] sm:$0xff]
        %v2960 = vld [vmem:[%s1 + $0x1f0] sm:$0xff]
        %v2961 = vld [vmem:[%s1 + $0x1f8] sm:$0xff]
        %v2962 = vld [vmem:[%s1 + $0x200] sm:$0xff]
        %v2963 = vld [vmem:[%s1 + $0x208] sm:$0xff]
        %v2964 = vld [vmem:[%s1 + $0x210] sm:$0xff]
        %v2965 = vld [vmem:[%s1 + $0x218] sm:$0xff]
        %v2966 = vld [vmem:[%s1 + $0x220] sm:$0xff]
        %v2967 = vld [vmem:[%s1 + $0x228] sm:$0xff]
        %v2968 = vld [vmem:[%s1 + $0x230] sm:$0xff]
        %v2969 = vld [vmem:[%s1 + $0x238] sm:$0xff]
        %v2970 = vld [vmem:[#allocation4] sm:$0x3]
        %v2972 = vlaneseq
        %v2973 = vshrl.u32 %v2972, 7
        %v2974 = vsub.s32 0, %v2973
        %v2975 = vrot.slane %v2970, %v2974
        %v2976 = vlaneseq
        %v2977 = vshrl.u32 %v2976, 7
        %v2978 = vsub.s32 1, %v2977
        %v2979 = vrot.slane %v2970, %v2978
        %v3078 = vunpack.c.l.b16 %v2802
        %v3079 = vunpack.c.h.b16 %v2802
        %v3080 = vunpack.c.l.b16 %v2803
        %v3081 = vunpack.c.h.b16 %v2803
        %v3082 = vunpack.c.l.b16 %v2804
        %v3083 = vunpack.c.l.b16 %v2805
        %v3084 = vunpack.c.h.b16 %v2805
        %v3085 = vunpack.c.l.b16 %v2806
        %v3086 = vunpack.c.h.b16 %v2806
        %v3087 = vunpack.c.l.b16 %v2807
        %v3088 = vunpack.c.l.b16 %v2808
        %v3089 = vunpack.c.h.b16 %v2808
        %v3090 = vunpack.c.l.b16 %v2809
        %v3091 = vunpack.c.h.b16 %v2809
        %v3092 = vunpack.c.l.b16 %v2810
        %v3093 = vunpack.c.l.b16 %v2811
        %v3094 = vunpack.c.h.b16 %v2811
        %v3095 = vunpack.c.l.b16 %v2812
        %v3096 = vunpack.c.h.b16 %v2812
        %v3097 = vunpack.c.l.b16 %v2813
        %v3098 = vunpack.c.l.b16 %v2814
        %v3099 = vunpack.c.h.b16 %v2814
        %v3100 = vunpack.c.l.b16 %v2815
        %v3101 = vunpack.c.h.b16 %v2815
        %v3102 = vunpack.c.l.b16 %v2816
        %v3103 = vunpack.c.l.b16 %v2817
        %v3104 = vunpack.c.h.b16 %v2817
        %v3105 = vunpack.c.l.b16 %v2818
        %v3106 = vunpack.c.h.b16 %v2818
        %v3107 = vunpack.c.l.b16 %v2819
        %v3108 = vunpack.c.l.b16 %v2820
        %v3109 = vunpack.c.h.b16 %v2820
        %v3110 = vunpack.c.l.b16 %v2821
        %v3111 = vunpack.c.h.b16 %v2821
        %v3112 = vunpack.c.l.b16 %v2822
        %v3113 = vunpack.c.l.b16 %v2823
        %v3114 = vunpack.c.h.b16 %v2823
        %v3115 = vunpack.c.l.b16 %v2824
        %v3116 = vunpack.c.h.b16 %v2824
        %v3117 = vunpack.c.l.b16 %v2825
        %v3118 = vunpack.c.l.b16 %v2826
        %v3119 = vunpack.c.h.b16 %v2826
        %v3120 = vunpack.c.l.b16 %v2827
        %v3121 = vunpack.c.h.b16 %v2827
        %v3122 = vunpack.c.l.b16 %v2828
        %v3123 = vunpack.c.l.b16 %v2829
        %v3124 = vunpack.c.h.b16 %v2829
        %v3125 = vunpack.c.l.b16 %v2830
        %v3126 = vunpack.c.h.b16 %v2830
        %v3127 = vunpack.c.l.b16 %v2831
        %v3128 = vunpack.c.l.b16 %v2832
        %v3129 = vunpack.c.h.b16 %v2832
        %v3130 = vunpack.c.l.b16 %v2833
        %v3131 = vunpack.c.h.b16 %v2833
        %v3132 = vunpack.c.l.b16 %v2834
        %v3133 = vunpack.c.l.b16 %v2835
        %v3134 = vunpack.c.h.b16 %v2835
        %v3135 = vunpack.c.l.b16 %v2836
        %v3136 = vunpack.c.h.b16 %v2836
        %v3137 = vunpack.c.l.b16 %v2837
        %v3138 = vunpack.c.l.b16 %v2838
        %v3139 = vunpack.c.h.b16 %v2838
        %v3140 = vunpack.c.l.b16 %v2839
        %v3141 = vunpack.c.h.b16 %v2839
        %v3142 = vunpack.c.l.b16 %v2840
        %v3143 = vunpack.c.l.b16 %v2841
        %v3144 = vunpack.c.h.b16 %v2841
        %v3145 = vunpack.c.l.b16 %v2842
        %v3146 = vunpack.c.h.b16 %v2842
        %v3147 = vunpack.c.l.b16 %v2843
        %v3148 = vunpack.c.l.b16 %v2844
        %v3149 = vunpack.c.h.b16 %v2844
        %v3150 = vunpack.c.l.b16 %v2845
        %v3151 = vunpack.c.h.b16 %v2845
        %v3152 = vunpack.c.l.b16 %v2846
        %v3153 = vunpack.c.l.b16 %v2847
        %v3154 = vunpack.c.h.b16 %v2847
        %v3155 = vunpack.c.l.b16 %v2848
        %v3156 = vunpack.c.h.b16 %v2848
        %v3157 = vunpack.c.l.b16 %v2849
        %v3158 = vunpack.c.l.b16 %v2850
        %v3159 = vunpack.c.h.b16 %v2850
        %v3160 = vunpack.c.l.b16 %v2851
        %v3161 = vunpack.c.h.b16 %v2851
        %v3162 = vunpack.c.l.b16 %v2852
        %v3163 = vunpack.c.l.b16 %v2853
        %v3164 = vunpack.c.h.b16 %v2853
        %v3165 = vunpack.c.l.b16 %v2854
        %v3166 = vunpack.c.h.b16 %v2854
        %v3167 = vunpack.c.l.b16 %v2855
        %v3168 = vunpack.c.l.b16 %v2856
        %v3169 = vunpack.c.h.b16 %v2856
        %v3170 = vunpack.c.l.b16 %v2857
        %v3171 = vunpack.c.h.b16 %v2857
        %v3172 = vunpack.c.l.b16 %v2858
        %v3173 = vunpack.c.l.b16 %v2859
        %v3174 = vunpack.c.h.b16 %v2859
        %v3175 = vunpack.c.l.b16 %v2860
        %v3176 = vunpack.c.h.b16 %v2860
        %v3177 = vunpack.c.l.b16 %v2861
        %v3178 = vunpack.c.l.b16 %v2862
        %v3179 = vunpack.c.h.b16 %v2862
        %v3180 = vunpack.c.l.b16 %v2863
        %v3181 = vunpack.c.h.b16 %v2863
        %v3182 = vunpack.c.l.b16 %v2864
        %v3183 = vunpack.c.l.b16 %v2865
        %v3184 = vunpack.c.h.b16 %v2865
        %v3185 = vunpack.c.l.b16 %v2866
        %v3186 = vunpack.c.h.b16 %v2866
        %v3187 = vunpack.c.l.b16 %v2867
        %v3188 = vunpack.c.l.b16 %v2868
        %v3189 = vunpack.c.h.b16 %v2868
        %v3190 = vunpack.c.l.b16 %v2869
        %v3191 = vunpack.c.h.b16 %v2869
        %v3192 = vunpack.c.l.b16 %v2870
        %v3193 = vunpack.c.l.b16 %v2871
        %v3194 = vunpack.c.h.b16 %v2871
        %v3195 = vunpack.c.l.b16 %v2872
        %v3196 = vunpack.c.h.b16 %v2872
        %v3197 = vunpack.c.l.b16 %v2873
        %v3198 = vunpack.c.l.b16 %v2874
        %v3199 = vunpack.c.h.b16 %v2874
        %v3200 = vunpack.c.l.b16 %v2875
        %v3201 = vunpack.c.h.b16 %v2875
        %v3202 = vunpack.c.l.b16 %v2876
        %v3203 = vunpack.c.l.b16 %v2877
        %v3204 = vunpack.c.h.b16 %v2877
        %v3205 = vunpack.c.l.b16 %v2878
        %v3206 = vunpack.c.h.b16 %v2878
        %v3207 = vunpack.c.l.b16 %v2879
        %v3208 = vunpack.c.l.b16 %v2880
        %v3209 = vunpack.c.h.b16 %v2880
        %v3210 = vunpack.c.l.b16 %v2881
        %v3211 = vunpack.c.h.b16 %v2881
        %v3212 = vunpack.c.l.b16 %v2882
        %v3213 = vunpack.c.l.b16 %v2883
        %v3214 = vunpack.c.h.b16 %v2883
        %v3215 = vunpack.c.l.b16 %v2884
        %v3216 = vunpack.c.h.b16 %v2884
        %v3217 = vunpack.c.l.b16 %v2885
        %v3218 = vunpack.c.l.b16 %v2886
        %v3219 = vunpack.c.h.b16 %v2886
        %v3220 = vunpack.c.l.b16 %v2887
        %v3221 = vunpack.c.h.b16 %v2887
        %v3222 = vunpack.c.l.b16 %v2888
        %v3223 = vunpack.c.l.b16 %v2889
        %v3224 = vunpack.c.h.b16 %v2889
        %v3225 = vunpack.c.l.b16 %v2890
        %v3226 = vunpack.c.h.b16 %v2890
        %v3227 = vunpack.c.l.b16 %v2891
        %v3228 = vunpack.c.l.b16 %v2892
        %v3229 = vunpack.c.h.b16 %v2892
        %v3230 = vunpack.c.l.b16 %v2893
        %v3231 = vunpack.c.h.b16 %v2893
        %v3232 = vunpack.c.l.b16 %v2894
        %v3233 = vunpack.c.l.b16 %v2895
        %v3234 = vunpack.c.h.b16 %v2895
        %v3235 = vunpack.c.l.b16 %v2896
        %v3236 = vunpack.c.h.b16 %v2896
        %v3237 = vunpack.c.l.b16 %v2897
        %v3238 = vpack.c.b16 %v3083, %v3078
        %v3239 = vpack.c.b16 %v3084, %v3079
        %v3240 = vpack.c.b16 %v3085, %v3080
        %v3241 = vpack.c.b16 %v3086, %v3081
        %v3242 = vpack.c.b16 %v3087, %v3082
        %v3243 = vpack.c.b16 %v3093, %v3088
        %v3244 = vpack.c.b16 %v3094, %v3089
        %v3245 = vpack.c.b16 %v3095, %v3090
        %v3246 = vpack.c.b16 %v3096, %v3091
        %v3247 = vpack.c.b16 %v3097, %v3092
        %v3248 = vpack.c.b16 %v3103, %v3098
        %v3249 = vpack.c.b16 %v3104, %v3099
        %v3250 = vpack.c.b16 %v3105, %v3100
        %v3251 = vpack.c.b16 %v3106, %v3101
        %v3252 = vpack.c.b16 %v3107, %v3102
        %v3253 = vpack.c.b16 %v3113, %v3108
        %v3254 = vpack.c.b16 %v3114, %v3109
        %v3255 = vpack.c.b16 %v3115, %v3110
        %v3256 = vpack.c.b16 %v3116, %v3111
        %v3257 = vpack.c.b16 %v3117, %v3112
        %v3258 = vpack.c.b16 %v3123, %v3118
        %v3259 = vpack.c.b16 %v3124, %v3119
        %v3260 = vpack.c.b16 %v3125, %v3120
        %v3261 = vpack.c.b16 %v3126, %v3121
        %v3262 = vpack.c.b16 %v3127, %v3122
        %v3263 = vpack.c.b16 %v3133, %v3128
        %v3264 = vpack.c.b16 %v3134, %v3129
        %v3265 = vpack.c.b16 %v3135, %v3130
        %v3266 = vpack.c.b16 %v3136, %v3131
        %v3267 = vpack.c.b16 %v3137, %v3132
        %v3268 = vpack.c.b16 %v3143, %v3138
        %v3269 = vpack.c.b16 %v3144, %v3139
        %v3270 = vpack.c.b16 %v3145, %v3140
        %v3271 = vpack.c.b16 %v3146, %v3141
        %v3272 = vpack.c.b16 %v3147, %v3142
        %v3273 = vpack.c.b16 %v3153, %v3148
        %v3274 = vpack.c.b16 %v3154, %v3149
        %v3275 = vpack.c.b16 %v3155, %v3150
        %v3276 = vpack.c.b16 %v3156, %v3151
        %v3277 = vpack.c.b16 %v3157, %v3152
        %v3278 = vpack.c.b16 %v3163, %v3158
        %v3279 = vpack.c.b16 %v3164, %v3159
        %v3280 = vpack.c.b16 %v3165, %v3160
        %v3281 = vpack.c.b16 %v3166, %v3161
        %v3282 = vpack.c.b16 %v3167, %v3162
        %v3283 = vpack.c.b16 %v3173, %v3168
        %v3284 = vpack.c.b16 %v3174, %v3169
        %v3285 = vpack.c.b16 %v3175, %v3170
        %v3286 = vpack.c.b16 %v3176, %v3171
        %v3287 = vpack.c.b16 %v3177, %v3172
        %v3288 = vpack.c.b16 %v3183, %v3178
        %v3289 = vpack.c.b16 %v3184, %v3179
        %v3290 = vpack.c.b16 %v3185, %v3180
        %v3291 = vpack.c.b16 %v3186, %v3181
        %v3292 = vpack.c.b16 %v3187, %v3182
        %v3293 = vpack.c.b16 %v3193, %v3188
        %v3294 = vpack.c.b16 %v3194, %v3189
        %v3295 = vpack.c.b16 %v3195, %v3190
        %v3296 = vpack.c.b16 %v3196, %v3191
        %v3297 = vpack.c.b16 %v3197, %v3192
        %v3298 = vpack.c.b16 %v3203, %v3198
        %v3299 = vpack.c.b16 %v3204, %v3199
        %v3300 = vpack.c.b16 %v3205, %v3200
        %v3301 = vpack.c.b16 %v3206, %v3201
        %v3302 = vpack.c.b16 %v3207, %v3202
        %v3303 = vpack.c.b16 %v3213, %v3208
        %v3304 = vpack.c.b16 %v3214, %v3209
        %v3305 = vpack.c.b16 %v3215, %v3210
        %v3306 = vpack.c.b16 %v3216, %v3211
        %v3307 = vpack.c.b16 %v3217, %v3212
        %v3308 = vpack.c.b16 %v3223, %v3218
        %v3309 = vpack.c.b16 %v3224, %v3219
        %v3310 = vpack.c.b16 %v3225, %v3220
        %v3311 = vpack.c.b16 %v3226, %v3221
        %v3312 = vpack.c.b16 %v3227, %v3222
        %v3313 = vpack.c.b16 %v3233, %v3228
        %v3314 = vpack.c.b16 %v3234, %v3229
        %v3315 = vpack.c.b16 %v3235, %v3230
        %v3316 = vpack.c.b16 %v3236, %v3231
        %v3317 = vpack.c.b16 %v3237, %v3232
        %v3454 = vunpack.c.l.b16 %v2898
        %v3455 = vunpack.c.h.b16 %v2898
        %v3456 = vunpack.c.l.b16 %v2899
        %v3457 = vunpack.c.h.b16 %v2899
        %v3458 = vunpack.c.l.b16 %v2900
        %v3459 = vunpack.c.h.b16 %v2900
        %v3460 = vunpack.c.l.b16 %v2901
        %v3461 = vunpack.c.h.b16 %v2901
        %v3462 = vunpack.c.l.b16 %v2902
        %v3463 = vunpack.c.h.b16 %v2902
        %v3464 = vunpack.c.l.b16 %v2903
        %v3465 = vunpack.c.h.b16 %v2903
        %v3466 = vunpack.c.l.b16 %v2904
        %v3467 = vunpack.c.h.b16 %v2904
        %v3468 = vunpack.c.l.b16 %v2905
        %v3469 = vunpack.c.h.b16 %v2905
        %v3470 = vunpack.c.l.b16 %v2906
        %v3471 = vunpack.c.h.b16 %v2906
        %v3472 = vunpack.c.l.b16 %v2907
        %v3473 = vunpack.c.h.b16 %v2907
        %v3474 = vunpack.c.l.b16 %v2908
        %v3475 = vunpack.c.h.b16 %v2908
        %v3476 = vunpack.c.l.b16 %v2909
        %v3477 = vunpack.c.h.b16 %v2909
        %v3478 = vunpack.c.l.b16 %v2910
        %v3479 = vunpack.c.h.b16 %v2910
        %v3480 = vunpack.c.l.b16 %v2911
        %v3481 = vunpack.c.h.b16 %v2911
        %v3482 = vunpack.c.l.b16 %v2912
        %v3483 = vunpack.c.h.b16 %v2912
        %v3484 = vunpack.c.l.b16 %v2913
        %v3485 = vunpack.c.h.b16 %v2913
        %v3486 = vunpack.c.l.b16 %v2914
        %v3487 = vunpack.c.h.b16 %v2914
        %v3488 = vunpack.c.l.b16 %v2915
        %v3489 = vunpack.c.h.b16 %v2915
        %v3490 = vunpack.c.l.b16 %v2916
        %v3491 = vunpack.c.h.b16 %v2916
        %v3492 = vunpack.c.l.b16 %v2917
        %v3493 = vunpack.c.h.b16 %v2917
        %v3494 = vunpack.c.l.b16 %v2918
        %v3495 = vunpack.c.h.b16 %v2918
        %v3496 = vunpack.c.l.b16 %v2919
        %v3497 = vunpack.c.h.b16 %v2919
        %v3498 = vunpack.c.l.b16 %v2920
        %v3499 = vunpack.c.h.b16 %v2920
        %v3500 = vunpack.c.l.b16 %v2921
        %v3501 = vunpack.c.h.b16 %v2921
        %v3502 = vunpack.c.l.b16 %v2922
        %v3503 = vunpack.c.h.b16 %v2922
        %v3504 = vunpack.c.l.b16 %v2923
        %v3505 = vunpack.c.h.b16 %v2923
        %v3506 = vunpack.c.l.b16 %v2924
        %v3507 = vunpack.c.h.b16 %v2924
        %v3508 = vunpack.c.l.b16 %v2925
        %v3509 = vunpack.c.h.b16 %v2925
        %v3510 = vunpack.c.l.b16 %v2926
        %v3511 = vunpack.c.h.b16 %v2926
        %v3512 = vunpack.c.l.b16 %v2927
        %v3513 = vunpack.c.h.b16 %v2927
        %v3514 = vunpack.c.l.b16 %v2928
        %v3515 = vunpack.c.h.b16 %v2928
        %v3516 = vunpack.c.l.b16 %v2929
        %v3517 = vunpack.c.h.b16 %v2929
        %v3518 = vunpack.c.l.b16 %v2930
        %v3519 = vunpack.c.h.b16 %v2930
        %v3520 = vunpack.c.l.b16 %v2931
        %v3521 = vunpack.c.h.b16 %v2931
        %v3522 = vunpack.c.l.b16 %v2932
        %v3523 = vunpack.c.h.b16 %v2932
        %v3524 = vunpack.c.l.b16 %v2933
        %v3525 = vunpack.c.h.b16 %v2933
        %v3526 = vunpack.c.l.b16 %v2934
        %v3527 = vunpack.c.h.b16 %v2934
        %v3528 = vunpack.c.l.b16 %v2935
        %v3529 = vunpack.c.h.b16 %v2935
        %v3530 = vunpack.c.l.b16 %v2936
        %v3531 = vunpack.c.h.b16 %v2936
        %v3532 = vunpack.c.l.b16 %v2937
        %v3533 = vunpack.c.h.b16 %v2937
        %v3534 = vunpack.c.l.b16 %v2938
        %v3535 = vunpack.c.h.b16 %v2938
        %v3536 = vunpack.c.l.b16 %v2939
        %v3537 = vunpack.c.h.b16 %v2939
        %v3538 = vunpack.c.l.b16 %v2940
        %v3539 = vunpack.c.h.b16 %v2940
        %v3540 = vunpack.c.l.b16 %v2941
        %v3541 = vunpack.c.h.b16 %v2941
        %v3542 = vunpack.c.l.b16 %v2942
        %v3543 = vunpack.c.h.b16 %v2942
        %v3544 = vunpack.c.l.b16 %v2943
        %v3545 = vunpack.c.h.b16 %v2943
        %v3546 = vunpack.c.l.b16 %v2944
        %v3547 = vunpack.c.h.b16 %v2944
        %v3548 = vunpack.c.l.b16 %v2945
        %v3549 = vunpack.c.h.b16 %v2945
        %v3550 = vunpack.c.l.b16 %v2946
        %v3551 = vunpack.c.h.b16 %v2946
        %v3552 = vunpack.c.l.b16 %v2947
        %v3553 = vunpack.c.h.b16 %v2947
        %v3554 = vunpack.c.l.b16 %v2948
        %v3555 = vunpack.c.h.b16 %v2948
        %v3556 = vunpack.c.l.b16 %v2949
        %v3557 = vunpack.c.h.b16 %v2949
        %v3558 = vunpack.c.l.b16 %v2950
        %v3559 = vunpack.c.h.b16 %v2950
        %v3560 = vunpack.c.l.b16 %v2951
        %v3561 = vunpack.c.h.b16 %v2951
        %v3562 = vunpack.c.l.b16 %v2952
        %v3563 = vunpack.c.h.b16 %v2952
        %v3564 = vunpack.c.l.b16 %v2953
        %v3565 = vunpack.c.h.b16 %v2953
        %v3566 = vunpack.c.l.b16 %v2954
        %v3567 = vunpack.c.h.b16 %v2954
        %v3568 = vunpack.c.l.b16 %v2955
        %v3569 = vunpack.c.h.b16 %v2955
        %v3570 = vunpack.c.l.b16 %v2956
        %v3571 = vunpack.c.h.b16 %v2956
        %v3572 = vunpack.c.l.b16 %v2957
        %v3573 = vunpack.c.h.b16 %v2957
        %v3574 = vunpack.c.l.b16 %v2958
        %v3575 = vunpack.c.h.b16 %v2958
        %v3576 = vunpack.c.l.b16 %v2959
        %v3577 = vunpack.c.h.b16 %v2959
        %v3578 = vunpack.c.l.b16 %v2960
        %v3579 = vunpack.c.h.b16 %v2960
        %v3580 = vunpack.c.l.b16 %v2961
        %v3581 = vunpack.c.h.b16 %v2961
        %v3582 = vunpack.c.l.b16 %v2962
        %v3583 = vunpack.c.h.b16 %v2962
        %v3584 = vunpack.c.l.b16 %v2963
        %v3585 = vunpack.c.h.b16 %v2963
        %v3586 = vunpack.c.l.b16 %v2964
        %v3587 = vunpack.c.h.b16 %v2964
        %v3588 = vunpack.c.l.b16 %v2965
        %v3589 = vunpack.c.h.b16 %v2965
        %v3590 = vunpack.c.l.b16 %v2966
        %v3591 = vunpack.c.h.b16 %v2966
        %v3592 = vunpack.c.l.b16 %v2967
        %v3593 = vunpack.c.h.b16 %v2967
        %v3594 = vunpack.c.l.b16 %v2968
        %v3595 = vunpack.c.h.b16 %v2968
        %v3596 = vunpack.c.l.b16 %v2969
        %v3597 = vunpack.c.h.b16 %v2969
        %v3598 = vpack.c.b16 %v3456, %v3454
        %v3599 = vpack.c.b16 %v3457, %v3455
        %v3600 = vpack.c.b16 %v3460, %v3458
        %v3601 = vpack.c.b16 %v3461, %v3459
        %v3602 = vpack.c.b16 %v3464, %v3462
        %v3603 = vpack.c.b16 %v3465, %v3463
        %v3604 = vpack.c.b16 %v3468, %v3466
        %v3605 = vpack.c.b16 %v3469, %v3467
        %v3606 = vpack.c.b16 %v3472, %v3470
        %v3607 = vpack.c.b16 %v3473, %v3471
        %v3608 = vpack.c.b16 %v3476, %v3474
        %v3609 = vpack.c.b16 %v3477, %v3475
        %v3610 = vpack.c.b16 %v3480, %v3478
        %v3611 = vpack.c.b16 %v3481, %v3479
        %v3612 = vpack.c.b16 %v3484, %v3482
        %v3613 = vpack.c.b16 %v3485, %v3483
        %v3614 = vpack.c.b16 %v3488, %v3486
        %v3615 = vpack.c.b16 %v3489, %v3487
        %v3616 = vpack.c.b16 %v3492, %v3490
        %v3617 = vpack.c.b16 %v3493, %v3491
        %v3618 = vpack.c.b16 %v3496, %v3494
        %v3619 = vpack.c.b16 %v3497, %v3495
        %v3620 = vpack.c.b16 %v3500, %v3498
        %v3621 = vpack.c.b16 %v3501, %v3499
        %v3622 = vpack.c.b16 %v3504, %v3502
        %v3623 = vpack.c.b16 %v3505, %v3503
        %v3624 = vpack.c.b16 %v3508, %v3506
        %v3625 = vpack.c.b16 %v3509, %v3507
        %v3626 = vpack.c.b16 %v3512, %v3510
        %v3627 = vpack.c.b16 %v3513, %v3511
        %v3628 = vpack.c.b16 %v3516, %v3514
        %v3629 = vpack.c.b16 %v3517, %v3515
        %v3630 = vpack.c.b16 %v3520, %v3518
        %v3631 = vpack.c.b16 %v3521, %v3519
        %v3632 = vpack.c.b16 %v3524, %v3522
        %v3633 = vpack.c.b16 %v3525, %v3523
        %v3634 = vpack.c.b16 %v3528, %v3526
        %v3635 = vpack.c.b16 %v3529, %v3527
        %v3636 = vpack.c.b16 %v3532, %v3530
        %v3637 = vpack.c.b16 %v3533, %v3531
        %v3638 = vpack.c.b16 %v3536, %v3534
        %v3639 = vpack.c.b16 %v3537, %v3535
        %v3640 = vpack.c.b16 %v3540, %v3538
        %v3641 = vpack.c.b16 %v3541, %v3539
        %v3642 = vpack.c.b16 %v3544, %v3542
        %v3643 = vpack.c.b16 %v3545, %v3543
        %v3644 = vpack.c.b16 %v3548, %v3546
        %v3645 = vpack.c.b16 %v3549, %v3547
        %v3646 = vpack.c.b16 %v3552, %v3550
        %v3647 = vpack.c.b16 %v3553, %v3551
        %v3648 = vpack.c.b16 %v3556, %v3554
        %v3649 = vpack.c.b16 %v3557, %v3555
        %v3650 = vpack.c.b16 %v3560, %v3558
        %v3651 = vpack.c.b16 %v3561, %v3559
        %v3652 = vpack.c.b16 %v3564, %v3562
        %v3653 = vpack.c.b16 %v3565, %v3563
        %v3654 = vpack.c.b16 %v3568, %v3566
        %v3655 = vpack.c.b16 %v3569, %v3567
        %v3656 = vpack.c.b16 %v3572, %v3570
        %v3657 = vpack.c.b16 %v3573, %v3571
        %v3658 = vpack.c.b16 %v3576, %v3574
        %v3659 = vpack.c.b16 %v3577, %v3575
        %v3660 = vpack.c.b16 %v3580, %v3578
        %v3661 = vpack.c.b16 %v3581, %v3579
        %v3662 = vpack.c.b16 %v3584, %v3582
        %v3663 = vpack.c.b16 %v3585, %v3583
        %v3664 = vpack.c.b16 %v3588, %v3586
        %v3665 = vpack.c.b16 %v3589, %v3587
        %v3666 = vpack.c.b16 %v3592, %v3590
        %v3667 = vpack.c.b16 %v3593, %v3591
        %v3668 = vpack.c.b16 %v3596, %v3594
        %v3669 = vpack.c.b16 %v3597, %v3595
        %vm3742 = vcmask 523264
        %v3744 = vsel %vm3742, %v3242, 0
        %v3747 = vsel %vm3742, %v3247, 0
        %v3750 = vsel %vm3742, %v3252, 0
        %v3753 = vsel %vm3742, %v3257, 0
        %v3756 = vsel %vm3742, %v3262, 0
        %v3759 = vsel %vm3742, %v3267, 0
        %v3762 = vsel %vm3742, %v3272, 0
        %v3765 = vsel %vm3742, %v3277, 0
        %v3768 = vsel %vm3742, %v3282, 0
        %v3771 = vsel %vm3742, %v3287, 0
        %v3774 = vsel %vm3742, %v3292, 0
        %v3777 = vsel %vm3742, %v3297, 0
        %v3780 = vsel %vm3742, %v3302, 0
        %v3783 = vsel %vm3742, %v3307, 0
        %v3786 = vsel %vm3742, %v3312, 0
        %v3789 = vsel %vm3742, %v3317, 0
        %3791 = vmatprep.subr.bf16.mxu0 %v3613
        %3792 = vmatpush1.bf16.msra.mxu0 %v3612
        %3793 = vmatprep.subr.bf16.mxu0 %v3611
        %3794 = vmatpush1.bf16.msra.mxu0 %v3610
        %3795 = vmatprep.subr.bf16.mxu0 %v3609
        %3796 = vmatpush1.bf16.msra.mxu0 %v3608
        %3797 = vmatprep.subr.bf16.mxu0 %v3607
        %3798 = vmatpush1.bf16.msra.mxu0 %v3606
        %3799 = vmatprep.subr.bf16.mxu0 %v3605
        %3800 = vmatpush1.bf16.msra.mxu0 %v3604
        %3801 = vmatprep.subr.bf16.mxu0 %v3603
        %3802 = vmatpush1.bf16.msra.mxu0 %v3602
        %3803 = vmatprep.subr.bf16.mxu0 %v3601
        %3804 = vmatpush1.bf16.msra.mxu0 %v3600
        %3805 = vmatprep.subr.bf16.mxu0 %v3599
        %3806 = vmatpush1.bf16.msra.mxu0 %v3598
        %3807 = vmatprep.subr.bf16.mxu0 %v3629
        %3808 = vmatpush2.bf16.msra.mxu0 %v3628
        %3809 = vmatprep.subr.bf16.mxu0 %v3627
        %3810 = vmatpush2.bf16.msra.mxu0 %v3626
        %3811 = vmatprep.subr.bf16.mxu0 %v3625
        %3812 = vmatpush2.bf16.msra.mxu0 %v3624
        %3813 = vmatprep.subr.bf16.mxu0 %v3623
        %3814 = vmatpush2.bf16.msra.mxu0 %v3622
        %3815 = vmatprep.subr.bf16.mxu0 %v3621
        %3816 = vmatpush2.bf16.msra.mxu0 %v3620
        %3817 = vmatprep.subr.bf16.mxu0 %v3619
        %3818 = vmatpush2.bf16.msra.mxu0 %v3618
        %3819 = vmatprep.subr.bf16.mxu0 %v3617
        %3820 = vmatpush2.bf16.msra.mxu0 %v3616
        %3821 = vmatprep.subr.bf16.mxu0 %v3615
        %3822 = vmatpush2.bf16.msra.mxu0 %v3614
        %3823 = vmatprep.mubr.bf16.mxu0 %v3239
        %3824 = vmatmul.mubr.bf16.gmra.mxu0 %v3238
        %v3825 = vpop.f32.mrf.mxu0
        %v3826 = vadd.f32 %v2975, %v3825
        %v3827 = vpop.f32.mrf.mxu0
        %v3828 = vadd.f32 %v2979, %v3827
        %v3829 = vpop.f32.mrf.mxu0
        %v3830 = vadd.f32 %v2975, %v3829
        %v3831 = vpop.f32.mrf.mxu0
        %v3832 = vadd.f32 %v2979, %v3831
        %3833 = vmatprep.mubr.bf16.mxu0 %v3244
        %3834 = vmatmul.mubr.bf16.gmra.mxu0 %v3243
        %v3835 = vpop.f32.mrf.mxu0
        %v3836 = vadd.f32 %v2975, %v3835
        %v3837 = vpop.f32.mrf.mxu0
        %v3838 = vadd.f32 %v2979, %v3837
        %v3839 = vpop.f32.mrf.mxu0
        %v3840 = vadd.f32 %v2975, %v3839
        %v3841 = vpop.f32.mrf.mxu0
        %v3842 = vadd.f32 %v2979, %v3841
        %3843 = vmatprep.mubr.bf16.mxu0 %v3249
        %3844 = vmatmul.mubr.bf16.gmra.mxu0 %v3248
        %v3845 = vpop.f32.mrf.mxu0
        %v3846 = vadd.f32 %v2975, %v3845
        %v3847 = vpop.f32.mrf.mxu0
        %v3848 = vadd.f32 %v2979, %v3847
        %v3849 = vpop.f32.mrf.mxu0
        %v3850 = vadd.f32 %v2975, %v3849
        %v3851 = vpop.f32.mrf.mxu0
        %v3852 = vadd.f32 %v2979, %v3851
        %3853 = vmatprep.mubr.bf16.mxu0 %v3254
        %3854 = vmatmul.mubr.bf16.gmra.mxu0 %v3253
        %v3855 = vpop.f32.mrf.mxu0
        %v3856 = vadd.f32 %v2975, %v3855
        %v3857 = vpop.f32.mrf.mxu0
        %v3858 = vadd.f32 %v2979, %v3857
        %v3859 = vpop.f32.mrf.mxu0
        %v3860 = vadd.f32 %v2975, %v3859
        %v3861 = vpop.f32.mrf.mxu0
        %v3862 = vadd.f32 %v2979, %v3861
        %3863 = vmatprep.mubr.bf16.mxu0 %v3259
        %3864 = vmatmul.mubr.bf16.gmra.mxu0 %v3258
        %v3865 = vpop.f32.mrf.mxu0
        %v3866 = vadd.f32 %v2975, %v3865
        %v3867 = vpop.f32.mrf.mxu0
        %v3868 = vadd.f32 %v2979, %v3867
        %v3869 = vpop.f32.mrf.mxu0
        %v3870 = vadd.f32 %v2975, %v3869
        %v3871 = vpop.f32.mrf.mxu0
        %v3872 = vadd.f32 %v2979, %v3871
        %3873 = vmatprep.mubr.bf16.mxu0 %v3264
        %3874 = vmatmul.mubr.bf16.gmra.mxu0 %v3263
        %v3875 = vpop.f32.mrf.mxu0
        %v3876 = vadd.f32 %v2975, %v3875
        %v3877 = vpop.f32.mrf.mxu0
        %v3878 = vadd.f32 %v2979, %v3877
        %v3879 = vpop.f32.mrf.mxu0
        %v3880 = vadd.f32 %v2975, %v3879
        %v3881 = vpop.f32.mrf.mxu0
        %v3882 = vadd.f32 %v2979, %v3881
        %3883 = vmatprep.mubr.bf16.mxu0 %v3269
        %3884 = vmatmul.mubr.bf16.gmra.mxu0 %v3268
        %v3885 = vpop.f32.mrf.mxu0
        %v3886 = vadd.f32 %v2975, %v3885
        %v3887 = vpop.f32.mrf.mxu0
        %v3888 = vadd.f32 %v2979, %v3887
        %v3889 = vpop.f32.mrf.mxu0
        %v3890 = vadd.f32 %v2975, %v3889
        %v3891 = vpop.f32.mrf.mxu0
        %v3892 = vadd.f32 %v2979, %v3891
        %3893 = vmatprep.mubr.bf16.mxu0 %v3274
        %3894 = vmatmul.mubr.bf16.gmra.mxu0 %v3273
        %v3895 = vpop.f32.mrf.mxu0
        %v3896 = vadd.f32 %v2975, %v3895
        %v3897 = vpop.f32.mrf.mxu0
        %v3898 = vadd.f32 %v2979, %v3897
        %v3899 = vpop.f32.mrf.mxu0
        %v3900 = vadd.f32 %v2975, %v3899
        %v3901 = vpop.f32.mrf.mxu0
        %v3902 = vadd.f32 %v2979, %v3901
        %3903 = vmatprep.mubr.bf16.mxu0 %v3279
        %3904 = vmatmul.mubr.bf16.gmra.mxu0 %v3278
        %v3905 = vpop.f32.mrf.mxu0
        %v3906 = vadd.f32 %v2975, %v3905
        %v3907 = vpop.f32.mrf.mxu0
        %v3908 = vadd.f32 %v2979, %v3907
        %v3909 = vpop.f32.mrf.mxu0
        %v3910 = vadd.f32 %v2975, %v3909
        %v3911 = vpop.f32.mrf.mxu0
        %v3912 = vadd.f32 %v2979, %v3911
        %3913 = vmatprep.mubr.bf16.mxu0 %v3284
        %3914 = vmatmul.mubr.bf16.gmra.mxu0 %v3283
        %v3915 = vpop.f32.mrf.mxu0
        %v3916 = vadd.f32 %v2975, %v3915
        %v3917 = vpop.f32.mrf.mxu0
        %v3918 = vadd.f32 %v2979, %v3917
        %v3919 = vpop.f32.mrf.mxu0
        %v3920 = vadd.f32 %v2975, %v3919
        %v3921 = vpop.f32.mrf.mxu0
        %v3922 = vadd.f32 %v2979, %v3921
        %3923 = vmatprep.mubr.bf16.mxu0 %v3289
        %3924 = vmatmul.mubr.bf16.gmra.mxu0 %v3288
        %v3925 = vpop.f32.mrf.mxu0
        %v3926 = vadd.f32 %v2975, %v3925
        %v3927 = vpop.f32.mrf.mxu0
        %v3928 = vadd.f32 %v2979, %v3927
        %v3929 = vpop.f32.mrf.mxu0
        %v3930 = vadd.f32 %v2975, %v3929
        %v3931 = vpop.f32.mrf.mxu0
        %v3932 = vadd.f32 %v2979, %v3931
        %3933 = vmatprep.mubr.bf16.mxu0 %v3294
        %3934 = vmatmul.mubr.bf16.gmra.mxu0 %v3293
        %v3935 = vpop.f32.mrf.mxu0
        %v3936 = vadd.f32 %v2975, %v3935
        %v3937 = vpop.f32.mrf.mxu0
        %v3938 = vadd.f32 %v2979, %v3937
        %v3939 = vpop.f32.mrf.mxu0
        %v3940 = vadd.f32 %v2975, %v3939
        %v3941 = vpop.f32.mrf.mxu0
        %v3942 = vadd.f32 %v2979, %v3941
        %3943 = vmatprep.mubr.bf16.mxu0 %v3299
        %3944 = vmatmul.mubr.bf16.gmra.mxu0 %v3298
        %v3945 = vpop.f32.mrf.mxu0
        %v3946 = vadd.f32 %v2975, %v3945
        %v3947 = vpop.f32.mrf.mxu0
        %v3948 = vadd.f32 %v2979, %v3947
        %v3949 = vpop.f32.mrf.mxu0
        %v3950 = vadd.f32 %v2975, %v3949
        %v3951 = vpop.f32.mrf.mxu0
        %v3952 = vadd.f32 %v2979, %v3951
        %3953 = vmatprep.mubr.bf16.mxu0 %v3304
        %3954 = vmatmul.mubr.bf16.gmra.mxu0 %v3303
        %v3955 = vpop.f32.mrf.mxu0
        %v3956 = vadd.f32 %v2975, %v3955
        %v3957 = vpop.f32.mrf.mxu0
        %v3958 = vadd.f32 %v2979, %v3957
        %v3959 = vpop.f32.mrf.mxu0
        %v3960 = vadd.f32 %v2975, %v3959
        %v3961 = vpop.f32.mrf.mxu0
        %v3962 = vadd.f32 %v2979, %v3961
        %3963 = vmatprep.mubr.bf16.mxu0 %v3309
        %3964 = vmatmul.mubr.bf16.gmra.mxu0 %v3308
        %v3965 = vpop.f32.mrf.mxu0
        %v3966 = vadd.f32 %v2975, %v3965
        %v3967 = vpop.f32.mrf.mxu0
        %v3968 = vadd.f32 %v2979, %v3967
        %v3969 = vpop.f32.mrf.mxu0
        %v3970 = vadd.f32 %v2975, %v3969
        %v3971 = vpop.f32.mrf.mxu0
        %v3972 = vadd.f32 %v2979, %v3971
        %3973 = vmatprep.mubr.bf16.mxu0 %v3314
        %3974 = vmatmul.mubr.bf16.gmra.mxu0 %v3313
        %v3975 = vpop.f32.mrf.mxu0
        %v3976 = vadd.f32 %v2975, %v3975
        %v3977 = vpop.f32.mrf.mxu0
        %v3978 = vadd.f32 %v2979, %v3977
        %v3979 = vpop.f32.mrf.mxu0
        %v3980 = vadd.f32 %v2975, %v3979
        %v3981 = vpop.f32.mrf.mxu0
        %v3982 = vadd.f32 %v2979, %v3981
        %3983 = vdwg.mxu0
        %3984 = vmatprep.subr.bf16.mxu0 %v3645
        %3985 = vmatpush1.bf16.msra.mxu0 %v3644
        %3986 = vmatprep.subr.bf16.mxu0 %v3643
        %3987 = vmatpush1.bf16.msra.mxu0 %v3642
        %3988 = vmatprep.subr.bf16.mxu0 %v3641
        %3989 = vmatpush1.bf16.msra.mxu0 %v3640
        %3990 = vmatprep.subr.bf16.mxu0 %v3639
        %3991 = vmatpush1.bf16.msra.mxu0 %v3638
        %3992 = vmatprep.subr.bf16.mxu0 %v3637
        %3993 = vmatpush1.bf16.msra.mxu0 %v3636
        %3994 = vmatprep.subr.bf16.mxu0 %v3635
        %3995 = vmatpush1.bf16.msra.mxu0 %v3634
        %3996 = vmatprep.subr.bf16.mxu0 %v3633
        %3997 = vmatpush1.bf16.msra.mxu0 %v3632
        %3998 = vmatprep.subr.bf16.mxu0 %v3631
        %3999 = vmatpush1.bf16.msra.mxu0 %v3630
        %4000 = vmatprep.subr.bf16.mxu0 %v3661
        %4001 = vmatpush2.bf16.msra.mxu0 %v3660
        %4002 = vmatprep.subr.bf16.mxu0 %v3659
        %4003 = vmatpush2.bf16.msra.mxu0 %v3658
        %4004 = vmatprep.subr.bf16.mxu0 %v3657
        %4005 = vmatpush2.bf16.msra.mxu0 %v3656
        %4006 = vmatprep.subr.bf16.mxu0 %v3655
        %4007 = vmatpush2.bf16.msra.mxu0 %v3654
        %4008 = vmatprep.subr.bf16.mxu0 %v3653
        %4009 = vmatpush2.bf16.msra.mxu0 %v3652
        %4010 = vmatprep.subr.bf16.mxu0 %v3651
        %4011 = vmatpush2.bf16.msra.mxu0 %v3650
        %4012 = vmatprep.subr.bf16.mxu0 %v3649
        %4013 = vmatpush2.bf16.msra.mxu0 %v3648
        %4014 = vmatprep.subr.bf16.mxu0 %v3647
        %4015 = vmatpush2.bf16.msra.mxu0 %v3646
        %4016 = vmatprep.mubr.bf16.mxu0 %v3241
        %4017 = vmatmul.mubr.bf16.gmra.mxu0 %v3240
        %v4018 = vpop.f32.mrf.mxu0
        %v4019 = vadd.f32 %v3826, %v4018
        %v4020 = vpop.f32.mrf.mxu0
        %v4021 = vadd.f32 %v3828, %v4020
        %v4022 = vpop.f32.mrf.mxu0
        %v4023 = vadd.f32 %v3830, %v4022
        %v4024 = vpop.f32.mrf.mxu0
        %v4025 = vadd.f32 %v3832, %v4024
        %4026 = vmatprep.mubr.bf16.mxu0 %v3246
        %4027 = vmatmul.mubr.bf16.gmra.mxu0 %v3245
        %v4028 = vpop.f32.mrf.mxu0
        %v4029 = vadd.f32 %v3836, %v4028
        %v4030 = vpop.f32.mrf.mxu0
        %v4031 = vadd.f32 %v3838, %v4030
        %v4032 = vpop.f32.mrf.mxu0
        %v4033 = vadd.f32 %v3840, %v4032
        %v4034 = vpop.f32.mrf.mxu0
        %v4035 = vadd.f32 %v3842, %v4034
        %4036 = vmatprep.mubr.bf16.mxu0 %v3251
        %4037 = vmatmul.mubr.bf16.gmra.mxu0 %v3250
        %v4038 = vpop.f32.mrf.mxu0
        %v4039 = vadd.f32 %v3846, %v4038
        %v4040 = vpop.f32.mrf.mxu0
        %v4041 = vadd.f32 %v3848, %v4040
        %v4042 = vpop.f32.mrf.mxu0
        %v4043 = vadd.f32 %v3850, %v4042
        %v4044 = vpop.f32.mrf.mxu0
        %v4045 = vadd.f32 %v3852, %v4044
        %4046 = vmatprep.mubr.bf16.mxu0 %v3256
        %4047 = vmatmul.mubr.bf16.gmra.mxu0 %v3255
        %v4048 = vpop.f32.mrf.mxu0
        %v4049 = vadd.f32 %v3856, %v4048
        %v4050 = vpop.f32.mrf.mxu0
        %v4051 = vadd.f32 %v3858, %v4050
        %v4052 = vpop.f32.mrf.mxu0
        %v4053 = vadd.f32 %v3860, %v4052
        %v4054 = vpop.f32.mrf.mxu0
        %v4055 = vadd.f32 %v3862, %v4054
        %4056 = vmatprep.mubr.bf16.mxu0 %v3261
        %4057 = vmatmul.mubr.bf16.gmra.mxu0 %v3260
        %v4058 = vpop.f32.mrf.mxu0
        %v4059 = vadd.f32 %v3866, %v4058
        %v4060 = vpop.f32.mrf.mxu0
        %v4061 = vadd.f32 %v3868, %v4060
        %v4062 = vpop.f32.mrf.mxu0
        %v4063 = vadd.f32 %v3870, %v4062
        %v4064 = vpop.f32.mrf.mxu0
        %v4065 = vadd.f32 %v3872, %v4064
        %4066 = vmatprep.mubr.bf16.mxu0 %v3266
        %4067 = vmatmul.mubr.bf16.gmra.mxu0 %v3265
        %v4068 = vpop.f32.mrf.mxu0
        %v4069 = vadd.f32 %v3876, %v4068
        %v4070 = vpop.f32.mrf.mxu0
        %v4071 = vadd.f32 %v3878, %v4070
        %v4072 = vpop.f32.mrf.mxu0
        %v4073 = vadd.f32 %v3880, %v4072
        %v4074 = vpop.f32.mrf.mxu0
        %v4075 = vadd.f32 %v3882, %v4074
        %4076 = vmatprep.mubr.bf16.mxu0 %v3271
        %4077 = vmatmul.mubr.bf16.gmra.mxu0 %v3270
        %v4078 = vpop.f32.mrf.mxu0
        %v4079 = vadd.f32 %v3886, %v4078
        %v4080 = vpop.f32.mrf.mxu0
        %v4081 = vadd.f32 %v3888, %v4080
        %v4082 = vpop.f32.mrf.mxu0
        %v4083 = vadd.f32 %v3890, %v4082
        %v4084 = vpop.f32.mrf.mxu0
        %v4085 = vadd.f32 %v3892, %v4084
        %4086 = vmatprep.mubr.bf16.mxu0 %v3276
        %4087 = vmatmul.mubr.bf16.gmra.mxu0 %v3275
        %v4088 = vpop.f32.mrf.mxu0
        %v4089 = vadd.f32 %v3896, %v4088
        %v4090 = vpop.f32.mrf.mxu0
        %v4091 = vadd.f32 %v3898, %v4090
        %v4092 = vpop.f32.mrf.mxu0
        %v4093 = vadd.f32 %v3900, %v4092
        %v4094 = vpop.f32.mrf.mxu0
        %v4095 = vadd.f32 %v3902, %v4094
        %4096 = vmatprep.mubr.bf16.mxu0 %v3281
        %4097 = vmatmul.mubr.bf16.gmra.mxu0 %v3280
        %v4098 = vpop.f32.mrf.mxu0
        %v4099 = vadd.f32 %v3906, %v4098
        %v4100 = vpop.f32.mrf.mxu0
        %v4101 = vadd.f32 %v3908, %v4100
        %v4102 = vpop.f32.mrf.mxu0
        %v4103 = vadd.f32 %v3910, %v4102
        %v4104 = vpop.f32.mrf.mxu0
        %v4105 = vadd.f32 %v3912, %v4104
        %4106 = vmatprep.mubr.bf16.mxu0 %v3286
        %4107 = vmatmul.mubr.bf16.gmra.mxu0 %v3285
        %v4108 = vpop.f32.mrf.mxu0
        %v4109 = vadd.f32 %v3916, %v4108
        %v4110 = vpop.f32.mrf.mxu0
        %v4111 = vadd.f32 %v3918, %v4110
        %v4112 = vpop.f32.mrf.mxu0
        %v4113 = vadd.f32 %v3920, %v4112
        %v4114 = vpop.f32.mrf.mxu0
        %v4115 = vadd.f32 %v3922, %v4114
        %4116 = vmatprep.mubr.bf16.mxu0 %v3291
        %4117 = vmatmul.mubr.bf16.gmra.mxu0 %v3290
        %v4118 = vpop.f32.mrf.mxu0
        %v4119 = vadd.f32 %v3926, %v4118
        %v4120 = vpop.f32.mrf.mxu0
        %v4121 = vadd.f32 %v3928, %v4120
        %v4122 = vpop.f32.mrf.mxu0
        %v4123 = vadd.f32 %v3930, %v4122
        %v4124 = vpop.f32.mrf.mxu0
        %v4125 = vadd.f32 %v3932, %v4124
        %4126 = vmatprep.mubr.bf16.mxu0 %v3296
        %4127 = vmatmul.mubr.bf16.gmra.mxu0 %v3295
        %v4128 = vpop.f32.mrf.mxu0
        %v4129 = vadd.f32 %v3936, %v4128
        %v4130 = vpop.f32.mrf.mxu0
        %v4131 = vadd.f32 %v3938, %v4130
        %v4132 = vpop.f32.mrf.mxu0
        %v4133 = vadd.f32 %v3940, %v4132
        %v4134 = vpop.f32.mrf.mxu0
        %v4135 = vadd.f32 %v3942, %v4134
        %4136 = vmatprep.mubr.bf16.mxu0 %v3301
        %4137 = vmatmul.mubr.bf16.gmra.mxu0 %v3300
        %v4138 = vpop.f32.mrf.mxu0
        %v4139 = vadd.f32 %v3946, %v4138
        %v4140 = vpop.f32.mrf.mxu0
        %v4141 = vadd.f32 %v3948, %v4140
        %v4142 = vpop.f32.mrf.mxu0
        %v4143 = vadd.f32 %v3950, %v4142
        %v4144 = vpop.f32.mrf.mxu0
        %v4145 = vadd.f32 %v3952, %v4144
        %4146 = vmatprep.mubr.bf16.mxu0 %v3306
        %4147 = vmatmul.mubr.bf16.gmra.mxu0 %v3305
        %v4148 = vpop.f32.mrf.mxu0
        %v4149 = vadd.f32 %v3956, %v4148
        %v4150 = vpop.f32.mrf.mxu0
        %v4151 = vadd.f32 %v3958, %v4150
        %v4152 = vpop.f32.mrf.mxu0
        %v4153 = vadd.f32 %v3960, %v4152
        %v4154 = vpop.f32.mrf.mxu0
        %v4155 = vadd.f32 %v3962, %v4154
        %4156 = vmatprep.mubr.bf16.mxu0 %v3311
        %4157 = vmatmul.mubr.bf16.gmra.mxu0 %v3310
        %v4158 = vpop.f32.mrf.mxu0
        %v4159 = vadd.f32 %v3966, %v4158
        %v4160 = vpop.f32.mrf.mxu0
        %v4161 = vadd.f32 %v3968, %v4160
        %v4162 = vpop.f32.mrf.mxu0
        %v4163 = vadd.f32 %v3970, %v4162
        %v4164 = vpop.f32.mrf.mxu0
        %v4165 = vadd.f32 %v3972, %v4164
        %4166 = vmatprep.mubr.bf16.mxu0 %v3316
        %4167 = vmatmul.mubr.bf16.gmra.mxu0 %v3315
        %v4168 = vpop.f32.mrf.mxu0
        %v4169 = vadd.f32 %v3976, %v4168
        %v4170 = vpop.f32.mrf.mxu0
        %v4171 = vadd.f32 %v3978, %v4170
        %v4172 = vpop.f32.mrf.mxu0
        %v4173 = vadd.f32 %v3980, %v4172
        %v4174 = vpop.f32.mrf.mxu0
        %v4175 = vadd.f32 %v3982, %v4174
        %4176 = vdwg.mxu0
        %4177 = vmatprep.subr.bf16.mxu0 0
        %4178 = vmatpush1.bf16.msra.mxu0 0
        %4179 = vmatprep.subr.bf16.mxu0 0
        %4180 = vmatpush1.bf16.msra.mxu0 0
        %4181 = vmatprep.subr.bf16.mxu0 0
        %4182 = vmatpush1.bf16.msra.mxu0 0
        %4183 = vmatprep.subr.bf16.mxu0 0
        %4184 = vmatpush1.bf16.msra.mxu0 0
        %4185 = vmatprep.subr.bf16.mxu0 %v3669
        %4186 = vmatpush1.bf16.msra.mxu0 %v3668
        %4187 = vmatprep.subr.bf16.mxu0 %v3667
        %4188 = vmatpush1.bf16.msra.mxu0 %v3666
        %4189 = vmatprep.subr.bf16.mxu0 %v3665
        %4190 = vmatpush1.bf16.msra.mxu0 %v3664
        %4191 = vmatprep.subr.bf16.mxu0 %v3663
        %4192 = vmatpush1.bf16.msra.mxu0 %v3662
        %4193 = vmatprep.subr.bf16.mxu0 0
        %4194 = vmatpush2.bf16.msra.mxu0 0
        %4195 = vmatprep.subr.bf16.mxu0 0
        %4196 = vmatpush2.bf16.msra.mxu0 0
        %4197 = vmatprep.subr.bf16.mxu0 0
        %4198 = vmatpush2.bf16.msra.mxu0 0
        %4199 = vmatprep.subr.bf16.mxu0 0
        %4200 = vmatpush2.bf16.msra.mxu0 0
        %4201 = vmatprep.subr.bf16.mxu0 0
        %4202 = vmatpush2.bf16.msra.mxu0 0
        %4203 = vmatprep.subr.bf16.mxu0 0
        %4204 = vmatpush2.bf16.msra.mxu0 0
        %4205 = vmatprep.subr.bf16.mxu0 0
        %4206 = vmatpush2.bf16.msra.mxu0 0
        %4207 = vmatprep.subr.bf16.mxu0 0
        %4208 = vmatpush2.bf16.msra.mxu0 0
        %4209 = vmatprep.mubr.bf16.mxu0 0
        %4210 = vmatmul.mubr.bf16.gmra.mxu0 %v3744
        %v4211 = vpop.f32.mrf.mxu0
        %v4212 = vadd.f32 %v4019, %v4211
        %v4213 = vpop.f32.mrf.mxu0
        %v4214 = vadd.f32 %v4021, %v4213
        %v4215 = vpop.f32.mrf.mxu0
        %v4216 = vadd.f32 %v4023, %v4215
        %v4217 = vpop.f32.mrf.mxu0
        %v4218 = vadd.f32 %v4025, %v4217
        %4219 = vmatprep.mubr.bf16.mxu0 0
        %4220 = vmatmul.mubr.bf16.gmra.mxu0 %v3747
        %v4221 = vpop.f32.mrf.mxu0
        %v4222 = vadd.f32 %v4029, %v4221
        %v4223 = vpop.f32.mrf.mxu0
        %v4224 = vadd.f32 %v4031, %v4223
        %v4225 = vpop.f32.mrf.mxu0
        %v4226 = vadd.f32 %v4033, %v4225
        %v4227 = vpop.f32.mrf.mxu0
        %v4228 = vadd.f32 %v4035, %v4227
        %4229 = vmatprep.mubr.bf16.mxu0 0
        %4230 = vmatmul.mubr.bf16.gmra.mxu0 %v3750
        %v4231 = vpop.f32.mrf.mxu0
        %v4232 = vadd.f32 %v4039, %v4231
        %v4233 = vpop.f32.mrf.mxu0
        %v4234 = vadd.f32 %v4041, %v4233
        %v4235 = vpop.f32.mrf.mxu0
        %v4236 = vadd.f32 %v4043, %v4235
        %v4237 = vpop.f32.mrf.mxu0
        %v4238 = vadd.f32 %v4045, %v4237
        %4239 = vmatprep.mubr.bf16.mxu0 0
        %4240 = vmatmul.mubr.bf16.gmra.mxu0 %v3753
        %v4241 = vpop.f32.mrf.mxu0
        %v4242 = vadd.f32 %v4049, %v4241
        %v4243 = vpop.f32.mrf.mxu0
        %v4244 = vadd.f32 %v4051, %v4243
        %v4245 = vpop.f32.mrf.mxu0
        %v4246 = vadd.f32 %v4053, %v4245
        %v4247 = vpop.f32.mrf.mxu0
        %v4248 = vadd.f32 %v4055, %v4247
        %4249 = vmatprep.mubr.bf16.mxu0 0
        %4250 = vmatmul.mubr.bf16.gmra.mxu0 %v3756
        %v4251 = vpop.f32.mrf.mxu0
        %v4252 = vadd.f32 %v4059, %v4251
        %v4253 = vpop.f32.mrf.mxu0
        %v4254 = vadd.f32 %v4061, %v4253
        %v4255 = vpop.f32.mrf.mxu0
        %v4256 = vadd.f32 %v4063, %v4255
        %v4257 = vpop.f32.mrf.mxu0
        %v4258 = vadd.f32 %v4065, %v4257
        %4259 = vmatprep.mubr.bf16.mxu0 0
        %4260 = vmatmul.mubr.bf16.gmra.mxu0 %v3759
        %v4261 = vpop.f32.mrf.mxu0
        %v4262 = vadd.f32 %v4069, %v4261
        %v4263 = vpop.f32.mrf.mxu0
        %v4264 = vadd.f32 %v4071, %v4263
        %v4265 = vpop.f32.mrf.mxu0
        %v4266 = vadd.f32 %v4073, %v4265
        %v4267 = vpop.f32.mrf.mxu0
        %v4268 = vadd.f32 %v4075, %v4267
        %4269 = vmatprep.mubr.bf16.mxu0 0
        %4270 = vmatmul.mubr.bf16.gmra.mxu0 %v3762
        %v4271 = vpop.f32.mrf.mxu0
        %v4272 = vadd.f32 %v4079, %v4271
        %v4273 = vpop.f32.mrf.mxu0
        %v4274 = vadd.f32 %v4081, %v4273
        %v4275 = vpop.f32.mrf.mxu0
        %v4276 = vadd.f32 %v4083, %v4275
        %v4277 = vpop.f32.mrf.mxu0
        %v4278 = vadd.f32 %v4085, %v4277
        %4279 = vmatprep.mubr.bf16.mxu0 0
        %4280 = vmatmul.mubr.bf16.gmra.mxu0 %v3765
        %v4281 = vpop.f32.mrf.mxu0
        %v4282 = vadd.f32 %v4089, %v4281
        %v4283 = vpop.f32.mrf.mxu0
        %v4284 = vadd.f32 %v4091, %v4283
        %v4285 = vpop.f32.mrf.mxu0
        %v4286 = vadd.f32 %v4093, %v4285
        %v4287 = vpop.f32.mrf.mxu0
        %v4288 = vadd.f32 %v4095, %v4287
        %4289 = vmatprep.mubr.bf16.mxu0 0
        %4290 = vmatmul.mubr.bf16.gmra.mxu0 %v3768
        %v4291 = vpop.f32.mrf.mxu0
        %v4292 = vadd.f32 %v4099, %v4291
        %v4293 = vpop.f32.mrf.mxu0
        %v4294 = vadd.f32 %v4101, %v4293
        %v4295 = vpop.f32.mrf.mxu0
        %v4296 = vadd.f32 %v4103, %v4295
        %v4297 = vpop.f32.mrf.mxu0
        %v4298 = vadd.f32 %v4105, %v4297
        %4299 = vmatprep.mubr.bf16.mxu0 0
        %4300 = vmatmul.mubr.bf16.gmra.mxu0 %v3771
        %v4301 = vpop.f32.mrf.mxu0
        %v4302 = vadd.f32 %v4109, %v4301
        %v4303 = vpop.f32.mrf.mxu0
        %v4304 = vadd.f32 %v4111, %v4303
        %v4305 = vpop.f32.mrf.mxu0
        %v4306 = vadd.f32 %v4113, %v4305
        %v4307 = vpop.f32.mrf.mxu0
        %v4308 = vadd.f32 %v4115, %v4307
        %4309 = vmatprep.mubr.bf16.mxu0 0
        %4310 = vmatmul.mubr.bf16.gmra.mxu0 %v3774
        %v4311 = vpop.f32.mrf.mxu0
        %v4312 = vadd.f32 %v4119, %v4311
        %v4313 = vpop.f32.mrf.mxu0
        %v4314 = vadd.f32 %v4121, %v4313
        %v4315 = vpop.f32.mrf.mxu0
        %v4316 = vadd.f32 %v4123, %v4315
        %v4317 = vpop.f32.mrf.mxu0
        %v4318 = vadd.f32 %v4125, %v4317
        %4319 = vmatprep.mubr.bf16.mxu0 0
        %4320 = vmatmul.mubr.bf16.gmra.mxu0 %v3777
        %v4321 = vpop.f32.mrf.mxu0
        %v4322 = vadd.f32 %v4129, %v4321
        %v4323 = vpop.f32.mrf.mxu0
        %v4324 = vadd.f32 %v4131, %v4323
        %v4325 = vpop.f32.mrf.mxu0
        %v4326 = vadd.f32 %v4133, %v4325
        %v4327 = vpop.f32.mrf.mxu0
        %v4328 = vadd.f32 %v4135, %v4327
        %4329 = vmatprep.mubr.bf16.mxu0 0
        %4330 = vmatmul.mubr.bf16.gmra.mxu0 %v3780
        %v4331 = vpop.f32.mrf.mxu0
        %v4332 = vadd.f32 %v4139, %v4331
        %v4333 = vpop.f32.mrf.mxu0
        %v4334 = vadd.f32 %v4141, %v4333
        %v4335 = vpop.f32.mrf.mxu0
        %v4336 = vadd.f32 %v4143, %v4335
        %v4337 = vpop.f32.mrf.mxu0
        %v4338 = vadd.f32 %v4145, %v4337
        %4339 = vmatprep.mubr.bf16.mxu0 0
        %4340 = vmatmul.mubr.bf16.gmra.mxu0 %v3783
        %v4341 = vpop.f32.mrf.mxu0
        %v4342 = vadd.f32 %v4149, %v4341
        %v4343 = vpop.f32.mrf.mxu0
        %v4344 = vadd.f32 %v4151, %v4343
        %v4345 = vpop.f32.mrf.mxu0
        %v4346 = vadd.f32 %v4153, %v4345
        %v4347 = vpop.f32.mrf.mxu0
        %v4348 = vadd.f32 %v4155, %v4347
        %4349 = vmatprep.mubr.bf16.mxu0 0
        %4350 = vmatmul.mubr.bf16.gmra.mxu0 %v3786
        %v4351 = vpop.f32.mrf.mxu0
        %v4352 = vadd.f32 %v4159, %v4351
        %v4353 = vpop.f32.mrf.mxu0
        %v4354 = vadd.f32 %v4161, %v4353
        %v4355 = vpop.f32.mrf.mxu0
        %v4356 = vadd.f32 %v4163, %v4355
        %v4357 = vpop.f32.mrf.mxu0
        %v4358 = vadd.f32 %v4165, %v4357
        %4359 = vmatprep.mubr.bf16.mxu0 0
        %4360 = vmatmul.mubr.bf16.gmra.mxu0 %v3789
        %v4361 = vpop.f32.mrf.mxu0
        %v4362 = vadd.f32 %v4169, %v4361
        %v4363 = vpop.f32.mrf.mxu0
        %v4364 = vadd.f32 %v4171, %v4363
        %v4365 = vpop.f32.mrf.mxu0
        %v4366 = vadd.f32 %v4173, %v4365
        %v4367 = vpop.f32.mrf.mxu0
        %v4368 = vadd.f32 %v4175, %v4367
        %4369 = vdwg.mxu0
        %s4370 = sld [smem:[#allocation3]]
        %vm4371 = vcmp.ge.f32.partialorder %v4212, 0.0
        %vm4372 = vcmp.ge.f32.partialorder %v4214, 0.0
        %vm4373 = vcmp.ge.f32.partialorder %v4216, 0.0
        %vm4374 = vcmp.ge.f32.partialorder %v4218, 0.0
        %vm4375 = vcmp.ge.f32.partialorder %v4222, 0.0
        %vm4376 = vcmp.ge.f32.partialorder %v4224, 0.0
        %vm4377 = vcmp.ge.f32.partialorder %v4226, 0.0
        %vm4378 = vcmp.ge.f32.partialorder %v4228, 0.0
        %vm4379 = vcmp.ge.f32.partialorder %v4232, 0.0
        %vm4380 = vcmp.ge.f32.partialorder %v4234, 0.0
        %vm4381 = vcmp.ge.f32.partialorder %v4236, 0.0
        %vm4382 = vcmp.ge.f32.partialorder %v4238, 0.0
        %vm4383 = vcmp.ge.f32.partialorder %v4242, 0.0
        %vm4384 = vcmp.ge.f32.partialorder %v4244, 0.0
        %vm4385 = vcmp.ge.f32.partialorder %v4246, 0.0
        %vm4386 = vcmp.ge.f32.partialorder %v4248, 0.0
        %vm4387 = vcmp.ge.f32.partialorder %v4252, 0.0
        %vm4388 = vcmp.ge.f32.partialorder %v4254, 0.0
        %vm4389 = vcmp.ge.f32.partialorder %v4256, 0.0
        %vm4390 = vcmp.ge.f32.partialorder %v4258, 0.0
        %vm4391 = vcmp.ge.f32.partialorder %v4262, 0.0
        %vm4392 = vcmp.ge.f32.partialorder %v4264, 0.0
        %vm4393 = vcmp.ge.f32.partialorder %v4266, 0.0
        %vm4394 = vcmp.ge.f32.partialorder %v4268, 0.0
        %vm4395 = vcmp.ge.f32.partialorder %v4272, 0.0
        %vm4396 = vcmp.ge.f32.partialorder %v4274, 0.0
        %vm4397 = vcmp.ge.f32.partialorder %v4276, 0.0
        %vm4398 = vcmp.ge.f32.partialorder %v4278, 0.0
        %vm4399 = vcmp.ge.f32.partialorder %v4282, 0.0
        %vm4400 = vcmp.ge.f32.partialorder %v4284, 0.0
        %vm4401 = vcmp.ge.f32.partialorder %v4286, 0.0
        %vm4402 = vcmp.ge.f32.partialorder %v4288, 0.0
        %vm4403 = vcmp.ge.f32.partialorder %v4292, 0.0
        %vm4404 = vcmp.ge.f32.partialorder %v4294, 0.0
        %vm4405 = vcmp.ge.f32.partialorder %v4296, 0.0
        %vm4406 = vcmp.ge.f32.partialorder %v4298, 0.0
        %vm4407 = vcmp.ge.f32.partialorder %v4302, 0.0
        %vm4408 = vcmp.ge.f32.partialorder %v4304, 0.0
        %vm4409 = vcmp.ge.f32.partialorder %v4306, 0.0
        %vm4410 = vcmp.ge.f32.partialorder %v4308, 0.0
        %vm4411 = vcmp.ge.f32.partialorder %v4312, 0.0
        %vm4412 = vcmp.ge.f32.partialorder %v4314, 0.0
        %vm4413 = vcmp.ge.f32.partialorder %v4316, 0.0
        %vm4414 = vcmp.ge.f32.partialorder %v4318, 0.0
        %vm4415 = vcmp.ge.f32.partialorder %v4322, 0.0
        %vm4416 = vcmp.ge.f32.partialorder %v4324, 0.0
        %vm4417 = vcmp.ge.f32.partialorder %v4326, 0.0
        %vm4418 = vcmp.ge.f32.partialorder %v4328, 0.0
        %vm4419 = vcmp.ge.f32.partialorder %v4332, 0.0
        %vm4420 = vcmp.ge.f32.partialorder %v4334, 0.0
        %vm4421 = vcmp.ge.f32.partialorder %v4336, 0.0
        %vm4422 = vcmp.ge.f32.partialorder %v4338, 0.0
        %vm4423 = vcmp.ge.f32.partialorder %v4342, 0.0
        %vm4424 = vcmp.ge.f32.partialorder %v4344, 0.0
        %vm4425 = vcmp.ge.f32.partialorder %v4346, 0.0
        %vm4426 = vcmp.ge.f32.partialorder %v4348, 0.0
        %vm4427 = vcmp.ge.f32.partialorder %v4352, 0.0
        %vm4428 = vcmp.ge.f32.partialorder %v4354, 0.0
        %vm4429 = vcmp.ge.f32.partialorder %v4356, 0.0
        %vm4430 = vcmp.ge.f32.partialorder %v4358, 0.0
        %vm4431 = vcmp.ge.f32.partialorder %v4362, 0.0
        %vm4432 = vcmp.ge.f32.partialorder %v4364, 0.0
        %vm4433 = vcmp.ge.f32.partialorder %v4366, 0.0
        %vm4434 = vcmp.ge.f32.partialorder %v4368, 0.0
        %v4435 = vstv %s4370
        %v4436 = vmul.f32 %v4435, %v4212
        %v4437 = vmul.f32 %v4435, %v4214
        %v4438 = vmul.f32 %v4435, %v4216
        %v4439 = vmul.f32 %v4435, %v4218
        %v4440 = vmul.f32 %v4435, %v4222
        %v4441 = vmul.f32 %v4435, %v4224
        %v4442 = vmul.f32 %v4435, %v4226
        %v4443 = vmul.f32 %v4435, %v4228
        %v4444 = vmul.f32 %v4435, %v4232
        %v4445 = vmul.f32 %v4435, %v4234
        %v4446 = vmul.f32 %v4435, %v4236
        %v4447 = vmul.f32 %v4435, %v4238
        %v4448 = vmul.f32 %v4435, %v4242
        %v4449 = vmul.f32 %v4435, %v4244
        %v4450 = vmul.f32 %v4435, %v4246
        %v4451 = vmul.f32 %v4435, %v4248
        %v4452 = vmul.f32 %v4435, %v4252
        %v4453 = vmul.f32 %v4435, %v4254
        %v4454 = vmul.f32 %v4435, %v4256
        %v4455 = vmul.f32 %v4435, %v4258
        %v4456 = vmul.f32 %v4435, %v4262
        %v4457 = vmul.f32 %v4435, %v4264
        %v4458 = vmul.f32 %v4435, %v4266
        %v4459 = vmul.f32 %v4435, %v4268
        %v4460 = vmul.f32 %v4435, %v4272
        %v4461 = vmul.f32 %v4435, %v4274
        %v4462 = vmul.f32 %v4435, %v4276
        %v4463 = vmul.f32 %v4435, %v4278
        %v4464 = vmul.f32 %v4435, %v4282
        %v4465 = vmul.f32 %v4435, %v4284
        %v4466 = vmul.f32 %v4435, %v4286
        %v4467 = vmul.f32 %v4435, %v4288
        %v4468 = vmul.f32 %v4435, %v4292
        %v4469 = vmul.f32 %v4435, %v4294
        %v4470 = vmul.f32 %v4435, %v4296
        %v4471 = vmul.f32 %v4435, %v4298
        %v4472 = vmul.f32 %v4435, %v4302
        %v4473 = vmul.f32 %v4435, %v4304
        %v4474 = vmul.f32 %v4435, %v4306
        %v4475 = vmul.f32 %v4435, %v4308
        %v4476 = vmul.f32 %v4435, %v4312
        %v4477 = vmul.f32 %v4435, %v4314
        %v4478 = vmul.f32 %v4435, %v4316
        %v4479 = vmul.f32 %v4435, %v4318
        %v4480 = vmul.f32 %v4435, %v4322
        %v4481 = vmul.f32 %v4435, %v4324
        %v4482 = vmul.f32 %v4435, %v4326
        %v4483 = vmul.f32 %v4435, %v4328
        %v4484 = vmul.f32 %v4435, %v4332
        %v4485 = vmul.f32 %v4435, %v4334
        %v4486 = vmul.f32 %v4435, %v4336
        %v4487 = vmul.f32 %v4435, %v4338
        %v4488 = vmul.f32 %v4435, %v4342
        %v4489 = vmul.f32 %v4435, %v4344
        %v4490 = vmul.f32 %v4435, %v4346
        %v4491 = vmul.f32 %v4435, %v4348
        %v4492 = vmul.f32 %v4435, %v4352
        %v4493 = vmul.f32 %v4435, %v4354
        %v4494 = vmul.f32 %v4435, %v4356
        %v4495 = vmul.f32 %v4435, %v4358
        %v4496 = vmul.f32 %v4435, %v4362
        %v4497 = vmul.f32 %v4435, %v4364
        %v4498 = vmul.f32 %v4435, %v4366
        %v4499 = vmul.f32 %v4435, %v4368
        %v4500 = vsel %vm4371, %v4212, %v4436
        %v4501 = vsel %vm4372, %v4214, %v4437
        %v4502 = vsel %vm4373, %v4216, %v4438
        %v4503 = vsel %vm4374, %v4218, %v4439
        %v4504 = vsel %vm4375, %v4222, %v4440
        %v4505 = vsel %vm4376, %v4224, %v4441
        %v4506 = vsel %vm4377, %v4226, %v4442
        %v4507 = vsel %vm4378, %v4228, %v4443
        %v4508 = vsel %vm4379, %v4232, %v4444
        %v4509 = vsel %vm4380, %v4234, %v4445
        %v4510 = vsel %vm4381, %v4236, %v4446
        %v4511 = vsel %vm4382, %v4238, %v4447
        %v4512 = vsel %vm4383, %v4242, %v4448
        %v4513 = vsel %vm4384, %v4244, %v4449
        %v4514 = vsel %vm4385, %v4246, %v4450
        %v4515 = vsel %vm4386, %v4248, %v4451
        %v4516 = vsel %vm4387, %v4252, %v4452
        %v4517 = vsel %vm4388, %v4254, %v4453
        %v4518 = vsel %vm4389, %v4256, %v4454
        %v4519 = vsel %vm4390, %v4258, %v4455
        %v4520 = vsel %vm4391, %v4262, %v4456
        %v4521 = vsel %vm4392, %v4264, %v4457
        %v4522 = vsel %vm4393, %v4266, %v4458
        %v4523 = vsel %vm4394, %v4268, %v4459
        %v4524 = vsel %vm4395, %v4272, %v4460
        %v4525 = vsel %vm4396, %v4274, %v4461
        %v4526 = vsel %vm4397, %v4276, %v4462
        %v4527 = vsel %vm4398, %v4278, %v4463
        %v4528 = vsel %vm4399, %v4282, %v4464
        %v4529 = vsel %vm4400, %v4284, %v4465
        %v4530 = vsel %vm4401, %v4286, %v4466
        %v4531 = vsel %vm4402, %v4288, %v4467
        %v4532 = vsel %vm4403, %v4292, %v4468
        %v4533 = vsel %vm4404, %v4294, %v4469
        %v4534 = vsel %vm4405, %v4296, %v4470
        %v4535 = vsel %vm4406, %v4298, %v4471
        %v4536 = vsel %vm4407, %v4302, %v4472
        %v4537 = vsel %vm4408, %v4304, %v4473
        %v4538 = vsel %vm4409, %v4306, %v4474
        %v4539 = vsel %vm4410, %v4308, %v4475
        %v4540 = vsel %vm4411, %v4312, %v4476
        %v4541 = vsel %vm4412, %v4314, %v4477
        %v4542 = vsel %vm4413, %v4316, %v4478
        %v4543 = vsel %vm4414, %v4318, %v4479
        %v4544 = vsel %vm4415, %v4322, %v4480
        %v4545 = vsel %vm4416, %v4324, %v4481
        %v4546 = vsel %vm4417, %v4326, %v4482
        %v4547 = vsel %vm4418, %v4328, %v4483
        %v4548 = vsel %vm4419, %v4332, %v4484
        %v4549 = vsel %vm4420, %v4334, %v4485
        %v4550 = vsel %vm4421, %v4336, %v4486
        %v4551 = vsel %vm4422, %v4338, %v4487
        %v4552 = vsel %vm4423, %v4342, %v4488
        %v4553 = vsel %vm4424, %v4344, %v4489
        %v4554 = vsel %vm4425, %v4346, %v4490
        %v4555 = vsel %vm4426, %v4348, %v4491
        %v4556 = vsel %vm4427, %v4352, %v4492
        %v4557 = vsel %vm4428, %v4354, %v4493
        %v4558 = vsel %vm4429, %v4356, %v4494
        %v4559 = vsel %vm4430, %v4358, %v4495
        %v4560 = vsel %vm4431, %v4362, %v4496
        %v4561 = vsel %vm4432, %v4364, %v4497
        %v4562 = vsel %vm4433, %v4366, %v4498
        %v4563 = vsel %vm4434, %v4368, %v4499
        %4564 = vst [vmem:[%s235] sm:$0xff] %v4500
        %4565 = vst [vmem:[%s235 + $0x8] sm:$0xff] %v4501
        %4566 = vst [vmem:[%s235 + $0x10] sm:$0xff] %v4502
        %4567 = vst [vmem:[%s235 + $0x18] sm:$0xff] %v4503
        %4568 = vst [vmem:[%s235 + $0x20] sm:$0xff] %v4504
        %4569 = vst [vmem:[%s235 + $0x28] sm:$0xff] %v4505
        %4570 = vst [vmem:[%s235 + $0x30] sm:$0xff] %v4506
        %4571 = vst [vmem:[%s235 + $0x38] sm:$0xff] %v4507
        %4572 = vst [vmem:[%s235 + $0x40] sm:$0xff] %v4508
        %4573 = vst [vmem:[%s235 + $0x48] sm:$0xff] %v4509
        %4574 = vst [vmem:[%s235 + $0x50] sm:$0xff] %v4510
        %4575 = vst [vmem:[%s235 + $0x58] sm:$0xff] %v4511
        %4576 = vst [vmem:[%s235 + $0x60] sm:$0xff] %v4512
        %4577 = vst [vmem:[%s235 + $0x68] sm:$0xff] %v4513
        %4578 = vst [vmem:[%s235 + $0x70] sm:$0xff] %v4514
        %4579 = vst [vmem:[%s235 + $0x78] sm:$0xff] %v4515
        %4580 = vst [vmem:[%s235 + $0x80] sm:$0xff] %v4516
        %4581 = vst [vmem:[%s235 + $0x88] sm:$0xff] %v4517
        %4582 = vst [vmem:[%s235 + $0x90] sm:$0xff] %v4518
        %4583 = vst [vmem:[%s235 + $0x98] sm:$0xff] %v4519
        %4584 = vst [vmem:[%s235 + $0xa0] sm:$0xff] %v4520
        %4585 = vst [vmem:[%s235 + $0xa8] sm:$0xff] %v4521
        %4586 = vst [vmem:[%s235 + $0xb0] sm:$0xff] %v4522
        %4587 = vst [vmem:[%s235 + $0xb8] sm:$0xff] %v4523
        %4588 = vst [vmem:[%s235 + $0xc0] sm:$0xff] %v4524
        %4589 = vst [vmem:[%s235 + $0xc8] sm:$0xff] %v4525
        %4590 = vst [vmem:[%s235 + $0xd0] sm:$0xff] %v4526
        %4591 = vst [vmem:[%s235 + $0xd8] sm:$0xff] %v4527
        %4592 = vst [vmem:[%s235 + $0xe0] sm:$0xff] %v4528
        %4593 = vst [vmem:[%s235 + $0xe8] sm:$0xff] %v4529
        %4594 = vst [vmem:[%s235 + $0xf0] sm:$0xff] %v4530
        %4595 = vst [vmem:[%s235 + $0xf8] sm:$0xff] %v4531
        %4596 = vst [vmem:[%s235 + $0x100] sm:$0xff] %v4532
        %4597 = vst [vmem:[%s235 + $0x108] sm:$0xff] %v4533
        %4598 = vst [vmem:[%s235 + $0x110] sm:$0xff] %v4534
        %4599 = vst [vmem:[%s235 + $0x118] sm:$0xff] %v4535
        %4600 = vst [vmem:[%s235 + $0x120] sm:$0xff] %v4536
        %4601 = vst [vmem:[%s235 + $0x128] sm:$0xff] %v4537
        %4602 = vst [vmem:[%s235 + $0x130] sm:$0xff] %v4538
        %4603 = vst [vmem:[%s235 + $0x138] sm:$0xff] %v4539
        %4604 = vst [vmem:[%s235 + $0x140] sm:$0xff] %v4540
        %4605 = vst [vmem:[%s235 + $0x148] sm:$0xff] %v4541
        %4606 = vst [vmem:[%s235 + $0x150] sm:$0xff] %v4542
        %4607 = vst [vmem:[%s235 + $0x158] sm:$0xff] %v4543
        %4608 = vst [vmem:[%s235 + $0x160] sm:$0xff] %v4544
        %4609 = vst [vmem:[%s235 + $0x168] sm:$0xff] %v4545
        %4610 = vst [vmem:[%s235 + $0x170] sm:$0xff] %v4546
        %4611 = vst [vmem:[%s235 + $0x178] sm:$0xff] %v4547
        %4612 = vst [vmem:[%s235 + $0x180] sm:$0xff] %v4548
        %4613 = vst [vmem:[%s235 + $0x188] sm:$0xff] %v4549
        %4614 = vst [vmem:[%s235 + $0x190] sm:$0xff] %v4550
        %4615 = vst [vmem:[%s235 + $0x198] sm:$0xff] %v4551
        %4616 = vst [vmem:[%s235 + $0x1a0] sm:$0xff] %v4552
        %4617 = vst [vmem:[%s235 + $0x1a8] sm:$0xff] %v4553
        %4618 = vst [vmem:[%s235 + $0x1b0] sm:$0xff] %v4554
        %4619 = vst [vmem:[%s235 + $0x1b8] sm:$0xff] %v4555
        %4620 = vst [vmem:[%s235 + $0x1c0] sm:$0xff] %v4556
        %4621 = vst [vmem:[%s235 + $0x1c8] sm:$0xff] %v4557
        %4622 = vst [vmem:[%s235 + $0x1d0] sm:$0xff] %v4558
        %4623 = vst [vmem:[%s235 + $0x1d8] sm:$0xff] %v4559
        %4624 = vst [vmem:[%s235 + $0x1e0] sm:$0xff] %v4560
        %4625 = vst [vmem:[%s235 + $0x1e8] sm:$0xff] %v4561
        %4626 = vst [vmem:[%s235 + $0x1f0] sm:$0xff] %v4562
        %4627 = vst [vmem:[%s235 + $0x1f8] sm:$0xff] %v4563
        %s4628 = smul.u32 32, %s22
        %p4629 = scmp.lt.s32.totalorder %s21, 1
        %s4630 = scalar_select %p4629, %s21, 1
        %p4631 = scmp.lt.s32.totalorder %s4628, 31
        %s4632 = scalar_select %p4631, %s4628, 31
        %s4633 = smul.addr %s4632, 2
        %s4634 = smul.addr %s4630, 64
        %s4635 = sadd.s32 %s4633, %s4634
        %s4636 = smul.addr %s4635, 8
        %s4637 = scalar_lea.vmem %s4, %s4636
        // Predicated region
        $region41: #{subpixel_convolution_layer.1} parent=35 // pred_check
          %p4638 = pneg %p138
        $region42: #{subpixel_convolution_layer.1} parent=35 // pred_check_branch
          %4640 = sbr.rel (%p4638) target = $region44
        $region43: #{subpixel_convolution_layer.1} parent=35 // pred_region
          %s4641 = smul.u32 32, %s22
        $region44: #{subpixel_convolution_layer.1} parent=35 // pred_fallthru
          _
      $region36: #{subpixel_convolution_layer.1} parent=5 // pred_fallthru
        _
      %p4642 = scmp.le.s32.totalorder 2, %s12
      // Predicated region
      $region45: #{subpixel_convolution_layer.1} parent=5 // pred_check
        %p4643 = pneg %p4642
      $region46: #{subpixel_convolution_layer.1} parent=5 // pred_check_branch
        %4645 = sbr.rel (%p4643) target = $region48
      $region47: #{subpixel_convolution_layer.1} parent=5 // pred_region
        %s4646 = ssub.s32 %s12, 2
        // Predicated region
        $region49: #{subpixel_convolution_layer.1} parent=47 // pred_check
          %p4647 = pneg %p144
        $region50: #{subpixel_convolution_layer.1} parent=47 // pred_check_branch
          %4649 = sbr.rel (%p4647) target = $region52
        $region51: #{subpixel_convolution_layer.1} parent=47 // pred_region
          %s4650 = smul.u32 32, %s24
          %p4651 = scmp.lt.s32.totalorder %s23, 1
          %s4652 = scalar_select %p4651, %s23, 1
          %p4653 = scmp.lt.s32.totalorder %s4650, 31
          %s4654 = scalar_select %p4653, %s4650, 31
          %s4655 = smul.addr %s4654, 2
          %s4656 = smul.addr %s4652, 64
          %s4657 = sadd.s32 %s4655, %s4656
          %s4658 = smul.addr %s4657, 8
          %s4659 = scalar_lea.vmem %s4, %s4658
        $region52: #{subpixel_convolution_layer.1} parent=47 // pred_fallthru
          _
      $region48: #{subpixel_convolution_layer.1} parent=5 // pred_fallthru
        _
    $region6: #{subpixel_convolution_layer.1} parent=1 // loop_footer
      %s16 = sadd.s32 1, %s12
    $region7: #{subpixel_convolution_layer.1} parent=1 // loop_footer_branch
      %11 = sbr.rel target = $region3
    $region8: #{subpixel_convolution_layer.1} parent=1 // loop_exit
      _
    %4660 = vsyncpa [#allocation5], 1
    %s4661 = scalar_lea.sflag [#allocation5], 1
    %4662 = vsyncpa %s4661, 1

</llo_original>
